<compile_context>
chip_gen: v7x
topology: tpu7x:2x2x1
jax: 0.10.0
libtpu: 0.0.40
codegen_flags: <defaults>
</compile_context>

<pallas_src>
import functools
import math

import jax
import jax.numpy as jnp
from jax import lax
from jax.experimental import pallas as pl
from jax.experimental.pallas import tpu as pltpu

NEG_INF = -1e9   # matches -1000000000.0 in the PyTorch module


def _layer_norm(x, gamma, beta, eps=1e-5):
    mean = jnp.mean(x, axis=-1, keepdims=True)
    var = jnp.mean((x - mean) ** 2, axis=-1, keepdims=True)
    return (x - mean) * lax.rsqrt(var + eps) * gamma + beta


def _attn_ffn_block(q, kv, key_mask, attn_bias, w, num_heads, want_weights):
    """One AttnBlock: MHA + residual + LN + FFN(ReLU) + residual + LN (eval dropout = id).

    q         : (Lq, H)  f32  query / residual stream
    kv        : (Lk, H)  bf16 key/value source
    key_mask  : (1, Lk)  f32  nonzero == padded key
    attn_bias : (Lq, Lk) f32  additive attention mask, or None (skipped)
    w         : 16 weight refs
    """
    f32, bf16 = jnp.float32, jnp.bfloat16
    (wq, wk, wv, bq, bk, bv, wo, bo, g1, be1, wf1, bf1, wf2, bf2, g2, be2) = w
    Lq, H = q.shape
    Lk = kv.shape[0]
    dk = H // num_heads
    scale = 1.0 / math.sqrt(dk)

    # Fused full-width projections (heads packed along lanes); 1/sqrt(dk) folded into Q once.
    Q = (jnp.dot(q.astype(bf16), wq[...], preferred_element_type=f32) + bq[...]) * scale
    K = jnp.dot(kv, wk[...], preferred_element_type=f32) + bk[...]
    V = jnp.dot(kv, wv[...], preferred_element_type=f32) + bv[...]

    # Head-batched matmuls: no per-head lane slicing, no lane concatenation.
    Qh = jnp.swapaxes(Q.astype(bf16).reshape(Lq, num_heads, dk), 0, 1)   # (nh, Lq, dk)
    Kh = jnp.swapaxes(K.astype(bf16).reshape(Lk, num_heads, dk), 0, 1)   # (nh, Lk, dk)
    Vh = jnp.swapaxes(V.astype(bf16).reshape(Lk, num_heads, dk), 0, 1)   # (nh, Lk, dk)

    s = jnp.einsum('hqd,hkd->hqk', Qh, Kh, preferred_element_type=f32)   # (nh, Lq, Lk)

    bias = jnp.where(key_mask != 0.0, NEG_INF, 0.0)                      # (1, Lk)
    if attn_bias is not None:
        bias = bias + attn_bias                                          # (Lq, Lk)
    s = s + bias[None]

    s = s - jnp.max(s, axis=-1, keepdims=True)
    p = jnp.exp(s)
    p = p * pl.reciprocal(jnp.sum(p, axis=-1, keepdims=True), approx=True)

    # PyTorch nn.MultiheadAttention default: attention weights averaged over heads.
    wts = jnp.mean(p, axis=0) if want_weights else None                  # (Lq, Lk)

    ctx = jnp.einsum('hqk,hkd->hqd', p.astype(bf16), Vh,
                     preferred_element_type=f32)                         # (nh, Lq, dk)
    ctx = jnp.swapaxes(ctx, 0, 1).reshape(Lq, H)

    y = jnp.dot(ctx.astype(bf16), wo[...], preferred_element_type=f32) + bo[...]
    r = _layer_norm(q + y, g1[...], be1[...])
    h = jnp.maximum(
        jnp.dot(r.astype(bf16), wf1[...], preferred_element_type=f32) + bf1[...], 0.0)
    ff = jnp.dot(h.astype(bf16), wf2[...], preferred_element_type=f32) + bf2[...]
    return _layer_norm(r + ff, g2[...], be2[...]), wts


def _alias_mha_kernel(num_heads, sel_ref, sent_ref, smask_ref, ent_ref, emask_ref,
                      sa_ref, se_ref, *rest):
    w1 = rest[:16]                  # sent <-> alias AttnBlock weights
    w2 = rest[16:32]                # alias <-> entity-candidate AttnBlock weights
    out_ref, wts_ref = rest[32], rest[33]
    f32 = jnp.float32

    sel = sel_ref[0]                # (M, N)    bf16 one-hot alias-position selector
    sent = sent_ref[0]              # (N, H)    bf16
    smask = smask_ref[0]            # (1, N)    f32
    ent = ent_ref[0]                # (M*K, H)  bf16
    emask = emask_ref[0]            # (1, M*K)  f32

    M, N = sel.shape
    MK = ent.shape[0]
    K = MK // M

    # Alias-word gather fused in as a one-hot matmul on the MXU (rows for idx == -1 are 0),
    # plus the slice_emb_alias add.
    alias0 = jnp.dot(sel, sent, preferred_element_type=f32) + sa_ref[...]     # (M, H)

    # Block 1: sentence <-> alias attention; no additive attn mask; weights are consumed.
    out1, wts = _attn_ffn_block(alias0, sent, smask, None, w1, num_heads, True)
    wts_ref[0] = wts

    # Block 2: alias <-> entity-candidate attention. Block-diagonal additive mask built
    # in-kernel (alias i may only attend to its own K candidates); weights discarded.
    q2 = out1 + se_ref[...]
    row = lax.broadcasted_iota(jnp.int32, (M, MK), 0)
    col = lax.broadcasted_iota(jnp.int32, (M, MK), 1)
    ent_bias = jnp.where((col >= row * K) & (col < (row + 1) * K),
                         0.0, NEG_INF).astype(f32)

    out2, _ = _attn_ffn_block(q2, ent, emask, ent_bias, w2, num_heads, False)
    out_ref[0] = out2


def _batch_spec(arr):
    trailing = arr.ndim - 1
    return pl.BlockSpec((1,) + arr.shape[1:], lambda b: (b,) + (0,) * trailing)


def _resident_spec(arr):
    nd = arr.ndim
    return pl.BlockSpec(arr.shape, lambda b: (0,) * nd)


def alias_mha_forward(params, sent_tensor, sent_mask, entity_embedding, entity_mask,
                      alias_idx_pair_sent, slice_emb_alias, slice_emb_ent, num_heads,
                      vmem_limit_bytes=32 * 1024 * 1024):
    B, M, K, H = entity_embedding.shape
    N = sent_tensor.shape[1]
    MK = M * K

    # One-hot alias-position selector (tiny integer work in plain JAX; the actual gather of
    # sentence rows is a (M,N)x(N,H) MXU matmul inside the kernel). Missing aliases (-1) -> 0 row.
    idx = alias_idx_pair_sent[0].astype(jnp.int32)                       # (B, M)
    col = jnp.arange(N, dtype=jnp.int32)[None, None, :]
    sel = ((col == idx[..., None]) & (idx[..., None] >= 0)).astype(jnp.bfloat16)   # (B, M, N)

    # Stream activations at bf16; masks stay f32 (tiny) with exact != 0 semantics.
    sent_bf = sent_tensor.astype(jnp.bfloat16)                           # (B, N, H)
    ent_bf = entity_embedding.reshape(B, MK, H).astype(jnp.bfloat16)     # (B, M*K, H)
    smask = sent_mask.reshape(B, 1, N).astype(jnp.float32)
    emask = entity_mask.reshape(B, 1, MK).astype(jnp.float32)
    sa = slice_emb_alias.reshape(1, H).astype(jnp.float32)
    se = slice_emb_ent.reshape(1, H).astype(jnp.float32)

    w1 = params["sent_alias_attn"]
    w2 = params["attention_module"]

    in_specs = [_batch_spec(sel), _batch_spec(sent_bf), _batch_spec(smask),
                _batch_spec(ent_bf), _batch_spec(emask),
                _resident_spec(sa), _resident_spec(se)]
    in_specs += [_resident_spec(w) for w in w1]
    in_specs += [_resident_spec(w) for w in w2]

    out_shape = (jax.ShapeDtypeStruct((B, M, H), jnp.float32),
                 jax.ShapeDtypeStruct((B, M, N), jnp.float32))
    out_specs = (pl.BlockSpec((1, M, H), lambda b: (b, 0, 0)),
                 pl.BlockSpec((1, M, N), lambda b: (b, 0, 0)))

    ctx, wts = pl.pallas_call(
        functools.partial(_alias_mha_kernel, num_heads),
        grid=(B,),
        in_specs=in_specs,
        out_specs=out_specs,
        out_shape=out_shape,
        compiler_params=pltpu.CompilerParams(
            dimension_semantics=("parallel",),       # shard batch across v7x TensorCores
            vmem_limit_bytes=vmem_limit_bytes),
    )(sel, sent_bf, smask, ent_bf, emask, sa, se, *w1, *w2)

    # PyTorch returns (context.transpose(0,1), alias_word_weights) == batch-first here.
    return ctx, wts


def init_attn_block_params(key, H, F, num_heads, scale=0.05):
    ks = jax.random.split(key, 10)
    f32, bf16 = jnp.float32, jnp.bfloat16
    params = (
        (jax.random.normal(ks[0], (H, H), f32) * scale).astype(bf16),   # wq (x@W, heads packed on last dim)
        (jax.random.normal(ks[1], (H, H), f32) * scale).astype(bf16),   # wk
        (jax.random.normal(ks[2], (H, H), f32) * scale).astype(bf16),   # wv
        jax.random.normal(ks[3], (1, H), f32) * scale,                  # bq
        jax.random.normal(ks[4], (1, H), f32) * scale,                  # bk
        jax.random.normal(ks[5], (1, H), f32) * scale,                  # bv
        (jax.random.normal(ks[6], (H, H), f32) * scale).astype(bf16),   # wo (heads stacked in dk-chunks of rows)
        jnp.zeros((1, H), f32),                                         # bo
        jnp.ones((1, H), f32),                                          # LN1 gamma
        jnp.zeros((1, H), f32),                                         # LN1 beta
        (jax.random.normal(ks[7], (H, F), f32) * scale).astype(bf16),   # FFN W1
        jnp.zeros((1, F), f32),                                         # FFN b1
        (jax.random.normal(ks[8], (F, H), f32) * scale).astype(bf16),   # FFN W2
        jnp.zeros((1, H), f32),                                         # FFN b2
        jnp.ones((1, H), f32),                                          # LN2 gamma
        jnp.zeros((1, H), f32),                                         # LN2 beta
    )
    return params


if __name__ == "__main__":
    B, M, K, N, H, F, NUM_HEADS = 2, 3, 4, 8, 32, 64, 4

    root = jax.random.PRNGKey(0)
    k_sent, k_ent, k_sa, k_se, k_p1, k_p2 = jax.random.split(root, 6)

    sent_tensor = jax.random.normal(k_sent, (B, N, H), jnp.float32)
    # sentence padding mask: nonzero == padded token
    sent_mask = jnp.zeros((B, N), jnp.float32).at[1, N - 2:].set(1.0)

    entity_embedding = jax.random.normal(k_ent, (B, M, K, H), jnp.float32)
    # candidate padding mask: nonzero == padded candidate (keep candidate 0 valid everywhere)
    entity_mask = jnp.zeros((B, M, K), jnp.float32).at[:, :, K - 1].set(1.0)

    # (start, end) positions of each alias in the sentence; one alias missing (-1)
    starts = jnp.array([[0, 2, 5], [1, 3, -1]], jnp.int32)
    ends = jnp.minimum(starts + 1, N - 1)
    alias_idx_pair_sent = jnp.stack([starts, ends], axis=0)   # (2, B, M)

    slice_emb_alias = jax.random.normal(k_sa, (H,), jnp.float32) * 0.1
    slice_emb_ent = jax.random.normal(k_se, (H,), jnp.float32) * 0.1

    params = {
        "attention_module": init_attn_block_params(k_p1, H, F, NUM_HEADS),
        "sent_alias_attn": init_attn_block_params(k_p2, H, F, NUM_HEADS),
    }

    ctx, word_weights = alias_mha_forward(
        params, sent_tensor, sent_mask, entity_embedding, entity_mask,
        alias_idx_pair_sent, slice_emb_alias, slice_emb_ent, NUM_HEADS)

    jax.block_until_ready((ctx, word_weights))
    assert ctx.shape == (B, M, H), ctx.shape
    assert word_weights.shape == (B, M, N), word_weights.shape
    assert bool(jnp.all(jnp.isfinite(ctx))) and bool(jnp.all(jnp.isfinite(word_weights)))
    print("KERNEL_OK")
</pallas_src>

<mosaic_0001>
module attributes {stable_mosaic.version = 11 : i64} {
  func.func @_alias_mha_kernel(%arg0: i32, %arg1: memref<1x3x8xbf16, #tpu.memory_space<vmem>>, %arg2: memref<1x8x32xbf16, #tpu.memory_space<vmem>>, %arg3: memref<1x1x8xf32, #tpu.memory_space<vmem>>, %arg4: memref<1x12x32xbf16, #tpu.memory_space<vmem>>, %arg5: memref<1x1x12xf32, #tpu.memory_space<vmem>>, %arg6: memref<1x32xf32, #tpu.memory_space<vmem>>, %arg7: memref<1x32xf32, #tpu.memory_space<vmem>>, %arg8: memref<32x32xbf16, #tpu.memory_space<vmem>>, %arg9: memref<32x32xbf16, #tpu.memory_space<vmem>>, %arg10: memref<32x32xbf16, #tpu.memory_space<vmem>>, %arg11: memref<1x32xf32, #tpu.memory_space<vmem>>, %arg12: memref<1x32xf32, #tpu.memory_space<vmem>>, %arg13: memref<1x32xf32, #tpu.memory_space<vmem>>, %arg14: memref<32x32xbf16, #tpu.memory_space<vmem>>, %arg15: memref<1x32xf32, #tpu.memory_space<vmem>>, %arg16: memref<1x32xf32, #tpu.memory_space<vmem>>, %arg17: memref<1x32xf32, #tpu.memory_space<vmem>>, %arg18: memref<32x64xbf16, #tpu.memory_space<vmem>>, %arg19: memref<1x64xf32, #tpu.memory_space<vmem>>, %arg20: memref<64x32xbf16, #tpu.memory_space<vmem>>, %arg21: memref<1x32xf32, #tpu.memory_space<vmem>>, %arg22: memref<1x32xf32, #tpu.memory_space<vmem>>, %arg23: memref<1x32xf32, #tpu.memory_space<vmem>>, %arg24: memref<32x32xbf16, #tpu.memory_space<vmem>>, %arg25: memref<32x32xbf16, #tpu.memory_space<vmem>>, %arg26: memref<32x32xbf16, #tpu.memory_space<vmem>>, %arg27: memref<1x32xf32, #tpu.memory_space<vmem>>, %arg28: memref<1x32xf32, #tpu.memory_space<vmem>>, %arg29: memref<1x32xf32, #tpu.memory_space<vmem>>, %arg30: memref<32x32xbf16, #tpu.memory_space<vmem>>, %arg31: memref<1x32xf32, #tpu.memory_space<vmem>>, %arg32: memref<1x32xf32, #tpu.memory_space<vmem>>, %arg33: memref<1x32xf32, #tpu.memory_space<vmem>>, %arg34: memref<32x64xbf16, #tpu.memory_space<vmem>>, %arg35: memref<1x64xf32, #tpu.memory_space<vmem>>, %arg36: memref<64x32xbf16, #tpu.memory_space<vmem>>, %arg37: memref<1x32xf32, #tpu.memory_space<vmem>>, %arg38: memref<1x32xf32, #tpu.memory_space<vmem>>, %arg39: memref<1x32xf32, #tpu.memory_space<vmem>>, %arg40: memref<1x3x32xf32, #tpu.memory_space<vmem>>, %arg41: memref<1x3x8xf32, #tpu.memory_space<vmem>>) attributes {dimension_semantics = [#tpu.dimension_semantics<parallel>], iteration_bounds = array<i64: 2>, scalar_prefetch = 0 : i64, scratch_operands = 0 : i64, tpu.core_type = #tpu.core_type<tc>, window_params = [{transform_indices = @transform_0, window_bounds = array<i64: 1, 3, 8>}, {transform_indices = @transform_1, window_bounds = array<i64: 1, 8, 32>}, {transform_indices = @transform_2, window_bounds = array<i64: 1, 1, 8>}, {transform_indices = @transform_3, window_bounds = array<i64: 1, 12, 32>}, {transform_indices = @transform_4, window_bounds = array<i64: 1, 1, 12>}, {pipeline_mode = #tpu.pipeline_mode<synchronous>, transform_indices = @transform_5, window_bounds = array<i64: 1, 32>}, {pipeline_mode = #tpu.pipeline_mode<synchronous>, transform_indices = @transform_6, window_bounds = array<i64: 1, 32>}, {pipeline_mode = #tpu.pipeline_mode<synchronous>, transform_indices = @transform_7, window_bounds = array<i64: 32, 32>}, {pipeline_mode = #tpu.pipeline_mode<synchronous>, transform_indices = @transform_8, window_bounds = array<i64: 32, 32>}, {pipeline_mode = #tpu.pipeline_mode<synchronous>, transform_indices = @transform_9, window_bounds = array<i64: 32, 32>}, {pipeline_mode = #tpu.pipeline_mode<synchronous>, transform_indices = @transform_10, window_bounds = array<i64: 1, 32>}, {pipeline_mode = #tpu.pipeline_mode<synchronous>, transform_indices = @transform_11, window_bounds = array<i64: 1, 32>}, {pipeline_mode = #tpu.pipeline_mode<synchronous>, transform_indices = @transform_12, window_bounds = array<i64: 1, 32>}, {pipeline_mode = #tpu.pipeline_mode<synchronous>, transform_indices = @transform_13, window_bounds = array<i64: 32, 32>}, {pipeline_mode = #tpu.pipeline_mode<synchronous>, transform_indices = @transform_14, window_bounds = array<i64: 1, 32>}, {pipeline_mode = #tpu.pipeline_mode<synchronous>, transform_indices = @transform_15, window_bounds = array<i64: 1, 32>}, {pipeline_mode = #tpu.pipeline_mode<synchronous>, transform_indices = @transform_16, window_bounds = array<i64: 1, 32>}, {pipeline_mode = #tpu.pipeline_mode<synchronous>, transform_indices = @transform_17, window_bounds = array<i64: 32, 64>}, {pipeline_mode = #tpu.pipeline_mode<synchronous>, transform_indices = @transform_18, window_bounds = array<i64: 1, 64>}, {pipeline_mode = #tpu.pipeline_mode<synchronous>, transform_indices = @transform_19, window_bounds = array<i64: 64, 32>}, {pipeline_mode = #tpu.pipeline_mode<synchronous>, transform_indices = @transform_20, window_bounds = array<i64: 1, 32>}, {pipeline_mode = #tpu.pipeline_mode<synchronous>, transform_indices = @transform_21, window_bounds = array<i64: 1, 32>}, {pipeline_mode = #tpu.pipeline_mode<synchronous>, transform_indices = @transform_22, window_bounds = array<i64: 1, 32>}, {pipeline_mode = #tpu.pipeline_mode<synchronous>, transform_indices = @transform_23, window_bounds = array<i64: 32, 32>}, {pipeline_mode = #tpu.pipeline_mode<synchronous>, transform_indices = @transform_24, window_bounds = array<i64: 32, 32>}, {pipeline_mode = #tpu.pipeline_mode<synchronous>, transform_indices = @transform_25, window_bounds = array<i64: 32, 32>}, {pipeline_mode = #tpu.pipeline_mode<synchronous>, transform_indices = @transform_26, window_bounds = array<i64: 1, 32>}, {pipeline_mode = #tpu.pipeline_mode<synchronous>, transform_indices = @transform_27, window_bounds = array<i64: 1, 32>}, {pipeline_mode = #tpu.pipeline_mode<synchronous>, transform_indices = @transform_28, window_bounds = array<i64: 1, 32>}, {pipeline_mode = #tpu.pipeline_mode<synchronous>, transform_indices = @transform_29, window_bounds = array<i64: 32, 32>}, {pipeline_mode = #tpu.pipeline_mode<synchronous>, transform_indices = @transform_30, window_bounds = array<i64: 1, 32>}, {pipeline_mode = #tpu.pipeline_mode<synchronous>, transform_indices = @transform_31, window_bounds = array<i64: 1, 32>}, {pipeline_mode = #tpu.pipeline_mode<synchronous>, transform_indices = @transform_32, window_bounds = array<i64: 1, 32>}, {pipeline_mode = #tpu.pipeline_mode<synchronous>, transform_indices = @transform_33, window_bounds = array<i64: 32, 64>}, {pipeline_mode = #tpu.pipeline_mode<synchronous>, transform_indices = @transform_34, window_bounds = array<i64: 1, 64>}, {pipeline_mode = #tpu.pipeline_mode<synchronous>, transform_indices = @transform_35, window_bounds = array<i64: 64, 32>}, {pipeline_mode = #tpu.pipeline_mode<synchronous>, transform_indices = @transform_36, window_bounds = array<i64: 1, 32>}, {pipeline_mode = #tpu.pipeline_mode<synchronous>, transform_indices = @transform_37, window_bounds = array<i64: 1, 32>}, {pipeline_mode = #tpu.pipeline_mode<synchronous>, transform_indices = @transform_38, window_bounds = array<i64: 1, 32>}, {transform_indices = @transform_39, window_bounds = array<i64: 1, 3, 32>}, {transform_indices = @transform_40, window_bounds = array<i64: 1, 3, 8>}]} {
    %c0 = arith.constant 0 : index
    %c0_0 = arith.constant 0 : index
    %c0_1 = arith.constant 0 : index
    %0 = vector.load %arg1[%c0, %c0_0, %c0_1] : memref<1x3x8xbf16, #tpu.memory_space<vmem>>, vector<1x3x8xbf16>
    %1 = vector.shape_cast %0 : vector<1x3x8xbf16> to vector<3x8xbf16>
    %c0_2 = arith.constant 0 : index
    %c0_3 = arith.constant 0 : index
    %c0_4 = arith.constant 0 : index
    %2 = vector.load %arg2[%c0_2, %c0_3, %c0_4] : memref<1x8x32xbf16, #tpu.memory_space<vmem>>, vector<1x8x32xbf16>
    %3 = vector.shape_cast %2 : vector<1x8x32xbf16> to vector<8x32xbf16>
    %c0_5 = arith.constant 0 : index
    %c0_6 = arith.constant 0 : index
    %c0_7 = arith.constant 0 : index
    %4 = vector.load %arg3[%c0_5, %c0_6, %c0_7] : memref<1x1x8xf32, #tpu.memory_space<vmem>>, vector<1x1x8xf32>
    %5 = vector.shape_cast %4 : vector<1x1x8xf32> to vector<1x8xf32>
    %c0_8 = arith.constant 0 : index
    %c0_9 = arith.constant 0 : index
    %c0_10 = arith.constant 0 : index
    %6 = vector.load %arg4[%c0_8, %c0_9, %c0_10] : memref<1x12x32xbf16, #tpu.memory_space<vmem>>, vector<1x12x32xbf16>
    %7 = vector.shape_cast %6 : vector<1x12x32xbf16> to vector<12x32xbf16>
    %c0_11 = arith.constant 0 : index
    %c0_12 = arith.constant 0 : index
    %c0_13 = arith.constant 0 : index
    %8 = vector.load %arg5[%c0_11, %c0_12, %c0_13] : memref<1x1x12xf32, #tpu.memory_space<vmem>>, vector<1x1x12xf32>
    %9 = vector.shape_cast %8 : vector<1x1x12xf32> to vector<1x12xf32>
    %cst = arith.constant dense<0.000000e+00> : vector<3x32xf32>
    %10 = tpu.matmul %1, %3, %cst {dimension_numbers = #tpu.dot_dimension_numbers<[1], [0], [0], [1], [0, 0, 1, 1], [], []>} : vector<3x8xbf16>, vector<8x32xbf16>, vector<3x32xf32> -> vector<3x32xf32>
    %c0_14 = arith.constant 0 : index
    %c0_15 = arith.constant 0 : index
    %11 = vector.load %arg6[%c0_14, %c0_15] : memref<1x32xf32, #tpu.memory_space<vmem>>, vector<1x32xf32>
    %12 = vector.broadcast %11 : vector<1x32xf32> to vector<3x32xf32>
    %13 = arith.addf %10, %12 : vector<3x32xf32>
    %14 = arith.truncf %13 : vector<3x32xf32> to vector<3x32xbf16>
    %c0_16 = arith.constant 0 : index
    %c0_17 = arith.constant 0 : index
    %15 = vector.load %arg8[%c0_16, %c0_17] : memref<32x32xbf16, #tpu.memory_space<vmem>>, vector<32x32xbf16>
    %cst_18 = arith.constant dense<0.000000e+00> : vector<3x32xf32>
    %16 = tpu.matmul %14, %15, %cst_18 {dimension_numbers = #tpu.dot_dimension_numbers<[1], [0], [0], [1], [0, 0, 1, 1], [], []>} : vector<3x32xbf16>, vector<32x32xbf16>, vector<3x32xf32> -> vector<3x32xf32>
    %c0_19 = arith.constant 0 : index
    %c0_20 = arith.constant 0 : index
    %17 = vector.load %arg11[%c0_19, %c0_20] : memref<1x32xf32, #tpu.memory_space<vmem>>, vector<1x32xf32>
    %18 = vector.broadcast %17 : vector<1x32xf32> to vector<3x32xf32>
    %19 = arith.addf %16, %18 : vector<3x32xf32>
    %cst_21 = arith.constant 0.353553385 : f32
    %20 = vector.broadcast %cst_21 : f32 to vector<3x32xf32>
    %21 = arith.mulf %19, %20 : vector<3x32xf32>
    %c0_22 = arith.constant 0 : index
    %c0_23 = arith.constant 0 : index
    %22 = vector.load %arg9[%c0_22, %c0_23] : memref<32x32xbf16, #tpu.memory_space<vmem>>, vector<32x32xbf16>
    %cst_24 = arith.constant dense<0.000000e+00> : vector<8x32xf32>
    %23 = tpu.matmul %3, %22, %cst_24 {dimension_numbers = #tpu.dot_dimension_numbers<[1], [0], [0], [1], [0, 0, 1, 1], [], []>} : vector<8x32xbf16>, vector<32x32xbf16>, vector<8x32xf32> -> vector<8x32xf32>
    %c0_25 = arith.constant 0 : index
    %c0_26 = arith.constant 0 : index
    %24 = vector.load %arg12[%c0_25, %c0_26] : memref<1x32xf32, #tpu.memory_space<vmem>>, vector<1x32xf32>
    %25 = vector.broadcast %24 : vector<1x32xf32> to vector<8x32xf32>
    %26 = arith.addf %23, %25 : vector<8x32xf32>
    %c0_27 = arith.constant 0 : index
    %c0_28 = arith.constant 0 : index
    %27 = vector.load %arg10[%c0_27, %c0_28] : memref<32x32xbf16, #tpu.memory_space<vmem>>, vector<32x32xbf16>
    %cst_29 = arith.constant dense<0.000000e+00> : vector<8x32xf32>
    %28 = tpu.matmul %3, %27, %cst_29 {dimension_numbers = #tpu.dot_dimension_numbers<[1], [0], [0], [1], [0, 0, 1, 1], [], []>} : vector<8x32xbf16>, vector<32x32xbf16>, vector<8x32xf32> -> vector<8x32xf32>
    %c0_30 = arith.constant 0 : index
    %c0_31 = arith.constant 0 : index
    %29 = vector.load %arg13[%c0_30, %c0_31] : memref<1x32xf32, #tpu.memory_space<vmem>>, vector<1x32xf32>
    %30 = vector.broadcast %29 : vector<1x32xf32> to vector<8x32xf32>
    %31 = arith.addf %28, %30 : vector<8x32xf32>
    %32 = arith.truncf %21 : vector<3x32xf32> to vector<3x32xbf16>
    %33 = vector.shape_cast %32 : vector<3x32xbf16> to vector<3x4x8xbf16>
    %34 = tpu.transpose %33, [1, 0, 2] : vector<3x4x8xbf16> -> vector<4x3x8xbf16>
    %35 = arith.truncf %26 : vector<8x32xf32> to vector<8x32xbf16>
    %36 = vector.shape_cast %35 : vector<8x32xbf16> to vector<8x4x8xbf16>
    %37 = tpu.transpose %36, [1, 0, 2] : vector<8x4x8xbf16> -> vector<4x8x8xbf16>
    %38 = arith.truncf %31 : vector<8x32xf32> to vector<8x32xbf16>
    %39 = vector.shape_cast %38 : vector<8x32xbf16> to vector<8x4x8xbf16>
    %40 = tpu.transpose %39, [1, 0, 2] : vector<8x4x8xbf16> -> vector<4x8x8xbf16>
    "tpu.trace_start"() <{level = 10 : i32, message = "hqd,hkd->hqk"}> : () -> ()
    %cst_32 = arith.constant dense<0.000000e+00> : vector<4x3x8xf32>
    %41 = tpu.matmul %34, %37, %cst_32 {dimension_numbers = #tpu.dot_dimension_numbers<[2], [2], [1], [1], [0, 0, 0, 1, 1, 1], [0], [0]>} : vector<4x3x8xbf16>, vector<4x8x8xbf16>, vector<4x3x8xf32> -> vector<4x3x8xf32>
    %cst_33 = arith.constant 0.000000e+00 : f32
    "tpu.trace_stop"() : () -> ()
    %42 = vector.broadcast %cst_33 : f32 to vector<1x8xf32>
    %43 = arith.cmpf one, %5, %42 : vector<1x8xf32>
    %cst_34 = arith.constant -1.000000e+09 : f32
    %cst_35 = arith.constant 0.000000e+00 : f32
    %44 = vector.broadcast %cst_34 : f32 to vector<1x8xf32>
    %45 = vector.broadcast %cst_35 : f32 to vector<1x8xf32>
    %46 = arith.select %43, %44, %45 : vector<1x8xi1>, vector<1x8xf32>
    %47 = vector.shape_cast %46 : vector<1x8xf32> to vector<1x1x8xf32>
    %48 = vector.broadcast %47 : vector<1x1x8xf32> to vector<4x3x8xf32>
    %49 = arith.addf %41, %48 : vector<4x3x8xf32>
    %cst_36 = arith.constant dense<0xFF800000> : vector<4x3xf32>
    %50 = vector.multi_reduction <maximumf>, %49, %cst_36 [2] : vector<4x3x8xf32> to vector<4x3xf32>
    %51 = vector.shape_cast %50 : vector<4x3xf32> to vector<4x3x1xf32>
    %52 = vector.broadcast %51 : vector<4x3x1xf32> to vector<4x3x8xf32>
    %53 = arith.subf %49, %52 : vector<4x3x8xf32>
    %54 = math.exp %53 : vector<4x3x8xf32>
    %cst_37 = arith.constant dense<0.000000e+00> : vector<4x3xf32>
    %55 = vector.multi_reduction <add>, %54, %cst_37 [2] : vector<4x3x8xf32> to vector<4x3xf32>
    %56 = vector.shape_cast %55 : vector<4x3xf32> to vector<4x3x1xf32>
    %57 = tpu.reciprocal %56 {approx = true} : vector<4x3x1xf32> -> vector<4x3x1xf32>
    %58 = vector.broadcast %57 : vector<4x3x1xf32> to vector<4x3x8xf32>
    %59 = arith.mulf %54, %58 : vector<4x3x8xf32>
    %cst_38 = arith.constant dense<0.000000e+00> : vector<3x8xf32>
    %60 = vector.multi_reduction <add>, %59, %cst_38 [0] : vector<4x3x8xf32> to vector<3x8xf32>
    %cst_39 = arith.constant 4.000000e+00 : f32
    %61 = vector.broadcast %cst_39 : f32 to vector<3x8xf32>
    %62 = arith.divf %60, %61 : vector<3x8xf32>
    %63 = arith.truncf %59 : vector<4x3x8xf32> to vector<4x3x8xbf16>
    "tpu.trace_start"() <{level = 10 : i32, message = "hqk,hkd->hqd"}> : () -> ()
    %cst_40 = arith.constant dense<0.000000e+00> : vector<4x3x8xf32>
    %64 = tpu.matmul %63, %40, %cst_40 {dimension_numbers = #tpu.dot_dimension_numbers<[2], [1], [1], [2], [0, 0, 0, 1, 1, 2], [0], [0]>} : vector<4x3x8xbf16>, vector<4x8x8xbf16>, vector<4x3x8xf32> -> vector<4x3x8xf32>
    "tpu.trace_stop"() : () -> ()
    %65 = tpu.transpose %64, [1, 0, 2] : vector<4x3x8xf32> -> vector<3x4x8xf32>
    %66 = vector.shape_cast %65 : vector<3x4x8xf32> to vector<3x32xf32>
    %67 = arith.truncf %66 : vector<3x32xf32> to vector<3x32xbf16>
    %c0_41 = arith.constant 0 : index
    %c0_42 = arith.constant 0 : index
    %68 = vector.load %arg14[%c0_41, %c0_42] : memref<32x32xbf16, #tpu.memory_space<vmem>>, vector<32x32xbf16>
    %cst_43 = arith.constant dense<0.000000e+00> : vector<3x32xf32>
    %69 = tpu.matmul %67, %68, %cst_43 {dimension_numbers = #tpu.dot_dimension_numbers<[1], [0], [0], [1], [0, 0, 1, 1], [], []>} : vector<3x32xbf16>, vector<32x32xbf16>, vector<3x32xf32> -> vector<3x32xf32>
    %c0_44 = arith.constant 0 : index
    %c0_45 = arith.constant 0 : index
    %70 = vector.load %arg15[%c0_44, %c0_45] : memref<1x32xf32, #tpu.memory_space<vmem>>, vector<1x32xf32>
    %71 = vector.broadcast %70 : vector<1x32xf32> to vector<3x32xf32>
    %72 = arith.addf %69, %71 : vector<3x32xf32>
    %73 = arith.addf %13, %72 : vector<3x32xf32>
    %c0_46 = arith.constant 0 : index
    %c0_47 = arith.constant 0 : index
    %74 = vector.load %arg16[%c0_46, %c0_47] : memref<1x32xf32, #tpu.memory_space<vmem>>, vector<1x32xf32>
    %c0_48 = arith.constant 0 : index
    %c0_49 = arith.constant 0 : index
    %75 = vector.load %arg17[%c0_48, %c0_49] : memref<1x32xf32, #tpu.memory_space<vmem>>, vector<1x32xf32>
    %cst_50 = arith.constant dense<0.000000e+00> : vector<3xf32>
    %76 = vector.multi_reduction <add>, %73, %cst_50 [1] : vector<3x32xf32> to vector<3xf32>
    %77 = vector.shape_cast %76 : vector<3xf32> to vector<3x1xf32>
    %cst_51 = arith.constant 3.200000e+01 : f32
    %78 = vector.broadcast %cst_51 : f32 to vector<3x1xf32>
    %79 = arith.divf %77, %78 : vector<3x1xf32>
    %80 = vector.broadcast %79 : vector<3x1xf32> to vector<3x32xf32>
    %81 = arith.subf %73, %80 : vector<3x32xf32>
    %82 = arith.mulf %81, %81 : vector<3x32xf32>
    %cst_52 = arith.constant dense<0.000000e+00> : vector<3xf32>
    %83 = vector.multi_reduction <add>, %82, %cst_52 [1] : vector<3x32xf32> to vector<3xf32>
    %84 = vector.shape_cast %83 : vector<3xf32> to vector<3x1xf32>
    %cst_53 = arith.constant 3.200000e+01 : f32
    %85 = vector.broadcast %cst_53 : f32 to vector<3x1xf32>
    %86 = arith.divf %84, %85 : vector<3x1xf32>
    %87 = vector.broadcast %79 : vector<3x1xf32> to vector<3x32xf32>
    %88 = arith.subf %73, %87 : vector<3x32xf32>
    %cst_54 = arith.constant 9.99999974E-6 : f32
    %89 = vector.broadcast %cst_54 : f32 to vector<3x1xf32>
    %90 = arith.addf %86, %89 : vector<3x1xf32>
    %91 = math.rsqrt %90 : vector<3x1xf32>
    %92 = vector.broadcast %91 : vector<3x1xf32> to vector<3x32xf32>
    %93 = arith.mulf %88, %92 : vector<3x32xf32>
    %94 = vector.broadcast %74 : vector<1x32xf32> to vector<3x32xf32>
    %95 = arith.mulf %93, %94 : vector<3x32xf32>
    %96 = vector.broadcast %75 : vector<1x32xf32> to vector<3x32xf32>
    %97 = arith.addf %95, %96 : vector<3x32xf32>
    %98 = arith.truncf %97 : vector<3x32xf32> to vector<3x32xbf16>
    %c0_55 = arith.constant 0 : index
    %c0_56 = arith.constant 0 : index
    %99 = vector.load %arg18[%c0_55, %c0_56] : memref<32x64xbf16, #tpu.memory_space<vmem>>, vector<32x64xbf16>
    %cst_57 = arith.constant dense<0.000000e+00> : vector<3x64xf32>
    %100 = tpu.matmul %98, %99, %cst_57 {dimension_numbers = #tpu.dot_dimension_numbers<[1], [0], [0], [1], [0, 0, 1, 1], [], []>} : vector<3x32xbf16>, vector<32x64xbf16>, vector<3x64xf32> -> vector<3x64xf32>
    %c0_58 = arith.constant 0 : index
    %c0_59 = arith.constant 0 : index
    %101 = vector.load %arg19[%c0_58, %c0_59] : memref<1x64xf32, #tpu.memory_space<vmem>>, vector<1x64xf32>
    %102 = vector.broadcast %101 : vector<1x64xf32> to vector<3x64xf32>
    %103 = arith.addf %100, %102 : vector<3x64xf32>
    %cst_60 = arith.constant 0.000000e+00 : f32
    %104 = vector.broadcast %cst_60 : f32 to vector<3x64xf32>
    %105 = arith.maximumf %103, %104 : vector<3x64xf32>
    %106 = arith.truncf %105 : vector<3x64xf32> to vector<3x64xbf16>
    %c0_61 = arith.constant 0 : index
    %c0_62 = arith.constant 0 : index
    %107 = vector.load %arg20[%c0_61, %c0_62] : memref<64x32xbf16, #tpu.memory_space<vmem>>, vector<64x32xbf16>
    %cst_63 = arith.constant dense<0.000000e+00> : vector<3x32xf32>
    %108 = tpu.matmul %106, %107, %cst_63 {dimension_numbers = #tpu.dot_dimension_numbers<[1], [0], [0], [1], [0, 0, 1, 1], [], []>} : vector<3x64xbf16>, vector<64x32xbf16>, vector<3x32xf32> -> vector<3x32xf32>
    %c0_64 = arith.constant 0 : index
    %c0_65 = arith.constant 0 : index
    %109 = vector.load %arg21[%c0_64, %c0_65] : memref<1x32xf32, #tpu.memory_space<vmem>>, vector<1x32xf32>
    %110 = vector.broadcast %109 : vector<1x32xf32> to vector<3x32xf32>
    %111 = arith.addf %108, %110 : vector<3x32xf32>
    %112 = arith.addf %97, %111 : vector<3x32xf32>
    %c0_66 = arith.constant 0 : index
    %c0_67 = arith.constant 0 : index
    %113 = vector.load %arg22[%c0_66, %c0_67] : memref<1x32xf32, #tpu.memory_space<vmem>>, vector<1x32xf32>
    %c0_68 = arith.constant 0 : index
    %c0_69 = arith.constant 0 : index
    %114 = vector.load %arg23[%c0_68, %c0_69] : memref<1x32xf32, #tpu.memory_space<vmem>>, vector<1x32xf32>
    %cst_70 = arith.constant dense<0.000000e+00> : vector<3xf32>
    %115 = vector.multi_reduction <add>, %112, %cst_70 [1] : vector<3x32xf32> to vector<3xf32>
    %116 = vector.shape_cast %115 : vector<3xf32> to vector<3x1xf32>
    %cst_71 = arith.constant 3.200000e+01 : f32
    %117 = vector.broadcast %cst_71 : f32 to vector<3x1xf32>
    %118 = arith.divf %116, %117 : vector<3x1xf32>
    %119 = vector.broadcast %118 : vector<3x1xf32> to vector<3x32xf32>
    %120 = arith.subf %112, %119 : vector<3x32xf32>
    %121 = arith.mulf %120, %120 : vector<3x32xf32>
    %cst_72 = arith.constant dense<0.000000e+00> : vector<3xf32>
    %122 = vector.multi_reduction <add>, %121, %cst_72 [1] : vector<3x32xf32> to vector<3xf32>
    %123 = vector.shape_cast %122 : vector<3xf32> to vector<3x1xf32>
    %cst_73 = arith.constant 3.200000e+01 : f32
    %124 = vector.broadcast %cst_73 : f32 to vector<3x1xf32>
    %125 = arith.divf %123, %124 : vector<3x1xf32>
    %126 = vector.broadcast %118 : vector<3x1xf32> to vector<3x32xf32>
    %127 = arith.subf %112, %126 : vector<3x32xf32>
    %cst_74 = arith.constant 9.99999974E-6 : f32
    %128 = vector.broadcast %cst_74 : f32 to vector<3x1xf32>
    %129 = arith.addf %125, %128 : vector<3x1xf32>
    %130 = math.rsqrt %129 : vector<3x1xf32>
    %131 = vector.broadcast %130 : vector<3x1xf32> to vector<3x32xf32>
    %132 = arith.mulf %127, %131 : vector<3x32xf32>
    %133 = vector.broadcast %113 : vector<1x32xf32> to vector<3x32xf32>
    %134 = arith.mulf %132, %133 : vector<3x32xf32>
    %135 = vector.broadcast %114 : vector<1x32xf32> to vector<3x32xf32>
    %136 = arith.addf %134, %135 : vector<3x32xf32>
    %c0_75 = arith.constant 0 : index
    %c0_76 = arith.constant 0 : index
    %c0_77 = arith.constant 0 : index
    %137 = vector.load %arg41[%c0_75, %c0_76, %c0_77] : memref<1x3x8xf32, #tpu.memory_space<vmem>>, vector<1x3x8xf32>
    %138 = vector.shape_cast %137 : vector<1x3x8xf32> to vector<3x8xf32>
    %139 = vector.shape_cast %62 : vector<3x8xf32> to vector<1x3x8xf32>
    tpu.vector_store %arg41[%c0_75, %c0_76, %c0_77], %139 {strides = array<i32>} : memref<1x3x8xf32, #tpu.memory_space<vmem>>, vector<1x3x8xf32>,
    %c0_78 = arith.constant 0 : index
    %c0_79 = arith.constant 0 : index
    %140 = vector.load %arg7[%c0_78, %c0_79] : memref<1x32xf32, #tpu.memory_space<vmem>>, vector<1x32xf32>
    %141 = vector.broadcast %140 : vector<1x32xf32> to vector<3x32xf32>
    %142 = arith.addf %136, %141 : vector<3x32xf32>
    %143 = tpu.iota {dimensions = array<i32: 0>} : vector<3x12xi32>
    %144 = tpu.iota {dimensions = array<i32: 1>} : vector<3x12xi32>
    %c4_i32 = arith.constant 4 : i32
    %145 = vector.broadcast %c4_i32 : i32 to vector<3x12xi32>
    %146 = arith.muli %143, %145 : vector<3x12xi32>
    %147 = arith.cmpi sge, %144, %146 : vector<3x12xi32>
    %c1_i32 = arith.constant 1 : i32
    %148 = vector.broadcast %c1_i32 : i32 to vector<3x12xi32>
    %149 = arith.addi %143, %148 : vector<3x12xi32>
    %c4_i32_80 = arith.constant 4 : i32
    %150 = vector.broadcast %c4_i32_80 : i32 to vector<3x12xi32>
    %151 = arith.muli %149, %150 : vector<3x12xi32>
    %152 = arith.cmpi slt, %144, %151 : vector<3x12xi32>
    %153 = arith.andi %147, %152 : vector<3x12xi1>
    %cst_81 = arith.constant 0.000000e+00 : f32
    %cst_82 = arith.constant -1.000000e+09 : f32
    %154 = vector.broadcast %cst_81 : f32 to vector<3x12xf32>
    %155 = vector.broadcast %cst_82 : f32 to vector<3x12xf32>
    %156 = arith.select %153, %154, %155 : vector<3x12xi1>, vector<3x12xf32>
    %157 = arith.truncf %142 : vector<3x32xf32> to vector<3x32xbf16>
    %c0_83 = arith.constant 0 : index
    %c0_84 = arith.constant 0 : index
    %158 = vector.load %arg24[%c0_83, %c0_84] : memref<32x32xbf16, #tpu.memory_space<vmem>>, vector<32x32xbf16>
    %cst_85 = arith.constant dense<0.000000e+00> : vector<3x32xf32>
    %159 = tpu.matmul %157, %158, %cst_85 {dimension_numbers = #tpu.dot_dimension_numbers<[1], [0], [0], [1], [0, 0, 1, 1], [], []>} : vector<3x32xbf16>, vector<32x32xbf16>, vector<3x32xf32> -> vector<3x32xf32>
    %c0_86 = arith.constant 0 : index
    %c0_87 = arith.constant 0 : index
    %160 = vector.load %arg27[%c0_86, %c0_87] : memref<1x32xf32, #tpu.memory_space<vmem>>, vector<1x32xf32>
    %161 = vector.broadcast %160 : vector<1x32xf32> to vector<3x32xf32>
    %162 = arith.addf %159, %161 : vector<3x32xf32>
    %cst_88 = arith.constant 0.353553385 : f32
    %163 = vector.broadcast %cst_88 : f32 to vector<3x32xf32>
    %164 = arith.mulf %162, %163 : vector<3x32xf32>
    %c0_89 = arith.constant 0 : index
    %c0_90 = arith.constant 0 : index
    %165 = vector.load %arg25[%c0_89, %c0_90] : memref<32x32xbf16, #tpu.memory_space<vmem>>, vector<32x32xbf16>
    %cst_91 = arith.constant dense<0.000000e+00> : vector<12x32xf32>
    %166 = tpu.matmul %7, %165, %cst_91 {dimension_numbers = #tpu.dot_dimension_numbers<[1], [0], [0], [1], [0, 0, 1, 1], [], []>} : vector<12x32xbf16>, vector<32x32xbf16>, vector<12x32xf32> -> vector<12x32xf32>
    %c0_92 = arith.constant 0 : index
    %c0_93 = arith.constant 0 : index
    %167 = vector.load %arg28[%c0_92, %c0_93] : memref<1x32xf32, #tpu.memory_space<vmem>>, vector<1x32xf32>
    %168 = vector.broadcast %167 : vector<1x32xf32> to vector<12x32xf32>
    %169 = arith.addf %166, %168 : vector<12x32xf32>
    %c0_94 = arith.constant 0 : index
    %c0_95 = arith.constant 0 : index
    %170 = vector.load %arg26[%c0_94, %c0_95] : memref<32x32xbf16, #tpu.memory_space<vmem>>, vector<32x32xbf16>
    %cst_96 = arith.constant dense<0.000000e+00> : vector<12x32xf32>
    %171 = tpu.matmul %7, %170, %cst_96 {dimension_numbers = #tpu.dot_dimension_numbers<[1], [0], [0], [1], [0, 0, 1, 1], [], []>} : vector<12x32xbf16>, vector<32x32xbf16>, vector<12x32xf32> -> vector<12x32xf32>
    %c0_97 = arith.constant 0 : index
    %c0_98 = arith.constant 0 : index
    %172 = vector.load %arg29[%c0_97, %c0_98] : memref<1x32xf32, #tpu.memory_space<vmem>>, vector<1x32xf32>
    %173 = vector.broadcast %172 : vector<1x32xf32> to vector<12x32xf32>
    %174 = arith.addf %171, %173 : vector<12x32xf32>
    %175 = arith.truncf %164 : vector<3x32xf32> to vector<3x32xbf16>
    %176 = vector.shape_cast %175 : vector<3x32xbf16> to vector<3x4x8xbf16>
    %177 = tpu.transpose %176, [1, 0, 2] : vector<3x4x8xbf16> -> vector<4x3x8xbf16>
    %178 = arith.truncf %169 : vector<12x32xf32> to vector<12x32xbf16>
    %179 = vector.shape_cast %178 : vector<12x32xbf16> to vector<12x4x8xbf16>
    %180 = tpu.transpose %179, [1, 0, 2] : vector<12x4x8xbf16> -> vector<4x12x8xbf16>
    %181 = arith.truncf %174 : vector<12x32xf32> to vector<12x32xbf16>
    %182 = vector.shape_cast %181 : vector<12x32xbf16> to vector<12x4x8xbf16>
    %183 = tpu.transpose %182, [1, 0, 2] : vector<12x4x8xbf16> -> vector<4x12x8xbf16>
    "tpu.trace_start"() <{level = 10 : i32, message = "hqd,hkd->hqk"}> : () -> ()
    %cst_99 = arith.constant dense<0.000000e+00> : vector<4x3x12xf32>
    %184 = tpu.matmul %177, %180, %cst_99 {dimension_numbers = #tpu.dot_dimension_numbers<[2], [2], [1], [1], [0, 0, 0, 1, 1, 1], [0], [0]>} : vector<4x3x8xbf16>, vector<4x12x8xbf16>, vector<4x3x12xf32> -> vector<4x3x12xf32>
    %cst_100 = arith.constant 0.000000e+00 : f32
    "tpu.trace_stop"() : () -> ()
    %185 = vector.broadcast %cst_100 : f32 to vector<1x12xf32>
    %186 = arith.cmpf one, %9, %185 : vector<1x12xf32>
    %cst_101 = arith.constant -1.000000e+09 : f32
    %cst_102 = arith.constant 0.000000e+00 : f32
    %187 = vector.broadcast %cst_101 : f32 to vector<1x12xf32>
    %188 = vector.broadcast %cst_102 : f32 to vector<1x12xf32>
    %189 = arith.select %186, %187, %188 : vector<1x12xi1>, vector<1x12xf32>
    %190 = vector.broadcast %189 : vector<1x12xf32> to vector<3x12xf32>
    %191 = arith.addf %190, %156 : vector<3x12xf32>
    %192 = vector.shape_cast %191 : vector<3x12xf32> to vector<1x3x12xf32>
    %193 = vector.broadcast %192 : vector<1x3x12xf32> to vector<4x3x12xf32>
    %194 = arith.addf %184, %193 : vector<4x3x12xf32>
    %cst_103 = arith.constant dense<0xFF800000> : vector<4x3xf32>
    %195 = vector.multi_reduction <maximumf>, %194, %cst_103 [2] : vector<4x3x12xf32> to vector<4x3xf32>
    %196 = vector.shape_cast %195 : vector<4x3xf32> to vector<4x3x1xf32>
    %197 = vector.broadcast %196 : vector<4x3x1xf32> to vector<4x3x12xf32>
    %198 = arith.subf %194, %197 : vector<4x3x12xf32>
    %199 = math.exp %198 : vector<4x3x12xf32>
    %cst_104 = arith.constant dense<0.000000e+00> : vector<4x3xf32>
    %200 = vector.multi_reduction <add>, %199, %cst_104 [2] : vector<4x3x12xf32> to vector<4x3xf32>
    %201 = vector.shape_cast %200 : vector<4x3xf32> to vector<4x3x1xf32>
    %202 = tpu.reciprocal %201 {approx = true} : vector<4x3x1xf32> -> vector<4x3x1xf32>
    %203 = vector.broadcast %202 : vector<4x3x1xf32> to vector<4x3x12xf32>
    %204 = arith.mulf %199, %203 : vector<4x3x12xf32>
    %205 = arith.truncf %204 : vector<4x3x12xf32> to vector<4x3x12xbf16>
    "tpu.trace_start"() <{level = 10 : i32, message = "hqk,hkd->hqd"}> : () -> ()
    %cst_105 = arith.constant dense<0.000000e+00> : vector<4x3x8xf32>
    %206 = tpu.matmul %205, %183, %cst_105 {dimension_numbers = #tpu.dot_dimension_numbers<[2], [1], [1], [2], [0, 0, 0, 1, 1, 2], [0], [0]>} : vector<4x3x12xbf16>, vector<4x12x8xbf16>, vector<4x3x8xf32> -> vector<4x3x8xf32>
    "tpu.trace_stop"() : () -> ()
    %207 = tpu.transpose %206, [1, 0, 2] : vector<4x3x8xf32> -> vector<3x4x8xf32>
    %208 = vector.shape_cast %207 : vector<3x4x8xf32> to vector<3x32xf32>
    %209 = arith.truncf %208 : vector<3x32xf32> to vector<3x32xbf16>
    %c0_106 = arith.constant 0 : index
    %c0_107 = arith.constant 0 : index
    %210 = vector.load %arg30[%c0_106, %c0_107] : memref<32x32xbf16, #tpu.memory_space<vmem>>, vector<32x32xbf16>
    %cst_108 = arith.constant dense<0.000000e+00> : vector<3x32xf32>
    %211 = tpu.matmul %209, %210, %cst_108 {dimension_numbers = #tpu.dot_dimension_numbers<[1], [0], [0], [1], [0, 0, 1, 1], [], []>} : vector<3x32xbf16>, vector<32x32xbf16>, vector<3x32xf32> -> vector<3x32xf32>
    %c0_109 = arith.constant 0 : index
    %c0_110 = arith.constant 0 : index
    %212 = vector.load %arg31[%c0_109, %c0_110] : memref<1x32xf32, #tpu.memory_space<vmem>>, vector<1x32xf32>
    %213 = vector.broadcast %212 : vector<1x32xf32> to vector<3x32xf32>
    %214 = arith.addf %211, %213 : vector<3x32xf32>
    %215 = arith.addf %142, %214 : vector<3x32xf32>
    %c0_111 = arith.constant 0 : index
    %c0_112 = arith.constant 0 : index
    %216 = vector.load %arg32[%c0_111, %c0_112] : memref<1x32xf32, #tpu.memory_space<vmem>>, vector<1x32xf32>
    %c0_113 = arith.constant 0 : index
    %c0_114 = arith.constant 0 : index
    %217 = vector.load %arg33[%c0_113, %c0_114] : memref<1x32xf32, #tpu.memory_space<vmem>>, vector<1x32xf32>
    %cst_115 = arith.constant dense<0.000000e+00> : vector<3xf32>
    %218 = vector.multi_reduction <add>, %215, %cst_115 [1] : vector<3x32xf32> to vector<3xf32>
    %219 = vector.shape_cast %218 : vector<3xf32> to vector<3x1xf32>
    %cst_116 = arith.constant 3.200000e+01 : f32
    %220 = vector.broadcast %cst_116 : f32 to vector<3x1xf32>
    %221 = arith.divf %219, %220 : vector<3x1xf32>
    %222 = vector.broadcast %221 : vector<3x1xf32> to vector<3x32xf32>
    %223 = arith.subf %215, %222 : vector<3x32xf32>
    %224 = arith.mulf %223, %223 : vector<3x32xf32>
    %cst_117 = arith.constant dense<0.000000e+00> : vector<3xf32>
    %225 = vector.multi_reduction <add>, %224, %cst_117 [1] : vector<3x32xf32> to vector<3xf32>
    %226 = vector.shape_cast %225 : vector<3xf32> to vector<3x1xf32>
    %cst_118 = arith.constant 3.200000e+01 : f32
    %227 = vector.broadcast %cst_118 : f32 to vector<3x1xf32>
    %228 = arith.divf %226, %227 : vector<3x1xf32>
    %229 = vector.broadcast %221 : vector<3x1xf32> to vector<3x32xf32>
    %230 = arith.subf %215, %229 : vector<3x32xf32>
    %cst_119 = arith.constant 9.99999974E-6 : f32
    %231 = vector.broadcast %cst_119 : f32 to vector<3x1xf32>
    %232 = arith.addf %228, %231 : vector<3x1xf32>
    %233 = math.rsqrt %232 : vector<3x1xf32>
    %234 = vector.broadcast %233 : vector<3x1xf32> to vector<3x32xf32>
    %235 = arith.mulf %230, %234 : vector<3x32xf32>
    %236 = vector.broadcast %216 : vector<1x32xf32> to vector<3x32xf32>
    %237 = arith.mulf %235, %236 : vector<3x32xf32>
    %238 = vector.broadcast %217 : vector<1x32xf32> to vector<3x32xf32>
    %239 = arith.addf %237, %238 : vector<3x32xf32>
    %240 = arith.truncf %239 : vector<3x32xf32> to vector<3x32xbf16>
    %c0_120 = arith.constant 0 : index
    %c0_121 = arith.constant 0 : index
    %241 = vector.load %arg34[%c0_120, %c0_121] : memref<32x64xbf16, #tpu.memory_space<vmem>>, vector<32x64xbf16>
    %cst_122 = arith.constant dense<0.000000e+00> : vector<3x64xf32>
    %242 = tpu.matmul %240, %241, %cst_122 {dimension_numbers = #tpu.dot_dimension_numbers<[1], [0], [0], [1], [0, 0, 1, 1], [], []>} : vector<3x32xbf16>, vector<32x64xbf16>, vector<3x64xf32> -> vector<3x64xf32>
    %c0_123 = arith.constant 0 : index
    %c0_124 = arith.constant 0 : index
    %243 = vector.load %arg35[%c0_123, %c0_124] : memref<1x64xf32, #tpu.memory_space<vmem>>, vector<1x64xf32>
    %244 = vector.broadcast %243 : vector<1x64xf32> to vector<3x64xf32>
    %245 = arith.addf %242, %244 : vector<3x64xf32>
    %cst_125 = arith.constant 0.000000e+00 : f32
    %246 = vector.broadcast %cst_125 : f32 to vector<3x64xf32>
    %247 = arith.maximumf %245, %246 : vector<3x64xf32>
    %248 = arith.truncf %247 : vector<3x64xf32> to vector<3x64xbf16>
    %c0_126 = arith.constant 0 : index
    %c0_127 = arith.constant 0 : index
    %249 = vector.load %arg36[%c0_126, %c0_127] : memref<64x32xbf16, #tpu.memory_space<vmem>>, vector<64x32xbf16>
    %cst_128 = arith.constant dense<0.000000e+00> : vector<3x32xf32>
    %250 = tpu.matmul %248, %249, %cst_128 {dimension_numbers = #tpu.dot_dimension_numbers<[1], [0], [0], [1], [0, 0, 1, 1], [], []>} : vector<3x64xbf16>, vector<64x32xbf16>, vector<3x32xf32> -> vector<3x32xf32>
    %c0_129 = arith.constant 0 : index
    %c0_130 = arith.constant 0 : index
    %251 = vector.load %arg37[%c0_129, %c0_130] : memref<1x32xf32, #tpu.memory_space<vmem>>, vector<1x32xf32>
    %252 = vector.broadcast %251 : vector<1x32xf32> to vector<3x32xf32>
    %253 = arith.addf %250, %252 : vector<3x32xf32>
    %254 = arith.addf %239, %253 : vector<3x32xf32>
    %c0_131 = arith.constant 0 : index
    %c0_132 = arith.constant 0 : index
    %255 = vector.load %arg38[%c0_131, %c0_132] : memref<1x32xf32, #tpu.memory_space<vmem>>, vector<1x32xf32>
    %c0_133 = arith.constant 0 : index
    %c0_134 = arith.constant 0 : index
    %256 = vector.load %arg39[%c0_133, %c0_134] : memref<1x32xf32, #tpu.memory_space<vmem>>, vector<1x32xf32>
    %cst_135 = arith.constant dense<0.000000e+00> : vector<3xf32>
    %257 = vector.multi_reduction <add>, %254, %cst_135 [1] : vector<3x32xf32> to vector<3xf32>
    %258 = vector.shape_cast %257 : vector<3xf32> to vector<3x1xf32>
    %cst_136 = arith.constant 3.200000e+01 : f32
    %259 = vector.broadcast %cst_136 : f32 to vector<3x1xf32>
    %260 = arith.divf %258, %259 : vector<3x1xf32>
    %261 = vector.broadcast %260 : vector<3x1xf32> to vector<3x32xf32>
    %262 = arith.subf %254, %261 : vector<3x32xf32>
    %263 = arith.mulf %262, %262 : vector<3x32xf32>
    %cst_137 = arith.constant dense<0.000000e+00> : vector<3xf32>
    %264 = vector.multi_reduction <add>, %263, %cst_137 [1] : vector<3x32xf32> to vector<3xf32>
    %265 = vector.shape_cast %264 : vector<3xf32> to vector<3x1xf32>
    %cst_138 = arith.constant 3.200000e+01 : f32
    %266 = vector.broadcast %cst_138 : f32 to vector<3x1xf32>
    %267 = arith.divf %265, %266 : vector<3x1xf32>
    %268 = vector.broadcast %260 : vector<3x1xf32> to vector<3x32xf32>
    %269 = arith.subf %254, %268 : vector<3x32xf32>
    %cst_139 = arith.constant 9.99999974E-6 : f32
    %270 = vector.broadcast %cst_139 : f32 to vector<3x1xf32>
    %271 = arith.addf %267, %270 : vector<3x1xf32>
    %272 = math.rsqrt %271 : vector<3x1xf32>
    %273 = vector.broadcast %272 : vector<3x1xf32> to vector<3x32xf32>
    %274 = arith.mulf %269, %273 : vector<3x32xf32>
    %275 = vector.broadcast %255 : vector<1x32xf32> to vector<3x32xf32>
    %276 = arith.mulf %274, %275 : vector<3x32xf32>
    %277 = vector.broadcast %256 : vector<1x32xf32> to vector<3x32xf32>
    %278 = arith.addf %276, %277 : vector<3x32xf32>
    %c0_140 = arith.constant 0 : index
    %c0_141 = arith.constant 0 : index
    %c0_142 = arith.constant 0 : index
    %279 = vector.load %arg40[%c0_140, %c0_141, %c0_142] : memref<1x3x32xf32, #tpu.memory_space<vmem>>, vector<1x3x32xf32>
    %280 = vector.shape_cast %279 : vector<1x3x32xf32> to vector<3x32xf32>
    %281 = vector.shape_cast %278 : vector<3x32xf32> to vector<1x3x32xf32>
    tpu.vector_store %arg40[%c0_140, %c0_141, %c0_142], %281 {strides = array<i32>} : memref<1x3x32xf32, #tpu.memory_space<vmem>>, vector<1x3x32xf32>,
    return
  }
  func.func @transform_0(%arg0: i32) -> (i32, i32, i32) {
    %c0_i32 = arith.constant 0 : i32
    %c0_i32_0 = arith.constant 0 : i32
    %c0_i32_1 = arith.constant 0 : i32
    return %arg0, %c0_i32, %c0_i32_0 : i32, i32, i32
  }
  func.func @transform_1(%arg0: i32) -> (i32, i32, i32) {
    %c0_i32 = arith.constant 0 : i32
    %c0_i32_0 = arith.constant 0 : i32
    %c0_i32_1 = arith.constant 0 : i32
    return %arg0, %c0_i32, %c0_i32_0 : i32, i32, i32
  }
  func.func @transform_2(%arg0: i32) -> (i32, i32, i32) {
    %c0_i32 = arith.constant 0 : i32
    %c0_i32_0 = arith.constant 0 : i32
    %c0_i32_1 = arith.constant 0 : i32
    return %arg0, %c0_i32, %c0_i32_0 : i32, i32, i32
  }
  func.func @transform_3(%arg0: i32) -> (i32, i32, i32) {
    %c0_i32 = arith.constant 0 : i32
    %c0_i32_0 = arith.constant 0 : i32
    %c0_i32_1 = arith.constant 0 : i32
    return %arg0, %c0_i32, %c0_i32_0 : i32, i32, i32
  }
  func.func @transform_4(%arg0: i32) -> (i32, i32, i32) {
    %c0_i32 = arith.constant 0 : i32
    %c0_i32_0 = arith.constant 0 : i32
    %c0_i32_1 = arith.constant 0 : i32
    return %arg0, %c0_i32, %c0_i32_0 : i32, i32, i32
  }
  func.func @transform_5(%arg0: i32) -> (i32, i32) {
    %c0_i32 = arith.constant 0 : i32
    %c0_i32_0 = arith.constant 0 : i32
    %c0_i32_1 = arith.constant 0 : i32
    return %c0_i32, %c0_i32_0 : i32, i32
  }
  func.func @transform_6(%arg0: i32) -> (i32, i32) {
    %c0_i32 = arith.constant 0 : i32
    %c0_i32_0 = arith.constant 0 : i32
    %c0_i32_1 = arith.constant 0 : i32
    return %c0_i32, %c0_i32_0 : i32, i32
  }
  func.func @transform_7(%arg0: i32) -> (i32, i32) {
    %c0_i32 = arith.constant 0 : i32
    %c0_i32_0 = arith.constant 0 : i32
    %c0_i32_1 = arith.constant 0 : i32
    return %c0_i32, %c0_i32_0 : i32, i32
  }
  func.func @transform_8(%arg0: i32) -> (i32, i32) {
    %c0_i32 = arith.constant 0 : i32
    %c0_i32_0 = arith.constant 0 : i32
    %c0_i32_1 = arith.constant 0 : i32
    return %c0_i32, %c0_i32_0 : i32, i32
  }
  func.func @transform_9(%arg0: i32) -> (i32, i32) {
    %c0_i32 = arith.constant 0 : i32
    %c0_i32_0 = arith.constant 0 : i32
    %c0_i32_1 = arith.constant 0 : i32
    return %c0_i32, %c0_i32_0 : i32, i32
  }
  func.func @transform_10(%arg0: i32) -> (i32, i32) {
    %c0_i32 = arith.constant 0 : i32
    %c0_i32_0 = arith.constant 0 : i32
    %c0_i32_1 = arith.constant 0 : i32
    return %c0_i32, %c0_i32_0 : i32, i32
  }
  func.func @transform_11(%arg0: i32) -> (i32, i32) {
    %c0_i32 = arith.constant 0 : i32
    %c0_i32_0 = arith.constant 0 : i32
    %c0_i32_1 = arith.constant 0 : i32
    return %c0_i32, %c0_i32_0 : i32, i32
  }
  func.func @transform_12(%arg0: i32) -> (i32, i32) {
    %c0_i32 = arith.constant 0 : i32
    %c0_i32_0 = arith.constant 0 : i32
    %c0_i32_1 = arith.constant 0 : i32
    return %c0_i32, %c0_i32_0 : i32, i32
  }
  func.func @transform_13(%arg0: i32) -> (i32, i32) {
    %c0_i32 = arith.constant 0 : i32
    %c0_i32_0 = arith.constant 0 : i32
    %c0_i32_1 = arith.constant 0 : i32
    return %c0_i32, %c0_i32_0 : i32, i32
  }
  func.func @transform_14(%arg0: i32) -> (i32, i32) {
    %c0_i32 = arith.constant 0 : i32
    %c0_i32_0 = arith.constant 0 : i32
    %c0_i32_1 = arith.constant 0 : i32
    return %c0_i32, %c0_i32_0 : i32, i32
  }
  func.func @transform_15(%arg0: i32) -> (i32, i32) {
    %c0_i32 = arith.constant 0 : i32
    %c0_i32_0 = arith.constant 0 : i32
    %c0_i32_1 = arith.constant 0 : i32
    return %c0_i32, %c0_i32_0 : i32, i32
  }
  func.func @transform_16(%arg0: i32) -> (i32, i32) {
    %c0_i32 = arith.constant 0 : i32
    %c0_i32_0 = arith.constant 0 : i32
    %c0_i32_1 = arith.constant 0 : i32
    return %c0_i32, %c0_i32_0 : i32, i32
  }
  func.func @transform_17(%arg0: i32) -> (i32, i32) {
    %c0_i32 = arith.constant 0 : i32
    %c0_i32_0 = arith.constant 0 : i32
    %c0_i32_1 = arith.constant 0 : i32
    return %c0_i32, %c0_i32_0 : i32, i32
  }
  func.func @transform_18(%arg0: i32) -> (i32, i32) {
    %c0_i32 = arith.constant 0 : i32
    %c0_i32_0 = arith.constant 0 : i32
    %c0_i32_1 = arith.constant 0 : i32
    return %c0_i32, %c0_i32_0 : i32, i32
  }
  func.func @transform_19(%arg0: i32) -> (i32, i32) {
    %c0_i32 = arith.constant 0 : i32
    %c0_i32_0 = arith.constant 0 : i32
    %c0_i32_1 = arith.constant 0 : i32
    return %c0_i32, %c0_i32_0 : i32, i32
  }
  func.func @transform_20(%arg0: i32) -> (i32, i32) {
    %c0_i32 = arith.constant 0 : i32
    %c0_i32_0 = arith.constant 0 : i32
    %c0_i32_1 = arith.constant 0 : i32
    return %c0_i32, %c0_i32_0 : i32, i32
  }
  func.func @transform_21(%arg0: i32) -> (i32, i32) {
    %c0_i32 = arith.constant 0 : i32
    %c0_i32_0 = arith.constant 0 : i32
    %c0_i32_1 = arith.constant 0 : i32
    return %c0_i32, %c0_i32_0 : i32, i32
  }
  func.func @transform_22(%arg0: i32) -> (i32, i32) {
    %c0_i32 = arith.constant 0 : i32
    %c0_i32_0 = arith.constant 0 : i32
    %c0_i32_1 = arith.constant 0 : i32
    return %c0_i32, %c0_i32_0 : i32, i32
  }
  func.func @transform_23(%arg0: i32) -> (i32, i32) {
    %c0_i32 = arith.constant 0 : i32
    %c0_i32_0 = arith.constant 0 : i32
    %c0_i32_1 = arith.constant 0 : i32
    return %c0_i32, %c0_i32_0 : i32, i32
  }
  func.func @transform_24(%arg0: i32) -> (i32, i32) {
    %c0_i32 = arith.constant 0 : i32
    %c0_i32_0 = arith.constant 0 : i32
    %c0_i32_1 = arith.constant 0 : i32
    return %c0_i32, %c0_i32_0 : i32, i32
  }
  func.func @transform_25(%arg0: i32) -> (i32, i32) {
    %c0_i32 = arith.constant 0 : i32
    %c0_i32_0 = arith.constant 0 : i32
    %c0_i32_1 = arith.constant 0 : i32
    return %c0_i32, %c0_i32_0 : i32, i32
  }
  func.func @transform_26(%arg0: i32) -> (i32, i32) {
    %c0_i32 = arith.constant 0 : i32
    %c0_i32_0 = arith.constant 0 : i32
    %c0_i32_1 = arith.constant 0 : i32
    return %c0_i32, %c0_i32_0 : i32, i32
  }
  func.func @transform_27(%arg0: i32) -> (i32, i32) {
    %c0_i32 = arith.constant 0 : i32
    %c0_i32_0 = arith.constant 0 : i32
    %c0_i32_1 = arith.constant 0 : i32
    return %c0_i32, %c0_i32_0 : i32, i32
  }
  func.func @transform_28(%arg0: i32) -> (i32, i32) {
    %c0_i32 = arith.constant 0 : i32
    %c0_i32_0 = arith.constant 0 : i32
    %c0_i32_1 = arith.constant 0 : i32
    return %c0_i32, %c0_i32_0 : i32, i32
  }
  func.func @transform_29(%arg0: i32) -> (i32, i32) {
    %c0_i32 = arith.constant 0 : i32
    %c0_i32_0 = arith.constant 0 : i32
    %c0_i32_1 = arith.constant 0 : i32
    return %c0_i32, %c0_i32_0 : i32, i32
  }
  func.func @transform_30(%arg0: i32) -> (i32, i32) {
    %c0_i32 = arith.constant 0 : i32
    %c0_i32_0 = arith.constant 0 : i32
    %c0_i32_1 = arith.constant 0 : i32
    return %c0_i32, %c0_i32_0 : i32, i32
  }
  func.func @transform_31(%arg0: i32) -> (i32, i32) {
    %c0_i32 = arith.constant 0 : i32
    %c0_i32_0 = arith.constant 0 : i32
    %c0_i32_1 = arith.constant 0 : i32
    return %c0_i32, %c0_i32_0 : i32, i32
  }
  func.func @transform_32(%arg0: i32) -> (i32, i32) {
    %c0_i32 = arith.constant 0 : i32
    %c0_i32_0 = arith.constant 0 : i32
    %c0_i32_1 = arith.constant 0 : i32
    return %c0_i32, %c0_i32_0 : i32, i32
  }
  func.func @transform_33(%arg0: i32) -> (i32, i32) {
    %c0_i32 = arith.constant 0 : i32
    %c0_i32_0 = arith.constant 0 : i32
    %c0_i32_1 = arith.constant 0 : i32
    return %c0_i32, %c0_i32_0 : i32, i32
  }
  func.func @transform_34(%arg0: i32) -> (i32, i32) {
    %c0_i32 = arith.constant 0 : i32
    %c0_i32_0 = arith.constant 0 : i32
    %c0_i32_1 = arith.constant 0 : i32
    return %c0_i32, %c0_i32_0 : i32, i32
  }
  func.func @transform_35(%arg0: i32) -> (i32, i32) {
    %c0_i32 = arith.constant 0 : i32
    %c0_i32_0 = arith.constant 0 : i32
    %c0_i32_1 = arith.constant 0 : i32
    return %c0_i32, %c0_i32_0 : i32, i32
  }
  func.func @transform_36(%arg0: i32) -> (i32, i32) {
    %c0_i32 = arith.constant 0 : i32
    %c0_i32_0 = arith.constant 0 : i32
    %c0_i32_1 = arith.constant 0 : i32
    return %c0_i32, %c0_i32_0 : i32, i32
  }
  func.func @transform_37(%arg0: i32) -> (i32, i32) {
    %c0_i32 = arith.constant 0 : i32
    %c0_i32_0 = arith.constant 0 : i32
    %c0_i32_1 = arith.constant 0 : i32
    return %c0_i32, %c0_i32_0 : i32, i32
  }
  func.func @transform_38(%arg0: i32) -> (i32, i32) {
    %c0_i32 = arith.constant 0 : i32
    %c0_i32_0 = arith.constant 0 : i32
    %c0_i32_1 = arith.constant 0 : i32
    return %c0_i32, %c0_i32_0 : i32, i32
  }
  func.func @transform_39(%arg0: i32) -> (i32, i32, i32) {
    %c0_i32 = arith.constant 0 : i32
    %c0_i32_0 = arith.constant 0 : i32
    %c0_i32_1 = arith.constant 0 : i32
    return %arg0, %c0_i32, %c0_i32_0 : i32, i32, i32
  }
  func.func @transform_40(%arg0: i32) -> (i32, i32, i32) {
    %c0_i32 = arith.constant 0 : i32
    %c0_i32_0 = arith.constant 0 : i32
    %c0_i32_1 = arith.constant 0 : i32
    return %arg0, %c0_i32, %c0_i32_0 : i32, i32, i32
  }
}

</mosaic_0001>

<llo_original>
// kernel: tpu_custom_call.1
$region0: #{tpu_custom_call.1}
  #allocation0 [shape = 'u32[]', space=smem, size = 0x4, offset = 0x4, fixed_abs, tag = 'smem constant byte address 0x4 - core index']
  #allocation1 [shape = 'u32[144,128]{1,0:T(1,128)}', space=vmem, size = 0x12000, scoped, tag = 'internal scratch']
  %s0 = inlined_call_operand.smem [shape: u32[41], index: -1, kind: input, shape index: {}]
  %s1 = sld [smem:[%s0]]
  %s2 = scalar_lea.smem %s0, 1
  %s3 = sld [smem:[%s2]]
  %s4 = scalar_lea.smem %s0, 2
  %s5 = sld [smem:[%s4]]
  %s6 = scalar_lea.smem %s0, 3
  %s7 = sld [smem:[%s6]]
  %s8 = scalar_lea.smem %s0, 4
  %s9 = sld [smem:[%s8]]
  %s10 = scalar_lea.smem %s0, 5
  %s11 = sld [smem:[%s10]]
  %s12 = scalar_lea.smem %s0, 6
  %s13 = sld [smem:[%s12]]
  %s14 = scalar_lea.smem %s0, 7
  %s15 = sld [smem:[%s14]]
  %s16 = scalar_lea.smem %s0, 8
  %s17 = sld [smem:[%s16]]
  %s18 = scalar_lea.smem %s0, 9
  %s19 = sld [smem:[%s18]]
  %s20 = scalar_lea.smem %s0, 10
  %s21 = sld [smem:[%s20]]
  %s22 = scalar_lea.smem %s0, 11
  %s23 = sld [smem:[%s22]]
  %s24 = scalar_lea.smem %s0, 12
  %s25 = sld [smem:[%s24]]
  %s26 = scalar_lea.smem %s0, 13
  %s27 = sld [smem:[%s26]]
  %s28 = scalar_lea.smem %s0, 14
  %s29 = sld [smem:[%s28]]
  %s30 = scalar_lea.smem %s0, 15
  %s31 = sld [smem:[%s30]]
  %s32 = scalar_lea.smem %s0, 16
  %s33 = sld [smem:[%s32]]
  %s34 = scalar_lea.smem %s0, 17
  %s35 = sld [smem:[%s34]]
  %s36 = scalar_lea.smem %s0, 18
  %s37 = sld [smem:[%s36]]
  %s38 = scalar_lea.smem %s0, 19
  %s39 = sld [smem:[%s38]]
  %s40 = scalar_lea.smem %s0, 20
  %s41 = sld [smem:[%s40]]
  %s42 = scalar_lea.smem %s0, 21
  %s43 = sld [smem:[%s42]]
  %s44 = scalar_lea.smem %s0, 22
  %s45 = sld [smem:[%s44]]
  %s46 = scalar_lea.smem %s0, 23
  %s47 = sld [smem:[%s46]]
  %s48 = scalar_lea.smem %s0, 24
  %s49 = sld [smem:[%s48]]
  %s50 = scalar_lea.smem %s0, 25
  %s51 = sld [smem:[%s50]]
  %s52 = scalar_lea.smem %s0, 26
  %s53 = sld [smem:[%s52]]
  %s54 = scalar_lea.smem %s0, 27
  %s55 = sld [smem:[%s54]]
  %s56 = scalar_lea.smem %s0, 28
  %s57 = sld [smem:[%s56]]
  %s58 = scalar_lea.smem %s0, 29
  %s59 = sld [smem:[%s58]]
  %s60 = scalar_lea.smem %s0, 30
  %s61 = sld [smem:[%s60]]
  %s62 = scalar_lea.smem %s0, 31
  %s63 = sld [smem:[%s62]]
  %s64 = scalar_lea.smem %s0, 32
  %s65 = sld [smem:[%s64]]
  %s66 = scalar_lea.smem %s0, 33
  %s67 = sld [smem:[%s66]]
  %s68 = scalar_lea.smem %s0, 34
  %s69 = sld [smem:[%s68]]
  %s70 = scalar_lea.smem %s0, 35
  %s71 = sld [smem:[%s70]]
  %s72 = scalar_lea.smem %s0, 36
  %s73 = sld [smem:[%s72]]
  %s74 = scalar_lea.smem %s0, 37
  %s75 = sld [smem:[%s74]]
  %s76 = scalar_lea.smem %s0, 38
  %s77 = sld [smem:[%s76]]
  %s78 = scalar_lea.smem %s0, 39
  %s79 = sld [smem:[%s78]]
  %s80 = scalar_lea.smem %s0, 40
  %s81 = sld [smem:[%s80]]
  %82 = xla_tuple %s79, %s81
  %s83 = sld [smem:[#allocation0]]
  $region229: #{tpu_custom_call.1} parent=0
    _
  %s85 = ssub.s32 1, %s83
  %s86 = scalar_select 0, %s85, %s83
  $region1: #{tpu_custom_call.1} parent=0
    #allocation2 [shape = 'u8[4096]{0}', space=vmem, size = 0x1000, scoped, tag = 'input window, operand 1']
    #allocation3 [shape = 's32[2]{0}', space=sflag, size = 0x8, scoped, tag = 'scoped memory for tpu_custom_call.1']
    #allocation4 [shape = 'u8[1024]{0}', space=vmem, size = 0x400, scoped, tag = 'input window, operand 2']
    #allocation5 [shape = 's32[2]{0}', space=sflag, size = 0x8, scoped, tag = 'scoped memory for tpu_custom_call.1']
    #allocation6 [shape = 'u8[1024]{0}', space=vmem, size = 0x400, scoped, tag = 'input window, operand 4']
    #allocation7 [shape = 'u8[512]{0}', space=vmem, size = 0x400, scoped, tag = 'input window, operand 5, single buffered']
    #allocation8 [shape = 's32[1]{0}', space=sflag, size = 0x4, scoped, tag = 'scoped memory for tpu_custom_call.1']
    #allocation9 [shape = 'u8[512]{0}', space=vmem, size = 0x400, scoped, tag = 'input window, operand 6, single buffered']
    #allocation10 [shape = 'u8[512]{0}', space=vmem, size = 0x400, scoped, tag = 'input window, operand 10, single buffered']
    #allocation11 [shape = 's32[1]{0}', space=sflag, size = 0x4, scoped, tag = 'scoped memory for tpu_custom_call.1']
    #allocation12 [shape = 'u8[512]{0}', space=vmem, size = 0x400, scoped, tag = 'input window, operand 11, single buffered']
    #allocation13 [shape = 'u8[512]{0}', space=vmem, size = 0x400, scoped, tag = 'input window, operand 12, single buffered']
    #allocation14 [shape = 's32[1]{0}', space=sflag, size = 0x4, scoped, tag = 'scoped memory for tpu_custom_call.1']
    %87 = vsyncpa [#allocation3], 0
    %s88 = scalar_lea.sflag [#allocation3], 1
    %89 = vsyncpa %s88, 0
    %90 = vsyncpa [#allocation5], 0
    %s91 = scalar_lea.sflag [#allocation5], 1
    %92 = vsyncpa %s91, 0
    %93 = vsyncpa [#allocation8], 0
    %94 = vsyncpa [#allocation11], 0
    %95 = vsyncpa [#allocation14], 0
    loop: start=0, step=1, limit=4
    $region2: #{tpu_custom_call.1} parent=1 // loop_pre_header
      _
    $region3: #{tpu_custom_call.1} parent=1 // loop_header
      %s97 = sphi 0, %s101
      %p98 = scmp.ge.s32.totalorder %s97, 4
      %s107 = sphi 0, %s109
      %s110 = sphi 0, %s107
      %s111 = sphi 0, %s110
      %s127 = sphi 0, %s111
      %s133 = sphi 0, %s135
      %s136 = sphi 0, %s133
      %s137 = sphi 0, %s136
      %s153 = sphi 0, %s137
      %s159 = sphi 0, %s161
      %s162 = sphi 0, %s159
      %s163 = sphi 0, %s162
      %s179 = sphi 0, %s163
      %s185 = sphi 0, %s187
      %s188 = sphi 0, %s185
      %s189 = sphi 0, %s188
      %s205 = sphi 0, %s189
      %s211 = sphi 0, %s213
      %s214 = sphi 0, %s211
      %s215 = sphi 0, %s214
      %s231 = sphi 0, %s215
      %s235 = sphi 0, %s235
      %s237 = sphi 0, %s235
      %s238 = sphi 0, %s237
      %s252 = sphi 0, %s238
      %s256 = sphi 0, %s256
      %s258 = sphi 0, %s256
      %s259 = sphi 0, %s258
      %s273 = sphi 0, %s259
      %s277 = sphi 0, %s277
      %s279 = sphi 0, %s277
      %s280 = sphi 0, %s279
      %s294 = sphi 0, %s280
      %s298 = sphi 0, %s298
      %s300 = sphi 0, %s298
      %s301 = sphi 0, %s300
      %s315 = sphi 0, %s301
      %s319 = sphi 0, %s319
      %s321 = sphi 0, %s319
      %s322 = sphi 0, %s321
      %s336 = sphi 0, %s322
      %s340 = sphi 0, %s340
      %s342 = sphi 0, %s340
      %s343 = sphi 0, %s342
      %s357 = sphi 0, %s343
      %s361 = sphi 0, %s361
      %s363 = sphi 0, %s361
      %s364 = sphi 0, %s363
      %s378 = sphi 0, %s364
      %s382 = sphi 0, %s382
      %s384 = sphi 0, %s382
      %s385 = sphi 0, %s384
      %s399 = sphi 0, %s385
      %s403 = sphi 0, %s403
      %s405 = sphi 0, %s403
      %s406 = sphi 0, %s405
      %s420 = sphi 0, %s406
      %s424 = sphi 0, %s424
      %s426 = sphi 0, %s424
      %s427 = sphi 0, %s426
      %s441 = sphi 0, %s427
      %s445 = sphi 0, %s445
      %s447 = sphi 0, %s445
      %s448 = sphi 0, %s447
      %s462 = sphi 0, %s448
      %s466 = sphi 0, %s466
      %s468 = sphi 0, %s466
      %s469 = sphi 0, %s468
      %s483 = sphi 0, %s469
      %s487 = sphi 0, %s487
      %s489 = sphi 0, %s487
      %s490 = sphi 0, %s489
      %s504 = sphi 0, %s490
      %s508 = sphi 0, %s508
      %s510 = sphi 0, %s508
      %s511 = sphi 0, %s510
      %s525 = sphi 0, %s511
      %s529 = sphi 0, %s529
      %s531 = sphi 0, %s529
      %s532 = sphi 0, %s531
      %s546 = sphi 0, %s532
      %s550 = sphi 0, %s550
      %s552 = sphi 0, %s550
      %s553 = sphi 0, %s552
      %s567 = sphi 0, %s553
      %s571 = sphi 0, %s571
      %s573 = sphi 0, %s571
      %s574 = sphi 0, %s573
      %s588 = sphi 0, %s574
      %s592 = sphi 0, %s592
      %s594 = sphi 0, %s592
      %s595 = sphi 0, %s594
      %s609 = sphi 0, %s595
      %s613 = sphi 0, %s613
      %s615 = sphi 0, %s613
      %s616 = sphi 0, %s615
      %s630 = sphi 0, %s616
      %s634 = sphi 0, %s634
      %s636 = sphi 0, %s634
      %s637 = sphi 0, %s636
      %s651 = sphi 0, %s637
      %s655 = sphi 0, %s655
      %s657 = sphi 0, %s655
      %s658 = sphi 0, %s657
      %s672 = sphi 0, %s658
      %s676 = sphi 0, %s676
      %s678 = sphi 0, %s676
      %s679 = sphi 0, %s678
      %s693 = sphi 0, %s679
      %s697 = sphi 0, %s697
      %s699 = sphi 0, %s697
      %s700 = sphi 0, %s699
      %s714 = sphi 0, %s700
      %s718 = sphi 0, %s718
      %s720 = sphi 0, %s718
      %s721 = sphi 0, %s720
      %s735 = sphi 0, %s721
      %s739 = sphi 0, %s739
      %s741 = sphi 0, %s739
      %s742 = sphi 0, %s741
      %s756 = sphi 0, %s742
      %s760 = sphi 0, %s760
      %s762 = sphi 0, %s760
      %s763 = sphi 0, %s762
      %s777 = sphi 0, %s763
      %s781 = sphi 0, %s781
      %s783 = sphi 0, %s781
      %s784 = sphi 0, %s783
      %s798 = sphi 0, %s784
      %s802 = sphi 0, %s802
      %s804 = sphi 0, %s802
      %s805 = sphi 0, %s804
      %s819 = sphi 0, %s805
      %s823 = sphi 0, %s823
      %s825 = sphi 0, %s823
      %s826 = sphi 0, %s825
      %s840 = sphi 0, %s826
      %s844 = sphi 0, %s844
      %s846 = sphi 0, %s844
      %s847 = sphi 0, %s846
      %s861 = sphi 0, %s847
      %s865 = sphi 0, %s865
      %s867 = sphi 0, %s865
      %s868 = sphi 0, %s867
      %s882 = sphi 0, %s868
      %s886 = sphi 0, %s886
      %s888 = sphi 0, %s886
      %s889 = sphi 0, %s888
      %s903 = sphi 0, %s889
      %s907 = sphi 0, %s907
      %s909 = sphi 0, %s907
      %s910 = sphi 0, %s909
      %s924 = sphi 0, %s910
      %s928 = sphi 0, %s928
      %s930 = sphi 0, %s928
      %s931 = sphi 0, %s930
      %s945 = sphi 0, %s931
      %s951 = sphi 0, %s953
      %s954 = sphi 0, %s951
      %s955 = sphi 0, %s954
      %s971 = sphi 0, %s955
      %s977 = sphi 0, %s979
      %s980 = sphi 0, %s977
      %s981 = sphi 0, %s980
      %s997 = sphi 0, %s981
    $region4: #{tpu_custom_call.1} parent=1 // loop_header_branch
      %100 = sbr.rel (%p98) target = $region8
    $region5: #{tpu_custom_call.1} parent=1 // loop_body
      %s102 = ssub.s32 %s97, 1
      %s103 = ssub.s32 %s97, 2
      %s104 = sadd.s32 %s97, 1
      %s105 = ssub.s32 %s97, %s104
      %p106 = scmp.eq.s32.totalorder %s105, 0
      %s108 = sadd.s32 %s107, 1
      %s109 = scalar_select %p106, %s107, %s108
      %p112 = pneg %p106
      %p113 = scmp.eq.s32.totalorder %s97, 1
      %p114 = por %p112, %p113
      %p115 = scmp.ne.s32.totalorder %s107, %s110
      %p116 = scmp.eq.s32.totalorder %s97, 0
      %p117 = por %p115, %p116
      %p118 = scmp.ne.s32.totalorder %s107, %s110
      %p119 = scmp.eq.s32.totalorder %s102, 1
      %p120 = por %p118, %p119
      %p121 = scmp.ne.s32.totalorder %s110, %s111
      %p122 = scmp.eq.s32.totalorder %s102, 0
      %p123 = por %p121, %p122
      %p124 = scmp.ne.s32.totalorder %s110, %s111
      %p125 = scmp.eq.s32.totalorder %s103, 1
      %p126 = por %p124, %p125
      %p128 = scmp.ne.s32.totalorder %s111, %s127
      %p129 = scmp.eq.s32.totalorder %s103, 0
      %p130 = por %p128, %p129
      %s131 = ssub.s32 %s97, %s104
      %p132 = scmp.eq.s32.totalorder %s131, 0
      %s134 = sadd.s32 %s133, 1
      %s135 = scalar_select %p132, %s133, %s134
      %p138 = pneg %p132
      %p139 = scmp.eq.s32.totalorder %s97, 1
      %p140 = por %p138, %p139
      %p141 = scmp.ne.s32.totalorder %s133, %s136
      %p142 = scmp.eq.s32.totalorder %s97, 0
      %p143 = por %p141, %p142
      %p144 = scmp.ne.s32.totalorder %s133, %s136
      %p145 = scmp.eq.s32.totalorder %s102, 1
      %p146 = por %p144, %p145
      %p147 = scmp.ne.s32.totalorder %s136, %s137
      %p148 = scmp.eq.s32.totalorder %s102, 0
      %p149 = por %p147, %p148
      %p150 = scmp.ne.s32.totalorder %s136, %s137
      %p151 = scmp.eq.s32.totalorder %s103, 1
      %p152 = por %p150, %p151
      %p154 = scmp.ne.s32.totalorder %s137, %s153
      %p155 = scmp.eq.s32.totalorder %s103, 0
      %p156 = por %p154, %p155
      %s157 = ssub.s32 %s97, %s104
      %p158 = scmp.eq.s32.totalorder %s157, 0
      %s160 = sadd.s32 %s159, 1
      %s161 = scalar_select %p158, %s159, %s160
      %p164 = pneg %p158
      %p165 = scmp.eq.s32.totalorder %s97, 1
      %p166 = por %p164, %p165
      %p167 = scmp.ne.s32.totalorder %s159, %s162
      %p168 = scmp.eq.s32.totalorder %s97, 0
      %p169 = por %p167, %p168
      %p170 = scmp.ne.s32.totalorder %s159, %s162
      %p171 = scmp.eq.s32.totalorder %s102, 1
      %p172 = por %p170, %p171
      %p173 = scmp.ne.s32.totalorder %s162, %s163
      %p174 = scmp.eq.s32.totalorder %s102, 0
      %p175 = por %p173, %p174
      %p176 = scmp.ne.s32.totalorder %s162, %s163
      %p177 = scmp.eq.s32.totalorder %s103, 1
      %p178 = por %p176, %p177
      %p180 = scmp.ne.s32.totalorder %s163, %s179
      %p181 = scmp.eq.s32.totalorder %s103, 0
      %p182 = por %p180, %p181
      %s183 = ssub.s32 %s97, %s104
      %p184 = scmp.eq.s32.totalorder %s183, 0
      %s186 = sadd.s32 %s185, 1
      %s187 = scalar_select %p184, %s185, %s186
      %p190 = pneg %p184
      %p191 = scmp.eq.s32.totalorder %s97, 1
      %p192 = por %p190, %p191
      %p193 = scmp.ne.s32.totalorder %s185, %s188
      %p194 = scmp.eq.s32.totalorder %s97, 0
      %p195 = por %p193, %p194
      %p196 = scmp.ne.s32.totalorder %s185, %s188
      %p197 = scmp.eq.s32.totalorder %s102, 1
      %p198 = por %p196, %p197
      %p199 = scmp.ne.s32.totalorder %s188, %s189
      %p200 = scmp.eq.s32.totalorder %s102, 0
      %p201 = por %p199, %p200
      %p202 = scmp.ne.s32.totalorder %s188, %s189
      %p203 = scmp.eq.s32.totalorder %s103, 1
      %p204 = por %p202, %p203
      %p206 = scmp.ne.s32.totalorder %s189, %s205
      %p207 = scmp.eq.s32.totalorder %s103, 0
      %p208 = por %p206, %p207
      %s209 = ssub.s32 %s97, %s104
      %p210 = scmp.eq.s32.totalorder %s209, 0
      %s212 = sadd.s32 %s211, 1
      %s213 = scalar_select %p210, %s211, %s212
      %p216 = pneg %p210
      %p217 = scmp.eq.s32.totalorder %s97, 1
      %p218 = por %p216, %p217
      %p219 = scmp.ne.s32.totalorder %s211, %s214
      %p220 = scmp.eq.s32.totalorder %s97, 0
      %p221 = por %p219, %p220
      %p222 = scmp.ne.s32.totalorder %s211, %s214
      %p223 = scmp.eq.s32.totalorder %s102, 1
      %p224 = por %p222, %p223
      %p225 = scmp.ne.s32.totalorder %s214, %s215
      %p226 = scmp.eq.s32.totalorder %s102, 0
      %p227 = por %p225, %p226
      %p228 = scmp.ne.s32.totalorder %s214, %s215
      %p229 = scmp.eq.s32.totalorder %s103, 1
      %p230 = por %p228, %p229
      %p232 = scmp.ne.s32.totalorder %s215, %s231
      %p233 = scmp.eq.s32.totalorder %s103, 0
      %p234 = por %p232, %p233
      %s236 = sadd.s32 %s235, 1
      %p239 = scmp.eq.s32.totalorder %s97, 1
      %p240 = scmp.ne.s32.totalorder %s235, %s237
      %p241 = scmp.eq.s32.totalorder %s97, 0
      %p242 = por %p240, %p241
      %p243 = scmp.ne.s32.totalorder %s235, %s237
      %p244 = scmp.eq.s32.totalorder %s102, 1
      %p245 = por %p243, %p244
      %p246 = scmp.ne.s32.totalorder %s237, %s238
      %p247 = scmp.eq.s32.totalorder %s102, 0
      %p248 = por %p246, %p247
      %p249 = scmp.ne.s32.totalorder %s237, %s238
      %p250 = scmp.eq.s32.totalorder %s103, 1
      %p251 = por %p249, %p250
      %p253 = scmp.ne.s32.totalorder %s238, %s252
      %p254 = scmp.eq.s32.totalorder %s103, 0
      %p255 = por %p253, %p254
      %s257 = sadd.s32 %s256, 1
      %p260 = scmp.eq.s32.totalorder %s97, 1
      %p261 = scmp.ne.s32.totalorder %s256, %s258
      %p262 = scmp.eq.s32.totalorder %s97, 0
      %p263 = por %p261, %p262
      %p264 = scmp.ne.s32.totalorder %s256, %s258
      %p265 = scmp.eq.s32.totalorder %s102, 1
      %p266 = por %p264, %p265
      %p267 = scmp.ne.s32.totalorder %s258, %s259
      %p268 = scmp.eq.s32.totalorder %s102, 0
      %p269 = por %p267, %p268
      %p270 = scmp.ne.s32.totalorder %s258, %s259
      %p271 = scmp.eq.s32.totalorder %s103, 1
      %p272 = por %p270, %p271
      %p274 = scmp.ne.s32.totalorder %s259, %s273
      %p275 = scmp.eq.s32.totalorder %s103, 0
      %p276 = por %p274, %p275
      %s278 = sadd.s32 %s277, 1
      %p281 = scmp.eq.s32.totalorder %s97, 1
      %p282 = scmp.ne.s32.totalorder %s277, %s279
      %p283 = scmp.eq.s32.totalorder %s97, 0
      %p284 = por %p282, %p283
      %p285 = scmp.ne.s32.totalorder %s277, %s279
      %p286 = scmp.eq.s32.totalorder %s102, 1
      %p287 = por %p285, %p286
      %p288 = scmp.ne.s32.totalorder %s279, %s280
      %p289 = scmp.eq.s32.totalorder %s102, 0
      %p290 = por %p288, %p289
      %p291 = scmp.ne.s32.totalorder %s279, %s280
      %p292 = scmp.eq.s32.totalorder %s103, 1
      %p293 = por %p291, %p292
      %p295 = scmp.ne.s32.totalorder %s280, %s294
      %p296 = scmp.eq.s32.totalorder %s103, 0
      %p297 = por %p295, %p296
      %s299 = sadd.s32 %s298, 1
      %p302 = scmp.eq.s32.totalorder %s97, 1
      %p303 = scmp.ne.s32.totalorder %s298, %s300
      %p304 = scmp.eq.s32.totalorder %s97, 0
      %p305 = por %p303, %p304
      %p306 = scmp.ne.s32.totalorder %s298, %s300
      %p307 = scmp.eq.s32.totalorder %s102, 1
      %p308 = por %p306, %p307
      %p309 = scmp.ne.s32.totalorder %s300, %s301
      %p310 = scmp.eq.s32.totalorder %s102, 0
      %p311 = por %p309, %p310
      %p312 = scmp.ne.s32.totalorder %s300, %s301
      %p313 = scmp.eq.s32.totalorder %s103, 1
      %p314 = por %p312, %p313
      %p316 = scmp.ne.s32.totalorder %s301, %s315
      %p317 = scmp.eq.s32.totalorder %s103, 0
      %p318 = por %p316, %p317
      %s320 = sadd.s32 %s319, 1
      %p323 = scmp.eq.s32.totalorder %s97, 1
      %p324 = scmp.ne.s32.totalorder %s319, %s321
      %p325 = scmp.eq.s32.totalorder %s97, 0
      %p326 = por %p324, %p325
      %p327 = scmp.ne.s32.totalorder %s319, %s321
      %p328 = scmp.eq.s32.totalorder %s102, 1
      %p329 = por %p327, %p328
      %p330 = scmp.ne.s32.totalorder %s321, %s322
      %p331 = scmp.eq.s32.totalorder %s102, 0
      %p332 = por %p330, %p331
      %p333 = scmp.ne.s32.totalorder %s321, %s322
      %p334 = scmp.eq.s32.totalorder %s103, 1
      %p335 = por %p333, %p334
      %p337 = scmp.ne.s32.totalorder %s322, %s336
      %p338 = scmp.eq.s32.totalorder %s103, 0
      %p339 = por %p337, %p338
      %s341 = sadd.s32 %s340, 1
      %p344 = scmp.eq.s32.totalorder %s97, 1
      %p345 = scmp.ne.s32.totalorder %s340, %s342
      %p346 = scmp.eq.s32.totalorder %s97, 0
      %p347 = por %p345, %p346
      %p348 = scmp.ne.s32.totalorder %s340, %s342
      %p349 = scmp.eq.s32.totalorder %s102, 1
      %p350 = por %p348, %p349
      %p351 = scmp.ne.s32.totalorder %s342, %s343
      %p352 = scmp.eq.s32.totalorder %s102, 0
      %p353 = por %p351, %p352
      %p354 = scmp.ne.s32.totalorder %s342, %s343
      %p355 = scmp.eq.s32.totalorder %s103, 1
      %p356 = por %p354, %p355
      %p358 = scmp.ne.s32.totalorder %s343, %s357
      %p359 = scmp.eq.s32.totalorder %s103, 0
      %p360 = por %p358, %p359
      %s362 = sadd.s32 %s361, 1
      %p365 = scmp.eq.s32.totalorder %s97, 1
      %p366 = scmp.ne.s32.totalorder %s361, %s363
      %p367 = scmp.eq.s32.totalorder %s97, 0
      %p368 = por %p366, %p367
      %p369 = scmp.ne.s32.totalorder %s361, %s363
      %p370 = scmp.eq.s32.totalorder %s102, 1
      %p371 = por %p369, %p370
      %p372 = scmp.ne.s32.totalorder %s363, %s364
      %p373 = scmp.eq.s32.totalorder %s102, 0
      %p374 = por %p372, %p373
      %p375 = scmp.ne.s32.totalorder %s363, %s364
      %p376 = scmp.eq.s32.totalorder %s103, 1
      %p377 = por %p375, %p376
      %p379 = scmp.ne.s32.totalorder %s364, %s378
      %p380 = scmp.eq.s32.totalorder %s103, 0
      %p381 = por %p379, %p380
      %s383 = sadd.s32 %s382, 1
      %p386 = scmp.eq.s32.totalorder %s97, 1
      %p387 = scmp.ne.s32.totalorder %s382, %s384
      %p388 = scmp.eq.s32.totalorder %s97, 0
      %p389 = por %p387, %p388
      %p390 = scmp.ne.s32.totalorder %s382, %s384
      %p391 = scmp.eq.s32.totalorder %s102, 1
      %p392 = por %p390, %p391
      %p393 = scmp.ne.s32.totalorder %s384, %s385
      %p394 = scmp.eq.s32.totalorder %s102, 0
      %p395 = por %p393, %p394
      %p396 = scmp.ne.s32.totalorder %s384, %s385
      %p397 = scmp.eq.s32.totalorder %s103, 1
      %p398 = por %p396, %p397
      %p400 = scmp.ne.s32.totalorder %s385, %s399
      %p401 = scmp.eq.s32.totalorder %s103, 0
      %p402 = por %p400, %p401
      %s404 = sadd.s32 %s403, 1
      %p407 = scmp.eq.s32.totalorder %s97, 1
      %p408 = scmp.ne.s32.totalorder %s403, %s405
      %p409 = scmp.eq.s32.totalorder %s97, 0
      %p410 = por %p408, %p409
      %p411 = scmp.ne.s32.totalorder %s403, %s405
      %p412 = scmp.eq.s32.totalorder %s102, 1
      %p413 = por %p411, %p412
      %p414 = scmp.ne.s32.totalorder %s405, %s406
      %p415 = scmp.eq.s32.totalorder %s102, 0
      %p416 = por %p414, %p415
      %p417 = scmp.ne.s32.totalorder %s405, %s406
      %p418 = scmp.eq.s32.totalorder %s103, 1
      %p419 = por %p417, %p418
      %p421 = scmp.ne.s32.totalorder %s406, %s420
      %p422 = scmp.eq.s32.totalorder %s103, 0
      %p423 = por %p421, %p422
      %s425 = sadd.s32 %s424, 1
      %p428 = scmp.eq.s32.totalorder %s97, 1
      %p429 = scmp.ne.s32.totalorder %s424, %s426
      %p430 = scmp.eq.s32.totalorder %s97, 0
      %p431 = por %p429, %p430
      %p432 = scmp.ne.s32.totalorder %s424, %s426
      %p433 = scmp.eq.s32.totalorder %s102, 1
      %p434 = por %p432, %p433
      %p435 = scmp.ne.s32.totalorder %s426, %s427
      %p436 = scmp.eq.s32.totalorder %s102, 0
      %p437 = por %p435, %p436
      %p438 = scmp.ne.s32.totalorder %s426, %s427
      %p439 = scmp.eq.s32.totalorder %s103, 1
      %p440 = por %p438, %p439
      %p442 = scmp.ne.s32.totalorder %s427, %s441
      %p443 = scmp.eq.s32.totalorder %s103, 0
      %p444 = por %p442, %p443
      %s446 = sadd.s32 %s445, 1
      %p449 = scmp.eq.s32.totalorder %s97, 1
      %p450 = scmp.ne.s32.totalorder %s445, %s447
      %p451 = scmp.eq.s32.totalorder %s97, 0
      %p452 = por %p450, %p451
      %p453 = scmp.ne.s32.totalorder %s445, %s447
      %p454 = scmp.eq.s32.totalorder %s102, 1
      %p455 = por %p453, %p454
      %p456 = scmp.ne.s32.totalorder %s447, %s448
      %p457 = scmp.eq.s32.totalorder %s102, 0
      %p458 = por %p456, %p457
      %p459 = scmp.ne.s32.totalorder %s447, %s448
      %p460 = scmp.eq.s32.totalorder %s103, 1
      %p461 = por %p459, %p460
      %p463 = scmp.ne.s32.totalorder %s448, %s462
      %p464 = scmp.eq.s32.totalorder %s103, 0
      %p465 = por %p463, %p464
      %s467 = sadd.s32 %s466, 1
      %p470 = scmp.eq.s32.totalorder %s97, 1
      %p471 = scmp.ne.s32.totalorder %s466, %s468
      %p472 = scmp.eq.s32.totalorder %s97, 0
      %p473 = por %p471, %p472
      %p474 = scmp.ne.s32.totalorder %s466, %s468
      %p475 = scmp.eq.s32.totalorder %s102, 1
      %p476 = por %p474, %p475
      %p477 = scmp.ne.s32.totalorder %s468, %s469
      %p478 = scmp.eq.s32.totalorder %s102, 0
      %p479 = por %p477, %p478
      %p480 = scmp.ne.s32.totalorder %s468, %s469
      %p481 = scmp.eq.s32.totalorder %s103, 1
      %p482 = por %p480, %p481
      %p484 = scmp.ne.s32.totalorder %s469, %s483
      %p485 = scmp.eq.s32.totalorder %s103, 0
      %p486 = por %p484, %p485
      %s488 = sadd.s32 %s487, 1
      %p491 = scmp.eq.s32.totalorder %s97, 1
      %p492 = scmp.ne.s32.totalorder %s487, %s489
      %p493 = scmp.eq.s32.totalorder %s97, 0
      %p494 = por %p492, %p493
      %p495 = scmp.ne.s32.totalorder %s487, %s489
      %p496 = scmp.eq.s32.totalorder %s102, 1
      %p497 = por %p495, %p496
      %p498 = scmp.ne.s32.totalorder %s489, %s490
      %p499 = scmp.eq.s32.totalorder %s102, 0
      %p500 = por %p498, %p499
      %p501 = scmp.ne.s32.totalorder %s489, %s490
      %p502 = scmp.eq.s32.totalorder %s103, 1
      %p503 = por %p501, %p502
      %p505 = scmp.ne.s32.totalorder %s490, %s504
      %p506 = scmp.eq.s32.totalorder %s103, 0
      %p507 = por %p505, %p506
      %s509 = sadd.s32 %s508, 1
      %p512 = scmp.eq.s32.totalorder %s97, 1
      %p513 = scmp.ne.s32.totalorder %s508, %s510
      %p514 = scmp.eq.s32.totalorder %s97, 0
      %p515 = por %p513, %p514
      %p516 = scmp.ne.s32.totalorder %s508, %s510
      %p517 = scmp.eq.s32.totalorder %s102, 1
      %p518 = por %p516, %p517
      %p519 = scmp.ne.s32.totalorder %s510, %s511
      %p520 = scmp.eq.s32.totalorder %s102, 0
      %p521 = por %p519, %p520
      %p522 = scmp.ne.s32.totalorder %s510, %s511
      %p523 = scmp.eq.s32.totalorder %s103, 1
      %p524 = por %p522, %p523
      %p526 = scmp.ne.s32.totalorder %s511, %s525
      %p527 = scmp.eq.s32.totalorder %s103, 0
      %p528 = por %p526, %p527
      %s530 = sadd.s32 %s529, 1
      %p533 = scmp.eq.s32.totalorder %s97, 1
      %p534 = scmp.ne.s32.totalorder %s529, %s531
      %p535 = scmp.eq.s32.totalorder %s97, 0
      %p536 = por %p534, %p535
      %p537 = scmp.ne.s32.totalorder %s529, %s531
      %p538 = scmp.eq.s32.totalorder %s102, 1
      %p539 = por %p537, %p538
      %p540 = scmp.ne.s32.totalorder %s531, %s532
      %p541 = scmp.eq.s32.totalorder %s102, 0
      %p542 = por %p540, %p541
      %p543 = scmp.ne.s32.totalorder %s531, %s532
      %p544 = scmp.eq.s32.totalorder %s103, 1
      %p545 = por %p543, %p544
      %p547 = scmp.ne.s32.totalorder %s532, %s546
      %p548 = scmp.eq.s32.totalorder %s103, 0
      %p549 = por %p547, %p548
      %s551 = sadd.s32 %s550, 1
      %p554 = scmp.eq.s32.totalorder %s97, 1
      %p555 = scmp.ne.s32.totalorder %s550, %s552
      %p556 = scmp.eq.s32.totalorder %s97, 0
      %p557 = por %p555, %p556
      %p558 = scmp.ne.s32.totalorder %s550, %s552
      %p559 = scmp.eq.s32.totalorder %s102, 1
      %p560 = por %p558, %p559
      %p561 = scmp.ne.s32.totalorder %s552, %s553
      %p562 = scmp.eq.s32.totalorder %s102, 0
      %p563 = por %p561, %p562
      %p564 = scmp.ne.s32.totalorder %s552, %s553
      %p565 = scmp.eq.s32.totalorder %s103, 1
      %p566 = por %p564, %p565
      %p568 = scmp.ne.s32.totalorder %s553, %s567
      %p569 = scmp.eq.s32.totalorder %s103, 0
      %p570 = por %p568, %p569
      %s572 = sadd.s32 %s571, 1
      %p575 = scmp.eq.s32.totalorder %s97, 1
      %p576 = scmp.ne.s32.totalorder %s571, %s573
      %p577 = scmp.eq.s32.totalorder %s97, 0
      %p578 = por %p576, %p577
      %p579 = scmp.ne.s32.totalorder %s571, %s573
      %p580 = scmp.eq.s32.totalorder %s102, 1
      %p581 = por %p579, %p580
      %p582 = scmp.ne.s32.totalorder %s573, %s574
      %p583 = scmp.eq.s32.totalorder %s102, 0
      %p584 = por %p582, %p583
      %p585 = scmp.ne.s32.totalorder %s573, %s574
      %p586 = scmp.eq.s32.totalorder %s103, 1
      %p587 = por %p585, %p586
      %p589 = scmp.ne.s32.totalorder %s574, %s588
      %p590 = scmp.eq.s32.totalorder %s103, 0
      %p591 = por %p589, %p590
      %s593 = sadd.s32 %s592, 1
      %p596 = scmp.eq.s32.totalorder %s97, 1
      %p597 = scmp.ne.s32.totalorder %s592, %s594
      %p598 = scmp.eq.s32.totalorder %s97, 0
      %p599 = por %p597, %p598
      %p600 = scmp.ne.s32.totalorder %s592, %s594
      %p601 = scmp.eq.s32.totalorder %s102, 1
      %p602 = por %p600, %p601
      %p603 = scmp.ne.s32.totalorder %s594, %s595
      %p604 = scmp.eq.s32.totalorder %s102, 0
      %p605 = por %p603, %p604
      %p606 = scmp.ne.s32.totalorder %s594, %s595
      %p607 = scmp.eq.s32.totalorder %s103, 1
      %p608 = por %p606, %p607
      %p610 = scmp.ne.s32.totalorder %s595, %s609
      %p611 = scmp.eq.s32.totalorder %s103, 0
      %p612 = por %p610, %p611
      %s614 = sadd.s32 %s613, 1
      %p617 = scmp.eq.s32.totalorder %s97, 1
      %p618 = scmp.ne.s32.totalorder %s613, %s615
      %p619 = scmp.eq.s32.totalorder %s97, 0
      %p620 = por %p618, %p619
      %p621 = scmp.ne.s32.totalorder %s613, %s615
      %p622 = scmp.eq.s32.totalorder %s102, 1
      %p623 = por %p621, %p622
      %p624 = scmp.ne.s32.totalorder %s615, %s616
      %p625 = scmp.eq.s32.totalorder %s102, 0
      %p626 = por %p624, %p625
      %p627 = scmp.ne.s32.totalorder %s615, %s616
      %p628 = scmp.eq.s32.totalorder %s103, 1
      %p629 = por %p627, %p628
      %p631 = scmp.ne.s32.totalorder %s616, %s630
      %p632 = scmp.eq.s32.totalorder %s103, 0
      %p633 = por %p631, %p632
      %s635 = sadd.s32 %s634, 1
      %p638 = scmp.eq.s32.totalorder %s97, 1
      %p639 = scmp.ne.s32.totalorder %s634, %s636
      %p640 = scmp.eq.s32.totalorder %s97, 0
      %p641 = por %p639, %p640
      %p642 = scmp.ne.s32.totalorder %s634, %s636
      %p643 = scmp.eq.s32.totalorder %s102, 1
      %p644 = por %p642, %p643
      %p645 = scmp.ne.s32.totalorder %s636, %s637
      %p646 = scmp.eq.s32.totalorder %s102, 0
      %p647 = por %p645, %p646
      %p648 = scmp.ne.s32.totalorder %s636, %s637
      %p649 = scmp.eq.s32.totalorder %s103, 1
      %p650 = por %p648, %p649
      %p652 = scmp.ne.s32.totalorder %s637, %s651
      %p653 = scmp.eq.s32.totalorder %s103, 0
      %p654 = por %p652, %p653
      %s656 = sadd.s32 %s655, 1
      %p659 = scmp.eq.s32.totalorder %s97, 1
      %p660 = scmp.ne.s32.totalorder %s655, %s657
      %p661 = scmp.eq.s32.totalorder %s97, 0
      %p662 = por %p660, %p661
      %p663 = scmp.ne.s32.totalorder %s655, %s657
      %p664 = scmp.eq.s32.totalorder %s102, 1
      %p665 = por %p663, %p664
      %p666 = scmp.ne.s32.totalorder %s657, %s658
      %p667 = scmp.eq.s32.totalorder %s102, 0
      %p668 = por %p666, %p667
      %p669 = scmp.ne.s32.totalorder %s657, %s658
      %p670 = scmp.eq.s32.totalorder %s103, 1
      %p671 = por %p669, %p670
      %p673 = scmp.ne.s32.totalorder %s658, %s672
      %p674 = scmp.eq.s32.totalorder %s103, 0
      %p675 = por %p673, %p674
      %s677 = sadd.s32 %s676, 1
      %p680 = scmp.eq.s32.totalorder %s97, 1
      %p681 = scmp.ne.s32.totalorder %s676, %s678
      %p682 = scmp.eq.s32.totalorder %s97, 0
      %p683 = por %p681, %p682
      %p684 = scmp.ne.s32.totalorder %s676, %s678
      %p685 = scmp.eq.s32.totalorder %s102, 1
      %p686 = por %p684, %p685
      %p687 = scmp.ne.s32.totalorder %s678, %s679
      %p688 = scmp.eq.s32.totalorder %s102, 0
      %p689 = por %p687, %p688
      %p690 = scmp.ne.s32.totalorder %s678, %s679
      %p691 = scmp.eq.s32.totalorder %s103, 1
      %p692 = por %p690, %p691
      %p694 = scmp.ne.s32.totalorder %s679, %s693
      %p695 = scmp.eq.s32.totalorder %s103, 0
      %p696 = por %p694, %p695
      %s698 = sadd.s32 %s697, 1
      %p701 = scmp.eq.s32.totalorder %s97, 1
      %p702 = scmp.ne.s32.totalorder %s697, %s699
      %p703 = scmp.eq.s32.totalorder %s97, 0
      %p704 = por %p702, %p703
      %p705 = scmp.ne.s32.totalorder %s697, %s699
      %p706 = scmp.eq.s32.totalorder %s102, 1
      %p707 = por %p705, %p706
      %p708 = scmp.ne.s32.totalorder %s699, %s700
      %p709 = scmp.eq.s32.totalorder %s102, 0
      %p710 = por %p708, %p709
      %p711 = scmp.ne.s32.totalorder %s699, %s700
      %p712 = scmp.eq.s32.totalorder %s103, 1
      %p713 = por %p711, %p712
      %p715 = scmp.ne.s32.totalorder %s700, %s714
      %p716 = scmp.eq.s32.totalorder %s103, 0
      %p717 = por %p715, %p716
      %s719 = sadd.s32 %s718, 1
      %p722 = scmp.eq.s32.totalorder %s97, 1
      %p723 = scmp.ne.s32.totalorder %s718, %s720
      %p724 = scmp.eq.s32.totalorder %s97, 0
      %p725 = por %p723, %p724
      %p726 = scmp.ne.s32.totalorder %s718, %s720
      %p727 = scmp.eq.s32.totalorder %s102, 1
      %p728 = por %p726, %p727
      %p729 = scmp.ne.s32.totalorder %s720, %s721
      %p730 = scmp.eq.s32.totalorder %s102, 0
      %p731 = por %p729, %p730
      %p732 = scmp.ne.s32.totalorder %s720, %s721
      %p733 = scmp.eq.s32.totalorder %s103, 1
      %p734 = por %p732, %p733
      %p736 = scmp.ne.s32.totalorder %s721, %s735
      %p737 = scmp.eq.s32.totalorder %s103, 0
      %p738 = por %p736, %p737
      %s740 = sadd.s32 %s739, 1
      %p743 = scmp.eq.s32.totalorder %s97, 1
      %p744 = scmp.ne.s32.totalorder %s739, %s741
      %p745 = scmp.eq.s32.totalorder %s97, 0
      %p746 = por %p744, %p745
      %p747 = scmp.ne.s32.totalorder %s739, %s741
      %p748 = scmp.eq.s32.totalorder %s102, 1
      %p749 = por %p747, %p748
      %p750 = scmp.ne.s32.totalorder %s741, %s742
      %p751 = scmp.eq.s32.totalorder %s102, 0
      %p752 = por %p750, %p751
      %p753 = scmp.ne.s32.totalorder %s741, %s742
      %p754 = scmp.eq.s32.totalorder %s103, 1
      %p755 = por %p753, %p754
      %p757 = scmp.ne.s32.totalorder %s742, %s756
      %p758 = scmp.eq.s32.totalorder %s103, 0
      %p759 = por %p757, %p758
      %s761 = sadd.s32 %s760, 1
      %p764 = scmp.eq.s32.totalorder %s97, 1
      %p765 = scmp.ne.s32.totalorder %s760, %s762
      %p766 = scmp.eq.s32.totalorder %s97, 0
      %p767 = por %p765, %p766
      %p768 = scmp.ne.s32.totalorder %s760, %s762
      %p769 = scmp.eq.s32.totalorder %s102, 1
      %p770 = por %p768, %p769
      %p771 = scmp.ne.s32.totalorder %s762, %s763
      %p772 = scmp.eq.s32.totalorder %s102, 0
      %p773 = por %p771, %p772
      %p774 = scmp.ne.s32.totalorder %s762, %s763
      %p775 = scmp.eq.s32.totalorder %s103, 1
      %p776 = por %p774, %p775
      %p778 = scmp.ne.s32.totalorder %s763, %s777
      %p779 = scmp.eq.s32.totalorder %s103, 0
      %p780 = por %p778, %p779
      %s782 = sadd.s32 %s781, 1
      %p785 = scmp.eq.s32.totalorder %s97, 1
      %p786 = scmp.ne.s32.totalorder %s781, %s783
      %p787 = scmp.eq.s32.totalorder %s97, 0
      %p788 = por %p786, %p787
      %p789 = scmp.ne.s32.totalorder %s781, %s783
      %p790 = scmp.eq.s32.totalorder %s102, 1
      %p791 = por %p789, %p790
      %p792 = scmp.ne.s32.totalorder %s783, %s784
      %p793 = scmp.eq.s32.totalorder %s102, 0
      %p794 = por %p792, %p793
      %p795 = scmp.ne.s32.totalorder %s783, %s784
      %p796 = scmp.eq.s32.totalorder %s103, 1
      %p797 = por %p795, %p796
      %p799 = scmp.ne.s32.totalorder %s784, %s798
      %p800 = scmp.eq.s32.totalorder %s103, 0
      %p801 = por %p799, %p800
      %s803 = sadd.s32 %s802, 1
      %p806 = scmp.eq.s32.totalorder %s97, 1
      %p807 = scmp.ne.s32.totalorder %s802, %s804
      %p808 = scmp.eq.s32.totalorder %s97, 0
      %p809 = por %p807, %p808
      %p810 = scmp.ne.s32.totalorder %s802, %s804
      %p811 = scmp.eq.s32.totalorder %s102, 1
      %p812 = por %p810, %p811
      %p813 = scmp.ne.s32.totalorder %s804, %s805
      %p814 = scmp.eq.s32.totalorder %s102, 0
      %p815 = por %p813, %p814
      %p816 = scmp.ne.s32.totalorder %s804, %s805
      %p817 = scmp.eq.s32.totalorder %s103, 1
      %p818 = por %p816, %p817
      %p820 = scmp.ne.s32.totalorder %s805, %s819
      %p821 = scmp.eq.s32.totalorder %s103, 0
      %p822 = por %p820, %p821
      %s824 = sadd.s32 %s823, 1
      %p827 = scmp.eq.s32.totalorder %s97, 1
      %p828 = scmp.ne.s32.totalorder %s823, %s825
      %p829 = scmp.eq.s32.totalorder %s97, 0
      %p830 = por %p828, %p829
      %p831 = scmp.ne.s32.totalorder %s823, %s825
      %p832 = scmp.eq.s32.totalorder %s102, 1
      %p833 = por %p831, %p832
      %p834 = scmp.ne.s32.totalorder %s825, %s826
      %p835 = scmp.eq.s32.totalorder %s102, 0
      %p836 = por %p834, %p835
      %p837 = scmp.ne.s32.totalorder %s825, %s826
      %p838 = scmp.eq.s32.totalorder %s103, 1
      %p839 = por %p837, %p838
      %p841 = scmp.ne.s32.totalorder %s826, %s840
      %p842 = scmp.eq.s32.totalorder %s103, 0
      %p843 = por %p841, %p842
      %s845 = sadd.s32 %s844, 1
      %p848 = scmp.eq.s32.totalorder %s97, 1
      %p849 = scmp.ne.s32.totalorder %s844, %s846
      %p850 = scmp.eq.s32.totalorder %s97, 0
      %p851 = por %p849, %p850
      %p852 = scmp.ne.s32.totalorder %s844, %s846
      %p853 = scmp.eq.s32.totalorder %s102, 1
      %p854 = por %p852, %p853
      %p855 = scmp.ne.s32.totalorder %s846, %s847
      %p856 = scmp.eq.s32.totalorder %s102, 0
      %p857 = por %p855, %p856
      %p858 = scmp.ne.s32.totalorder %s846, %s847
      %p859 = scmp.eq.s32.totalorder %s103, 1
      %p860 = por %p858, %p859
      %p862 = scmp.ne.s32.totalorder %s847, %s861
      %p863 = scmp.eq.s32.totalorder %s103, 0
      %p864 = por %p862, %p863
      %s866 = sadd.s32 %s865, 1
      %p869 = scmp.eq.s32.totalorder %s97, 1
      %p870 = scmp.ne.s32.totalorder %s865, %s867
      %p871 = scmp.eq.s32.totalorder %s97, 0
      %p872 = por %p870, %p871
      %p873 = scmp.ne.s32.totalorder %s865, %s867
      %p874 = scmp.eq.s32.totalorder %s102, 1
      %p875 = por %p873, %p874
      %p876 = scmp.ne.s32.totalorder %s867, %s868
      %p877 = scmp.eq.s32.totalorder %s102, 0
      %p878 = por %p876, %p877
      %p879 = scmp.ne.s32.totalorder %s867, %s868
      %p880 = scmp.eq.s32.totalorder %s103, 1
      %p881 = por %p879, %p880
      %p883 = scmp.ne.s32.totalorder %s868, %s882
      %p884 = scmp.eq.s32.totalorder %s103, 0
      %p885 = por %p883, %p884
      %s887 = sadd.s32 %s886, 1
      %p890 = scmp.eq.s32.totalorder %s97, 1
      %p891 = scmp.ne.s32.totalorder %s886, %s888
      %p892 = scmp.eq.s32.totalorder %s97, 0
      %p893 = por %p891, %p892
      %p894 = scmp.ne.s32.totalorder %s886, %s888
      %p895 = scmp.eq.s32.totalorder %s102, 1
      %p896 = por %p894, %p895
      %p897 = scmp.ne.s32.totalorder %s888, %s889
      %p898 = scmp.eq.s32.totalorder %s102, 0
      %p899 = por %p897, %p898
      %p900 = scmp.ne.s32.totalorder %s888, %s889
      %p901 = scmp.eq.s32.totalorder %s103, 1
      %p902 = por %p900, %p901
      %p904 = scmp.ne.s32.totalorder %s889, %s903
      %p905 = scmp.eq.s32.totalorder %s103, 0
      %p906 = por %p904, %p905
      %s908 = sadd.s32 %s907, 1
      %p911 = scmp.eq.s32.totalorder %s97, 1
      %p912 = scmp.ne.s32.totalorder %s907, %s909
      %p913 = scmp.eq.s32.totalorder %s97, 0
      %p914 = por %p912, %p913
      %p915 = scmp.ne.s32.totalorder %s907, %s909
      %p916 = scmp.eq.s32.totalorder %s102, 1
      %p917 = por %p915, %p916
      %p918 = scmp.ne.s32.totalorder %s909, %s910
      %p919 = scmp.eq.s32.totalorder %s102, 0
      %p920 = por %p918, %p919
      %p921 = scmp.ne.s32.totalorder %s909, %s910
      %p922 = scmp.eq.s32.totalorder %s103, 1
      %p923 = por %p921, %p922
      %p925 = scmp.ne.s32.totalorder %s910, %s924
      %p926 = scmp.eq.s32.totalorder %s103, 0
      %p927 = por %p925, %p926
      %s929 = sadd.s32 %s928, 1
      %p932 = scmp.eq.s32.totalorder %s97, 1
      %p933 = scmp.ne.s32.totalorder %s928, %s930
      %p934 = scmp.eq.s32.totalorder %s97, 0
      %p935 = por %p933, %p934
      %p936 = scmp.ne.s32.totalorder %s928, %s930
      %p937 = scmp.eq.s32.totalorder %s102, 1
      %p938 = por %p936, %p937
      %p939 = scmp.ne.s32.totalorder %s930, %s931
      %p940 = scmp.eq.s32.totalorder %s102, 0
      %p941 = por %p939, %p940
      %p942 = scmp.ne.s32.totalorder %s930, %s931
      %p943 = scmp.eq.s32.totalorder %s103, 1
      %p944 = por %p942, %p943
      %p946 = scmp.ne.s32.totalorder %s931, %s945
      %p947 = scmp.eq.s32.totalorder %s103, 0
      %p948 = por %p946, %p947
      %s949 = ssub.s32 %s97, %s104
      %p950 = scmp.eq.s32.totalorder %s949, 0
      %s952 = sadd.s32 %s951, 1
      %s953 = scalar_select %p950, %s951, %s952
      %p956 = pneg %p950
      %p957 = scmp.eq.s32.totalorder %s97, 1
      %p958 = por %p956, %p957
      %p959 = scmp.ne.s32.totalorder %s951, %s954
      %p960 = scmp.eq.s32.totalorder %s97, 0
      %p961 = por %p959, %p960
      %p962 = scmp.ne.s32.totalorder %s951, %s954
      %p963 = scmp.eq.s32.totalorder %s102, 1
      %p964 = por %p962, %p963
      %p965 = scmp.ne.s32.totalorder %s954, %s955
      %p966 = scmp.eq.s32.totalorder %s102, 0
      %p967 = por %p965, %p966
      %p968 = scmp.ne.s32.totalorder %s954, %s955
      %p969 = scmp.eq.s32.totalorder %s103, 1
      %p970 = por %p968, %p969
      %p972 = scmp.ne.s32.totalorder %s955, %s971
      %p973 = scmp.eq.s32.totalorder %s103, 0
      %p974 = por %p972, %p973
      %s975 = ssub.s32 %s97, %s104
      %p976 = scmp.eq.s32.totalorder %s975, 0
      %s978 = sadd.s32 %s977, 1
      %s979 = scalar_select %p976, %s977, %s978
      %p982 = pneg %p976
      %p983 = scmp.eq.s32.totalorder %s97, 1
      %p984 = por %p982, %p983
      %p985 = scmp.ne.s32.totalorder %s977, %s980
      %p986 = scmp.eq.s32.totalorder %s97, 0
      %p987 = por %p985, %p986
      %p988 = scmp.ne.s32.totalorder %s977, %s980
      %p989 = scmp.eq.s32.totalorder %s102, 1
      %p990 = por %p988, %p989
      %p991 = scmp.ne.s32.totalorder %s980, %s981
      %p992 = scmp.eq.s32.totalorder %s102, 0
      %p993 = por %p991, %p992
      %p994 = scmp.ne.s32.totalorder %s980, %s981
      %p995 = scmp.eq.s32.totalorder %s103, 1
      %p996 = por %p994, %p995
      %p998 = scmp.ne.s32.totalorder %s981, %s997
      %p999 = scmp.eq.s32.totalorder %s103, 0
      %p1000 = por %p998, %p999
      %p1001 = scmp.le.s32.totalorder 1, %s97
      %p1002 = scmp.lt.s32.totalorder %s97, 3
      %p1003 = pnand %p1001, %p1002
      %p1004 = pneg %p1003
      // Predicated region
      $region9: #{tpu_custom_call.1} parent=5 // pred_check
        _
      $region10: #{tpu_custom_call.1} parent=5 // pred_check_branch
        %1006 = sbr.rel (%p1003) target = $region12
      $region11: #{tpu_custom_call.1} parent=5 // pred_region
        %s1007 = ssub.s32 %s97, 1
        // Predicated region
        $region13: #{tpu_custom_call.1} parent=11 // pred_check
          %p1008 = pneg %p248
        $region14: #{tpu_custom_call.1} parent=11 // pred_check_branch
          %1010 = sbr.rel (%p1008) target = $region16
        $region15: #{tpu_custom_call.1} parent=11 // pred_region
          %s1012 = ssub.s32 16, 16
          %1013 = vsyncadd [#allocation8], %s1012
          %s1015 = sshll.u32 [#allocation7], 4
          %s1016 = int_to_ptr.vmem [resolvable:$true] %s1015
          %1018 = dma.hbm_to_vmem [thread:$0]  %s11, 16, %s1016, [#allocation8]
        $region16: #{tpu_custom_call.1} parent=11 // pred_fallthru
          _
        // Predicated region
        $region17: #{tpu_custom_call.1} parent=11 // pred_check
          %p1019 = pneg %p269
        $region18: #{tpu_custom_call.1} parent=11 // pred_check_branch
          %1021 = sbr.rel (%p1019) target = $region20
        $region19: #{tpu_custom_call.1} parent=11 // pred_region
          %s1023 = ssub.s32 16, 16
          %1024 = vsyncadd [#allocation8], %s1023
          %s1026 = sshll.u32 [#allocation9], 4
          %s1027 = int_to_ptr.vmem [resolvable:$true] %s1026
          %1029 = dma.hbm_to_vmem [thread:$0]  %s13, 16, %s1027, [#allocation8]
        $region20: #{tpu_custom_call.1} parent=11 // pred_fallthru
          _
        // Predicated region
        $region21: #{tpu_custom_call.1} parent=11 // pred_check
          %p1030 = pneg %p290
        $region22: #{tpu_custom_call.1} parent=11 // pred_check_branch
          %1032 = sbr.rel (%p1030) target = $region24
        $region23: #{tpu_custom_call.1} parent=11 // pred_region
          _
        $region24: #{tpu_custom_call.1} parent=11 // pred_fallthru
          _
        // Predicated region
        $region25: #{tpu_custom_call.1} parent=11 // pred_check
          %p1033 = pneg %p311
        $region26: #{tpu_custom_call.1} parent=11 // pred_check_branch
          %1035 = sbr.rel (%p1033) target = $region28
        $region27: #{tpu_custom_call.1} parent=11 // pred_region
          _
        $region28: #{tpu_custom_call.1} parent=11 // pred_fallthru
          _
        // Predicated region
        $region29: #{tpu_custom_call.1} parent=11 // pred_check
          %p1036 = pneg %p332
        $region30: #{tpu_custom_call.1} parent=11 // pred_check_branch
          %1038 = sbr.rel (%p1036) target = $region32
        $region31: #{tpu_custom_call.1} parent=11 // pred_region
          _
        $region32: #{tpu_custom_call.1} parent=11 // pred_fallthru
          _
        // Predicated region
        $region33: #{tpu_custom_call.1} parent=11 // pred_check
          %p1039 = pneg %p353
        $region34: #{tpu_custom_call.1} parent=11 // pred_check_branch
          %1041 = sbr.rel (%p1039) target = $region36
        $region35: #{tpu_custom_call.1} parent=11 // pred_region
          %s1043 = ssub.s32 16, 16
          %1044 = vsyncadd [#allocation11], %s1043
          %s1046 = sshll.u32 [#allocation10], 4
          %s1047 = int_to_ptr.vmem [resolvable:$true] %s1046
          %1049 = dma.hbm_to_vmem [thread:$0]  %s21, 16, %s1047, [#allocation11]
        $region36: #{tpu_custom_call.1} parent=11 // pred_fallthru
          _
        // Predicated region
        $region37: #{tpu_custom_call.1} parent=11 // pred_check
          %p1050 = pneg %p374
        $region38: #{tpu_custom_call.1} parent=11 // pred_check_branch
          %1052 = sbr.rel (%p1050) target = $region40
        $region39: #{tpu_custom_call.1} parent=11 // pred_region
          %s1054 = ssub.s32 16, 16
          %1055 = vsyncadd [#allocation11], %s1054
          %s1057 = sshll.u32 [#allocation12], 4
          %s1058 = int_to_ptr.vmem [resolvable:$true] %s1057
          %1060 = dma.hbm_to_vmem [thread:$0]  %s23, 16, %s1058, [#allocation11]
        $region40: #{tpu_custom_call.1} parent=11 // pred_fallthru
          _
        // Predicated region
        $region41: #{tpu_custom_call.1} parent=11 // pred_check
          %p1061 = pneg %p395
        $region42: #{tpu_custom_call.1} parent=11 // pred_check_branch
          %1063 = sbr.rel (%p1061) target = $region44
        $region43: #{tpu_custom_call.1} parent=11 // pred_region
          %s1065 = ssub.s32 16, 16
          %1066 = vsyncadd [#allocation14], %s1065
          %s1068 = sshll.u32 [#allocation13], 4
          %s1069 = int_to_ptr.vmem [resolvable:$true] %s1068
          %1071 = dma.hbm_to_vmem [thread:$0]  %s25, 16, %s1069, [#allocation14]
        $region44: #{tpu_custom_call.1} parent=11 // pred_fallthru
          _
        // Predicated region
        $region45: #{tpu_custom_call.1} parent=11 // pred_check
          %p1072 = pneg %p416
        $region46: #{tpu_custom_call.1} parent=11 // pred_check_branch
          %1074 = sbr.rel (%p1072) target = $region48
        $region47: #{tpu_custom_call.1} parent=11 // pred_region
          _
        $region48: #{tpu_custom_call.1} parent=11 // pred_fallthru
          _
        // Predicated region
        $region49: #{tpu_custom_call.1} parent=11 // pred_check
          %p1075 = pneg %p437
        $region50: #{tpu_custom_call.1} parent=11 // pred_check_branch
          %1077 = sbr.rel (%p1075) target = $region52
        $region51: #{tpu_custom_call.1} parent=11 // pred_region
          _
        $region52: #{tpu_custom_call.1} parent=11 // pred_fallthru
          _
        // Predicated region
        $region53: #{tpu_custom_call.1} parent=11 // pred_check
          %p1078 = pneg %p458
        $region54: #{tpu_custom_call.1} parent=11 // pred_check_branch
          %1080 = sbr.rel (%p1078) target = $region56
        $region55: #{tpu_custom_call.1} parent=11 // pred_region
          _
        $region56: #{tpu_custom_call.1} parent=11 // pred_fallthru
          _
        // Predicated region
        $region57: #{tpu_custom_call.1} parent=11 // pred_check
          %p1081 = pneg %p479
        $region58: #{tpu_custom_call.1} parent=11 // pred_check_branch
          %1083 = sbr.rel (%p1081) target = $region60
        $region59: #{tpu_custom_call.1} parent=11 // pred_region
          _
        $region60: #{tpu_custom_call.1} parent=11 // pred_fallthru
          _
        // Predicated region
        $region61: #{tpu_custom_call.1} parent=11 // pred_check
          %p1084 = pneg %p500
        $region62: #{tpu_custom_call.1} parent=11 // pred_check_branch
          %1086 = sbr.rel (%p1084) target = $region64
        $region63: #{tpu_custom_call.1} parent=11 // pred_region
          _
        $region64: #{tpu_custom_call.1} parent=11 // pred_fallthru
          _
        // Predicated region
        $region65: #{tpu_custom_call.1} parent=11 // pred_check
          %p1087 = pneg %p521
        $region66: #{tpu_custom_call.1} parent=11 // pred_check_branch
          %1089 = sbr.rel (%p1087) target = $region68
        $region67: #{tpu_custom_call.1} parent=11 // pred_region
          _
        $region68: #{tpu_custom_call.1} parent=11 // pred_fallthru
          _
        // Predicated region
        $region69: #{tpu_custom_call.1} parent=11 // pred_check
          %p1090 = pneg %p542
        $region70: #{tpu_custom_call.1} parent=11 // pred_check_branch
          %1092 = sbr.rel (%p1090) target = $region72
        $region71: #{tpu_custom_call.1} parent=11 // pred_region
          _
        $region72: #{tpu_custom_call.1} parent=11 // pred_fallthru
          _
        // Predicated region
        $region73: #{tpu_custom_call.1} parent=11 // pred_check
          %p1093 = pneg %p563
        $region74: #{tpu_custom_call.1} parent=11 // pred_check_branch
          %1095 = sbr.rel (%p1093) target = $region76
        $region75: #{tpu_custom_call.1} parent=11 // pred_region
          _
        $region76: #{tpu_custom_call.1} parent=11 // pred_fallthru
          _
        // Predicated region
        $region77: #{tpu_custom_call.1} parent=11 // pred_check
          %p1096 = pneg %p584
        $region78: #{tpu_custom_call.1} parent=11 // pred_check_branch
          %1098 = sbr.rel (%p1096) target = $region80
        $region79: #{tpu_custom_call.1} parent=11 // pred_region
          _
        $region80: #{tpu_custom_call.1} parent=11 // pred_fallthru
          _
        // Predicated region
        $region81: #{tpu_custom_call.1} parent=11 // pred_check
          %p1099 = pneg %p605
        $region82: #{tpu_custom_call.1} parent=11 // pred_check_branch
          %1101 = sbr.rel (%p1099) target = $region84
        $region83: #{tpu_custom_call.1} parent=11 // pred_region
          _
        $region84: #{tpu_custom_call.1} parent=11 // pred_fallthru
          _
        // Predicated region
        $region85: #{tpu_custom_call.1} parent=11 // pred_check
          %p1102 = pneg %p626
        $region86: #{tpu_custom_call.1} parent=11 // pred_check_branch
          %1104 = sbr.rel (%p1102) target = $region88
        $region87: #{tpu_custom_call.1} parent=11 // pred_region
          _
        $region88: #{tpu_custom_call.1} parent=11 // pred_fallthru
          _
        // Predicated region
        $region89: #{tpu_custom_call.1} parent=11 // pred_check
          %p1105 = pneg %p647
        $region90: #{tpu_custom_call.1} parent=11 // pred_check_branch
          %1107 = sbr.rel (%p1105) target = $region92
        $region91: #{tpu_custom_call.1} parent=11 // pred_region
          _
        $region92: #{tpu_custom_call.1} parent=11 // pred_fallthru
          _
        // Predicated region
        $region93: #{tpu_custom_call.1} parent=11 // pred_check
          %p1108 = pneg %p668
        $region94: #{tpu_custom_call.1} parent=11 // pred_check_branch
          %1110 = sbr.rel (%p1108) target = $region96
        $region95: #{tpu_custom_call.1} parent=11 // pred_region
          _
        $region96: #{tpu_custom_call.1} parent=11 // pred_fallthru
          _
        // Predicated region
        $region97: #{tpu_custom_call.1} parent=11 // pred_check
          %p1111 = pneg %p689
        $region98: #{tpu_custom_call.1} parent=11 // pred_check_branch
          %1113 = sbr.rel (%p1111) target = $region100
        $region99: #{tpu_custom_call.1} parent=11 // pred_region
          _
        $region100: #{tpu_custom_call.1} parent=11 // pred_fallthru
          _
        // Predicated region
        $region101: #{tpu_custom_call.1} parent=11 // pred_check
          %p1114 = pneg %p710
        $region102: #{tpu_custom_call.1} parent=11 // pred_check_branch
          %1116 = sbr.rel (%p1114) target = $region104
        $region103: #{tpu_custom_call.1} parent=11 // pred_region
          _
        $region104: #{tpu_custom_call.1} parent=11 // pred_fallthru
          _
        // Predicated region
        $region105: #{tpu_custom_call.1} parent=11 // pred_check
          %p1117 = pneg %p731
        $region106: #{tpu_custom_call.1} parent=11 // pred_check_branch
          %1119 = sbr.rel (%p1117) target = $region108
        $region107: #{tpu_custom_call.1} parent=11 // pred_region
          _
        $region108: #{tpu_custom_call.1} parent=11 // pred_fallthru
          _
        // Predicated region
        $region109: #{tpu_custom_call.1} parent=11 // pred_check
          %p1120 = pneg %p752
        $region110: #{tpu_custom_call.1} parent=11 // pred_check_branch
          %1122 = sbr.rel (%p1120) target = $region112
        $region111: #{tpu_custom_call.1} parent=11 // pred_region
          _
        $region112: #{tpu_custom_call.1} parent=11 // pred_fallthru
          _
        // Predicated region
        $region113: #{tpu_custom_call.1} parent=11 // pred_check
          %p1123 = pneg %p773
        $region114: #{tpu_custom_call.1} parent=11 // pred_check_branch
          %1125 = sbr.rel (%p1123) target = $region116
        $region115: #{tpu_custom_call.1} parent=11 // pred_region
          _
        $region116: #{tpu_custom_call.1} parent=11 // pred_fallthru
          _
        // Predicated region
        $region117: #{tpu_custom_call.1} parent=11 // pred_check
          %p1126 = pneg %p794
        $region118: #{tpu_custom_call.1} parent=11 // pred_check_branch
          %1128 = sbr.rel (%p1126) target = $region120
        $region119: #{tpu_custom_call.1} parent=11 // pred_region
          _
        $region120: #{tpu_custom_call.1} parent=11 // pred_fallthru
          _
        // Predicated region
        $region121: #{tpu_custom_call.1} parent=11 // pred_check
          %p1129 = pneg %p815
        $region122: #{tpu_custom_call.1} parent=11 // pred_check_branch
          %1131 = sbr.rel (%p1129) target = $region124
        $region123: #{tpu_custom_call.1} parent=11 // pred_region
          _
        $region124: #{tpu_custom_call.1} parent=11 // pred_fallthru
          _
        // Predicated region
        $region125: #{tpu_custom_call.1} parent=11 // pred_check
          %p1132 = pneg %p836
        $region126: #{tpu_custom_call.1} parent=11 // pred_check_branch
          %1134 = sbr.rel (%p1132) target = $region128
        $region127: #{tpu_custom_call.1} parent=11 // pred_region
          _
        $region128: #{tpu_custom_call.1} parent=11 // pred_fallthru
          _
        // Predicated region
        $region129: #{tpu_custom_call.1} parent=11 // pred_check
          %p1135 = pneg %p857
        $region130: #{tpu_custom_call.1} parent=11 // pred_check_branch
          %1137 = sbr.rel (%p1135) target = $region132
        $region131: #{tpu_custom_call.1} parent=11 // pred_region
          _
        $region132: #{tpu_custom_call.1} parent=11 // pred_fallthru
          _
        // Predicated region
        $region133: #{tpu_custom_call.1} parent=11 // pred_check
          %p1138 = pneg %p878
        $region134: #{tpu_custom_call.1} parent=11 // pred_check_branch
          %1140 = sbr.rel (%p1138) target = $region136
        $region135: #{tpu_custom_call.1} parent=11 // pred_region
          _
        $region136: #{tpu_custom_call.1} parent=11 // pred_fallthru
          _
        // Predicated region
        $region137: #{tpu_custom_call.1} parent=11 // pred_check
          %p1141 = pneg %p899
        $region138: #{tpu_custom_call.1} parent=11 // pred_check_branch
          %1143 = sbr.rel (%p1141) target = $region140
        $region139: #{tpu_custom_call.1} parent=11 // pred_region
          _
        $region140: #{tpu_custom_call.1} parent=11 // pred_fallthru
          _
        // Predicated region
        $region141: #{tpu_custom_call.1} parent=11 // pred_check
          %p1144 = pneg %p920
        $region142: #{tpu_custom_call.1} parent=11 // pred_check_branch
          %1146 = sbr.rel (%p1144) target = $region144
        $region143: #{tpu_custom_call.1} parent=11 // pred_region
          _
        $region144: #{tpu_custom_call.1} parent=11 // pred_fallthru
          _
        // Predicated region
        $region145: #{tpu_custom_call.1} parent=11 // pred_check
          %p1147 = pneg %p941
        $region146: #{tpu_custom_call.1} parent=11 // pred_check_branch
          %1149 = sbr.rel (%p1147) target = $region148
        $region147: #{tpu_custom_call.1} parent=11 // pred_region
          _
        $region148: #{tpu_custom_call.1} parent=11 // pred_fallthru
          _
      $region12: #{tpu_custom_call.1} parent=5 // pred_fallthru
        _
      %p1150 = scmp.lt.s32.totalorder %s97, 2
      // Predicated region
      $region149: #{tpu_custom_call.1} parent=5 // pred_check
        %p1151 = pneg %p1150
      $region150: #{tpu_custom_call.1} parent=5 // pred_check_branch
        %1153 = sbr.rel (%p1151) target = $region152
      $region151: #{tpu_custom_call.1} parent=5 // pred_region
        // Predicated region
        $region153: #{tpu_custom_call.1} parent=151 // pred_check
          %p1154 = pneg %p117
        $region154: #{tpu_custom_call.1} parent=151 // pred_check_branch
          %1156 = sbr.rel (%p1154) target = $region156
        $region155: #{tpu_custom_call.1} parent=151 // pred_region
          %p1157 = scmp.lt.s32.totalorder %s97, 1
          %s1158 = scalar_select %p1157, %s97, 1
          %s1159 = smul.addr %s1158, 2
          %s1160 = scalar_lea.vmem %s1, %s1159
        $region156: #{tpu_custom_call.1} parent=151 // pred_fallthru
          _
        // Predicated region
        $region157: #{tpu_custom_call.1} parent=151 // pred_check
          %p1161 = pneg %p143
        $region158: #{tpu_custom_call.1} parent=151 // pred_check_branch
          %1163 = sbr.rel (%p1161) target = $region160
        $region159: #{tpu_custom_call.1} parent=151 // pred_region
          %s1164 = sand.u32 %s133, 1
          %s1165 = scalar_lea.sflag [#allocation3], %s1164
          %s1166 = sand.u32 %s133, 1
          %s1167 = smul.addr %s1166, 4
          %s1168 = scalar_lea.vmem [#allocation2], %s1167
          %s1170 = ssub.s32 64, 64
          %1171 = vsyncadd %s1165, %s1170
          %s1172 = smul.addr %s97, 64
          %s1173 = scalar_lea.hbm %s3, %s1172
          %s1175 = sshll.u32 %s1168, 4
          %s1176 = int_to_ptr.vmem [resolvable:$true] %s1175
          %1178 = dma.hbm_to_vmem [thread:$0]  %s1173, 64, %s1176, %s1165
        $region160: #{tpu_custom_call.1} parent=151 // pred_fallthru
          _
        // Predicated region
        $region161: #{tpu_custom_call.1} parent=151 // pred_check
          %p1179 = pneg %p169
        $region162: #{tpu_custom_call.1} parent=151 // pred_check_branch
          %1181 = sbr.rel (%p1179) target = $region164
        $region163: #{tpu_custom_call.1} parent=151 // pred_region
          %s1182 = sand.u32 %s97, 1
          %s1183 = scalar_lea.sflag [#allocation5], %s1182
          %s1184 = sand.u32 %s159, 1
          %s1185 = scalar_lea.vmem [#allocation4], %s1184
          %s1187 = ssub.s32 16, 16
          %1188 = vsyncadd %s1183, %s1187
          %s1189 = smul.addr %s97, 16
          %s1190 = scalar_lea.hbm %s5, %s1189
          %s1192 = sshll.u32 %s1185, 4
          %s1193 = int_to_ptr.vmem [resolvable:$true] %s1192
          %1195 = dma.hbm_to_vmem [thread:$0]  %s1190, 16, %s1193, %s1183
        $region164: #{tpu_custom_call.1} parent=151 // pred_fallthru
          _
        // Predicated region
        $region165: #{tpu_custom_call.1} parent=151 // pred_check
          %p1196 = pneg %p195
        $region166: #{tpu_custom_call.1} parent=151 // pred_check_branch
          %1198 = sbr.rel (%p1196) target = $region168
        $region167: #{tpu_custom_call.1} parent=151 // pred_region
          %p1199 = scmp.lt.s32.totalorder %s97, 1
          %s1200 = scalar_select %p1199, %s97, 1
          %s1201 = smul.addr %s1200, 2
          %s1202 = smul.addr %s1201, 4
          %s1203 = scalar_lea.vmem %s7, %s1202
        $region168: #{tpu_custom_call.1} parent=151 // pred_fallthru
          _
        // Predicated region
        $region169: #{tpu_custom_call.1} parent=151 // pred_check
          %p1204 = pneg %p221
        $region170: #{tpu_custom_call.1} parent=151 // pred_check_branch
          %1206 = sbr.rel (%p1204) target = $region172
        $region171: #{tpu_custom_call.1} parent=151 // pred_region
          %s1207 = sand.u32 %s97, 1
          %s1208 = scalar_lea.sflag [#allocation5], %s1207
          %s1209 = sand.u32 %s211, 1
          %s1210 = scalar_lea.vmem [#allocation6], %s1209
          %s1212 = ssub.s32 16, 16
          %1213 = vsyncadd %s1208, %s1212
          %s1214 = smul.addr %s97, 16
          %s1215 = scalar_lea.hbm %s9, %s1214
          %s1217 = sshll.u32 %s1210, 4
          %s1218 = int_to_ptr.vmem [resolvable:$true] %s1217
          %1220 = dma.hbm_to_vmem [thread:$0]  %s1215, 16, %s1218, %s1208
        $region172: #{tpu_custom_call.1} parent=151 // pred_fallthru
          _
      $region152: #{tpu_custom_call.1} parent=5 // pred_fallthru
        _
      %p1221 = scmp.le.s32.totalorder 1, %s97
      %p1222 = scmp.lt.s32.totalorder %s97, 3
      %p1223 = pnand %p1221, %p1222
      %p1224 = pneg %p1223
      // Predicated region
      $region173: #{tpu_custom_call.1} parent=5 // pred_check
        _
      $region174: #{tpu_custom_call.1} parent=5 // pred_check_branch
        %1226 = sbr.rel (%p1223) target = $region176
      $region175: #{tpu_custom_call.1} parent=5 // pred_region
        %s1227 = ssub.s32 %s97, 1
        %s1228 = sand.u32 %s136, 1
        %s1229 = scalar_lea.sflag [#allocation3], %s1228
        %s1230 = sand.u32 %s136, 1
        %s1231 = smul.addr %s1230, 4
        %s1232 = scalar_lea.vmem [#allocation2], %s1231
        // Predicated region
        $region177: #{tpu_custom_call.1} parent=175 // pred_check
          %p1233 = pneg %p149
        $region178: #{tpu_custom_call.1} parent=175 // pred_check_branch
          %1235 = sbr.rel (%p1233) target = $region180
        $region179: #{tpu_custom_call.1} parent=175 // pred_region
          %1236 = dma.done %s1229, 64
        $region180: #{tpu_custom_call.1} parent=175 // pred_fallthru
          _
        %s1237 = sand.u32 %s102, 1
        %s1238 = scalar_lea.sflag [#allocation5], %s1237
        %s1239 = sand.u32 %s162, 1
        %s1240 = scalar_lea.vmem [#allocation4], %s1239
        // Predicated region
        $region181: #{tpu_custom_call.1} parent=175 // pred_check
          %p1241 = pneg %p175
        $region182: #{tpu_custom_call.1} parent=175 // pred_check_branch
          %1243 = sbr.rel (%p1241) target = $region184
        $region183: #{tpu_custom_call.1} parent=175 // pred_region
          %1244 = dma.done %s1238, 16
        $region184: #{tpu_custom_call.1} parent=175 // pred_fallthru
          _
        %s1245 = sand.u32 %s102, 1
        %s1246 = scalar_lea.sflag [#allocation5], %s1245
        %s1247 = sand.u32 %s214, 1
        %s1248 = scalar_lea.vmem [#allocation6], %s1247
        // Predicated region
        $region185: #{tpu_custom_call.1} parent=175 // pred_check
          %p1249 = pneg %p227
        $region186: #{tpu_custom_call.1} parent=175 // pred_check_branch
          %1251 = sbr.rel (%p1249) target = $region188
        $region187: #{tpu_custom_call.1} parent=175 // pred_region
          %1252 = dma.done %s1246, 16
        $region188: #{tpu_custom_call.1} parent=175 // pred_fallthru
          _
        // Predicated region
        $region189: #{tpu_custom_call.1} parent=175 // pred_check
          %p1253 = pneg %p248
        $region190: #{tpu_custom_call.1} parent=175 // pred_check_branch
          %1255 = sbr.rel (%p1253) target = $region192
        $region191: #{tpu_custom_call.1} parent=175 // pred_region
          %1256 = dma.done [#allocation8], 16
        $region192: #{tpu_custom_call.1} parent=175 // pred_fallthru
          _
        // Predicated region
        $region193: #{tpu_custom_call.1} parent=175 // pred_check
          %p1257 = pneg %p269
        $region194: #{tpu_custom_call.1} parent=175 // pred_check_branch
          %1259 = sbr.rel (%p1257) target = $region196
        $region195: #{tpu_custom_call.1} parent=175 // pred_region
          %1260 = dma.done [#allocation8], 16
        $region196: #{tpu_custom_call.1} parent=175 // pred_fallthru
          _
        // Predicated region
        $region197: #{tpu_custom_call.1} parent=175 // pred_check
          %p1261 = pneg %p353
        $region198: #{tpu_custom_call.1} parent=175 // pred_check_branch
          %1263 = sbr.rel (%p1261) target = $region200
        $region199: #{tpu_custom_call.1} parent=175 // pred_region
          %1264 = dma.done [#allocation11], 16
        $region200: #{tpu_custom_call.1} parent=175 // pred_fallthru
          _
        // Predicated region
        $region201: #{tpu_custom_call.1} parent=175 // pred_check
          %p1265 = pneg %p374
        $region202: #{tpu_custom_call.1} parent=175 // pred_check_branch
          %1267 = sbr.rel (%p1265) target = $region204
        $region203: #{tpu_custom_call.1} parent=175 // pred_region
          %1268 = dma.done [#allocation11], 16
        $region204: #{tpu_custom_call.1} parent=175 // pred_fallthru
          _
        // Predicated region
        $region205: #{tpu_custom_call.1} parent=175 // pred_check
          %p1269 = pneg %p395
        $region206: #{tpu_custom_call.1} parent=175 // pred_check_branch
          %1271 = sbr.rel (%p1269) target = $region208
        $region207: #{tpu_custom_call.1} parent=175 // pred_region
          %1272 = dma.done [#allocation14], 16
        $region208: #{tpu_custom_call.1} parent=175 // pred_fallthru
          _
        %p1273 = scmp.lt.s32.totalorder %s102, 1
        %s1274 = scalar_select %p1273, %s102, 1
        %s1275 = smul.addr %s1274, 2
        %s1276 = scalar_lea.vmem %s1, %s1275
        %p1277 = pneg %p123
        %p1278 = pneg %p120
        %s1279 = sand.u32 %s136, 1
        %s1280 = scalar_lea.sflag [#allocation3], %s1279
        %s1281 = sand.u32 %s136, 1
        %s1282 = smul.addr %s1281, 4
        %s1283 = scalar_lea.vmem [#allocation2], %s1282
        %p1284 = pneg %p149
        %p1285 = pneg %p146
        %s1286 = sand.u32 %s102, 1
        %s1287 = scalar_lea.sflag [#allocation5], %s1286
        %s1288 = sand.u32 %s162, 1
        %s1289 = scalar_lea.vmem [#allocation4], %s1288
        %p1290 = pneg %p175
        %p1291 = pneg %p172
        %p1292 = scmp.lt.s32.totalorder %s102, 1
        %s1293 = scalar_select %p1292, %s102, 1
        %s1294 = smul.addr %s1293, 2
        %s1295 = smul.addr %s1294, 4
        %s1296 = scalar_lea.vmem %s7, %s1295
        %p1297 = pneg %p201
        %p1298 = pneg %p198
        %s1299 = sand.u32 %s102, 1
        %s1300 = scalar_lea.sflag [#allocation5], %s1299
        %s1301 = sand.u32 %s214, 1
        %s1302 = scalar_lea.vmem [#allocation6], %s1301
        %p1303 = pneg %p227
        %p1304 = pneg %p224
        %p1305 = pneg %p248
        %p1306 = pneg %p245
        %p1307 = pneg %p269
        %p1308 = pneg %p266
        %p1309 = pneg %p290
        %p1310 = pneg %p287
        %p1311 = pneg %p311
        %p1312 = pneg %p308
        %p1313 = pneg %p332
        %p1314 = pneg %p329
        %p1315 = pneg %p353
        %p1316 = pneg %p350
        %p1317 = pneg %p374
        %p1318 = pneg %p371
        %p1319 = pneg %p395
        %p1320 = pneg %p392
        %p1321 = pneg %p416
        %p1322 = pneg %p413
        %p1323 = pneg %p437
        %p1324 = pneg %p434
        %p1325 = pneg %p458
        %p1326 = pneg %p455
        %p1327 = pneg %p479
        %p1328 = pneg %p476
        %p1329 = pneg %p500
        %p1330 = pneg %p497
        %p1331 = pneg %p521
        %p1332 = pneg %p518
        %p1333 = pneg %p542
        %p1334 = pneg %p539
        %p1335 = pneg %p563
        %p1336 = pneg %p560
        %p1337 = pneg %p584
        %p1338 = pneg %p581
        %p1339 = pneg %p605
        %p1340 = pneg %p602
        %p1341 = pneg %p626
        %p1342 = pneg %p623
        %p1343 = pneg %p647
        %p1344 = pneg %p644
        %p1345 = pneg %p668
        %p1346 = pneg %p665
        %p1347 = pneg %p689
        %p1348 = pneg %p686
        %p1349 = pneg %p710
        %p1350 = pneg %p707
        %p1351 = pneg %p731
        %p1352 = pneg %p728
        %p1353 = pneg %p752
        %p1354 = pneg %p749
        %p1355 = pneg %p773
        %p1356 = pneg %p770
        %p1357 = pneg %p794
        %p1358 = pneg %p791
        %p1359 = pneg %p815
        %p1360 = pneg %p812
        %p1361 = pneg %p836
        %p1362 = pneg %p833
        %p1363 = pneg %p857
        %p1364 = pneg %p854
        %p1365 = pneg %p878
        %p1366 = pneg %p875
        %p1367 = pneg %p899
        %p1368 = pneg %p896
        %p1369 = pneg %p920
        %p1370 = pneg %p917
        %p1371 = pneg %p941
        %p1372 = pneg %p938
        %p1373 = pneg %p967
        %p1374 = pneg %p964
        %p1375 = scmp.lt.s32.totalorder %s102, 1
        %s1376 = scalar_select %p1375, %s102, 1
        %s1377 = smul.addr %s1376, 4
        %s1378 = scalar_lea.vmem %s79, %s1377
        %p1379 = pneg %p993
        %p1380 = pneg %p990
        %p1381 = scmp.lt.s32.totalorder %s102, 1
        %s1382 = scalar_select %p1381, %s102, 1
        %s1383 = smul.addr %s1382, 4
        %s1384 = scalar_lea.vmem %s81, %s1383
        %p1385 = scmp.lt.s32.totalorder %s102, 1
        %s1386 = scalar_select %p1385, %s102, 1
        %s1387 = smul.addr %s1386, 2
        %s1388 = scalar_lea.vmem %s1, %s1387
        %p1389 = scmp.lt.s32.totalorder %s102, 1
        %s1390 = scalar_select %p1389, %s102, 1
        %s1391 = smul.addr %s1390, 2
        %s1392 = smul.addr %s1391, 4
        %s1393 = scalar_lea.vmem %s7, %s1392
        %p1394 = scmp.lt.s32.totalorder %s102, 1
        %s1395 = scalar_select %p1394, %s102, 1
        %s1396 = smul.addr %s1395, 4
        %s1397 = scalar_lea.vmem %s79, %s1396
        %p1398 = scmp.lt.s32.totalorder %s102, 1
        %s1399 = scalar_select %p1398, %s102, 1
        %s1400 = smul.addr %s1399, 4
        %s1401 = scalar_lea.vmem %s81, %s1400
        %v1403 = vld [vmem:[%s1388] sm:$0x3]
        %v1404 = vld [vmem:[%s1232] sm:$0xf]
        %v1405 = vld [vmem:[%s1240] sm:$0x1]
        %v1406 = vld [vmem:[%s1393] sm:$0xf]
        %v1407 = vld [vmem:[%s1393 + $0x4] sm:$0x3]
        %v1408 = vld [vmem:[%s1248] sm:$0x1]
        %v1409 = vld [vmem:[#allocation7] sm:$0x1]
        %v1411 = vlaneseq
        %v1412 = vshrl.u32 %v1411, 7
        %v1413 = vsub.s32 0, %v1412
        %v1414 = vrot.slane %v1409, %v1413
        %vm1416 = vcmask 64512
        %v1418 = vsel %vm1416, %v1403, 0
        %vm1420 = vcmask 1043456
        %v1422 = vsel %vm1420, %v1404, 0
        %1424 = vmatprep.subr.bf16.mxu0 0
        %1425 = vmatpush1.bf16.msra.mxu0 %v1422
        %1426 = vmatprep.subr.bf16.mxu0 0
        %1427 = vmatpush1.bf16.msra.mxu0 0
        %1428 = vmatprep.subr.bf16.mxu0 0
        %1429 = vmatpush1.bf16.msra.mxu0 0
        %1430 = vmatprep.subr.bf16.mxu0 0
        %1431 = vmatpush1.bf16.msra.mxu0 0
        %1432 = vmatprep.subr.bf16.mxu0 0
        %1433 = vmatpush1.bf16.msra.mxu0 0
        %1434 = vmatprep.subr.bf16.mxu0 0
        %1435 = vmatpush1.bf16.msra.mxu0 0
        %1436 = vmatprep.subr.bf16.mxu0 0
        %1437 = vmatpush1.bf16.msra.mxu0 0
        %1438 = vmatprep.subr.bf16.mxu0 0
        %1439 = vmatpush1.bf16.msra.mxu0 0
        %1440 = vmatprep.subr.bf16.mxu0 0
        %1441 = vmatpush1.bf16.msra.mxu0 0
        %1442 = vmatprep.subr.bf16.mxu0 0
        %1443 = vmatpush1.bf16.msra.mxu0 0
        %1444 = vmatprep.subr.bf16.mxu0 0
        %1445 = vmatpush1.bf16.msra.mxu0 0
        %1446 = vmatprep.subr.bf16.mxu0 0
        %1447 = vmatpush1.bf16.msra.mxu0 0
        %1448 = vmatprep.subr.bf16.mxu0 0
        %1449 = vmatpush1.bf16.msra.mxu0 0
        %1450 = vmatprep.subr.bf16.mxu0 0
        %1451 = vmatpush1.bf16.msra.mxu0 0
        %1452 = vmatprep.subr.bf16.mxu0 0
        %1453 = vmatpush1.bf16.msra.mxu0 0
        %1454 = vmatprep.subr.bf16.mxu0 0
        %1455 = vmatpush1.bf16.msra.mxu0 0
        %1456 = vmatprep.mubr.bf16.mxu0 0
        %1457 = vmatmul.mubr.bf16.gmra.mrb[0].mxu0 %v1418
        %v1458 = vpop.f32.mrb[0].mxu0
        %v1459 = vadd.f32 %v1414, %v1458
        %v1460 = vpop.f32.mrb[0].mxu0
        %v1461 = vpop.f32.mrb[0].mxu0
        %v1462 = vpop.f32.mrb[0].mxu0
        %1463 = vdwg.mxu0
        %v1464 = vpack.c.bf16 %v1459, %v1459
        %v1465 = vld [vmem:[%s15] sm:$0xf]
        %v1466 = vld [vmem:[%s15 + $0x4] sm:$0xf]
        %v1467 = vld [vmem:[%s15 + $0x8] sm:$0xf]
        %v1468 = vld [vmem:[%s15 + $0xc] sm:$0xf]
        %v1469 = vld [vmem:[#allocation10] sm:$0x1]
        %v1471 = vlaneseq
        %v1472 = vshrl.u32 %v1471, 7
        %v1473 = vsub.s32 0, %v1472
        %v1474 = vrot.slane %v1469, %v1473
        %v1480 = vunpack.c.l.b16 %v1465
        %v1481 = vunpack.c.l.b16 %v1466
        %v1482 = vunpack.c.l.b16 %v1467
        %v1483 = vunpack.c.l.b16 %v1468
        %v1484 = vpack.c.b16 %v1481, %v1480
        %v1485 = vpack.c.b16 %v1483, %v1482
        %vm1488 = vcmask 261120
        %v1490 = vsel %vm1488, %v1464, 0
        %1492 = vmatprep.subr.bf16.mxu0 0
        %1493 = vmatpush1.bf16.msra.mxu0 %v1484
        %1494 = vmatprep.subr.bf16.mxu0 0
        %1495 = vmatpush1.bf16.msra.mxu0 %v1485
        %1496 = vmatprep.subr.bf16.mxu0 0
        %1497 = vmatpush1.bf16.msra.mxu0 0
        %1498 = vmatprep.subr.bf16.mxu0 0
        %1499 = vmatpush1.bf16.msra.mxu0 0
        %1500 = vmatprep.subr.bf16.mxu0 0
        %1501 = vmatpush1.bf16.msra.mxu0 0
        %1502 = vmatprep.subr.bf16.mxu0 0
        %1503 = vmatpush1.bf16.msra.mxu0 0
        %1504 = vmatprep.subr.bf16.mxu0 0
        %1505 = vmatpush1.bf16.msra.mxu0 0
        %1506 = vmatprep.subr.bf16.mxu0 0
        %1507 = vmatpush1.bf16.msra.mxu0 0
        %1508 = vmatprep.subr.bf16.mxu0 0
        %1509 = vmatpush1.bf16.msra.mxu0 0
        %1510 = vmatprep.subr.bf16.mxu0 0
        %1511 = vmatpush1.bf16.msra.mxu0 0
        %1512 = vmatprep.subr.bf16.mxu0 0
        %1513 = vmatpush1.bf16.msra.mxu0 0
        %1514 = vmatprep.subr.bf16.mxu0 0
        %1515 = vmatpush1.bf16.msra.mxu0 0
        %1516 = vmatprep.subr.bf16.mxu0 0
        %1517 = vmatpush1.bf16.msra.mxu0 0
        %1518 = vmatprep.subr.bf16.mxu0 0
        %1519 = vmatpush1.bf16.msra.mxu0 0
        %1520 = vmatprep.subr.bf16.mxu0 0
        %1521 = vmatpush1.bf16.msra.mxu0 0
        %1522 = vmatprep.subr.bf16.mxu0 0
        %1523 = vmatpush1.bf16.msra.mxu0 0
        %1524 = vmatprep.mubr.bf16.mxu0 0
        %1525 = vmatmul.mubr.bf16.gmra.mrb[0].mxu0 %v1490
        %v1526 = vpop.f32.mrb[0].mxu0
        %v1527 = vadd.f32 %v1474, %v1526
        %v1528 = vpop.f32.mrb[0].mxu0
        %v1529 = vpop.f32.mrb[0].mxu0
        %v1530 = vpop.f32.mrb[0].mxu0
        %1531 = vdwg.mxu0
        %v1532 = vmul.f32 %v1527, 0.35355338
        %v1533 = vld [vmem:[%s17] sm:$0xf]
        %v1534 = vld [vmem:[%s17 + $0x4] sm:$0xf]
        %v1535 = vld [vmem:[%s17 + $0x8] sm:$0xf]
        %v1536 = vld [vmem:[%s17 + $0xc] sm:$0xf]
        %v1537 = vld [vmem:[#allocation12] sm:$0x1]
        %v1539 = vlaneseq
        %v1540 = vshrl.u32 %v1539, 7
        %v1541 = vsub.s32 0, %v1540
        %v1542 = vrot.slane %v1537, %v1541
        %v1548 = vunpack.c.l.b16 %v1533
        %v1549 = vunpack.c.l.b16 %v1534
        %v1550 = vunpack.c.l.b16 %v1535
        %v1551 = vunpack.c.l.b16 %v1536
        %v1552 = vpack.c.b16 %v1549, %v1548
        %v1553 = vpack.c.b16 %v1551, %v1550
        %v1556 = vsel %vm1488, %v1404, 0
        %1558 = vmatprep.subr.bf16.mxu0 0
        %1559 = vmatpush1.bf16.msra.mxu0 %v1552
        %1560 = vmatprep.subr.bf16.mxu0 0
        %1561 = vmatpush1.bf16.msra.mxu0 %v1553
        %1562 = vmatprep.subr.bf16.mxu0 0
        %1563 = vmatpush1.bf16.msra.mxu0 0
        %1564 = vmatprep.subr.bf16.mxu0 0
        %1565 = vmatpush1.bf16.msra.mxu0 0
        %1566 = vmatprep.subr.bf16.mxu0 0
        %1567 = vmatpush1.bf16.msra.mxu0 0
        %1568 = vmatprep.subr.bf16.mxu0 0
        %1569 = vmatpush1.bf16.msra.mxu0 0
        %1570 = vmatprep.subr.bf16.mxu0 0
        %1571 = vmatpush1.bf16.msra.mxu0 0
        %1572 = vmatprep.subr.bf16.mxu0 0
        %1573 = vmatpush1.bf16.msra.mxu0 0
        %1574 = vmatprep.subr.bf16.mxu0 0
        %1575 = vmatpush1.bf16.msra.mxu0 0
        %1576 = vmatprep.subr.bf16.mxu0 0
        %1577 = vmatpush1.bf16.msra.mxu0 0
        %1578 = vmatprep.subr.bf16.mxu0 0
        %1579 = vmatpush1.bf16.msra.mxu0 0
        %1580 = vmatprep.subr.bf16.mxu0 0
        %1581 = vmatpush1.bf16.msra.mxu0 0
        %1582 = vmatprep.subr.bf16.mxu0 0
        %1583 = vmatpush1.bf16.msra.mxu0 0
        %1584 = vmatprep.subr.bf16.mxu0 0
        %1585 = vmatpush1.bf16.msra.mxu0 0
        %1586 = vmatprep.subr.bf16.mxu0 0
        %1587 = vmatpush1.bf16.msra.mxu0 0
        %1588 = vmatprep.subr.bf16.mxu0 0
        %1589 = vmatpush1.bf16.msra.mxu0 0
        %1590 = vmatprep.mubr.bf16.mxu0 0
        %1591 = vmatmul.mubr.bf16.gmra.mrb[0].mxu0 %v1556
        %v1592 = vpop.f32.mrb[0].mxu0
        %v1593 = vadd.f32 %v1542, %v1592
        %v1594 = vpop.f32.mrb[0].mxu0
        %v1595 = vpop.f32.mrb[0].mxu0
        %v1596 = vpop.f32.mrb[0].mxu0
        %1597 = vdwg.mxu0
        %v1598 = vld [vmem:[%s19] sm:$0xf]
        %v1599 = vld [vmem:[%s19 + $0x4] sm:$0xf]
        %v1600 = vld [vmem:[%s19 + $0x8] sm:$0xf]
        %v1601 = vld [vmem:[%s19 + $0xc] sm:$0xf]
        %v1602 = vld [vmem:[#allocation13] sm:$0x1]
        %v1604 = vlaneseq
        %v1605 = vshrl.u32 %v1604, 7
        %v1606 = vsub.s32 0, %v1605
        %v1607 = vrot.slane %v1602, %v1606
        %v1613 = vunpack.c.l.b16 %v1598
        %v1614 = vunpack.c.l.b16 %v1599
        %v1615 = vunpack.c.l.b16 %v1600
        %v1616 = vunpack.c.l.b16 %v1601
        %v1617 = vpack.c.b16 %v1614, %v1613
        %v1618 = vpack.c.b16 %v1616, %v1615
        %1621 = vmatprep.subr.bf16.mxu0 0
        %1622 = vmatpush1.bf16.msra.mxu0 %v1617
        %1623 = vmatprep.subr.bf16.mxu0 0
        %1624 = vmatpush1.bf16.msra.mxu0 %v1618
        %1625 = vmatprep.subr.bf16.mxu0 0
        %1626 = vmatpush1.bf16.msra.mxu0 0
        %1627 = vmatprep.subr.bf16.mxu0 0
        %1628 = vmatpush1.bf16.msra.mxu0 0
        %1629 = vmatprep.subr.bf16.mxu0 0
        %1630 = vmatpush1.bf16.msra.mxu0 0
        %1631 = vmatprep.subr.bf16.mxu0 0
        %1632 = vmatpush1.bf16.msra.mxu0 0
        %1633 = vmatprep.subr.bf16.mxu0 0
        %1634 = vmatpush1.bf16.msra.mxu0 0
        %1635 = vmatprep.subr.bf16.mxu0 0
        %1636 = vmatpush1.bf16.msra.mxu0 0
        %1637 = vmatprep.subr.bf16.mxu0 0
        %1638 = vmatpush1.bf16.msra.mxu0 0
        %1639 = vmatprep.subr.bf16.mxu0 0
        %1640 = vmatpush1.bf16.msra.mxu0 0
        %1641 = vmatprep.subr.bf16.mxu0 0
        %1642 = vmatpush1.bf16.msra.mxu0 0
        %1643 = vmatprep.subr.bf16.mxu0 0
        %1644 = vmatpush1.bf16.msra.mxu0 0
        %1645 = vmatprep.subr.bf16.mxu0 0
        %1646 = vmatpush1.bf16.msra.mxu0 0
        %1647 = vmatprep.subr.bf16.mxu0 0
        %1648 = vmatpush1.bf16.msra.mxu0 0
        %1649 = vmatprep.subr.bf16.mxu0 0
        %1650 = vmatpush1.bf16.msra.mxu0 0
        %1651 = vmatprep.subr.bf16.mxu0 0
        %1652 = vmatpush1.bf16.msra.mxu0 0
        %1653 = vmatprep.mubr.bf16.mxu0 0
        %1654 = vmatmul.mubr.bf16.gmra.mrb[0].mxu0 %v1556
        %v1655 = vpop.f32.mrb[0].mxu0
        %v1656 = vadd.f32 %v1607, %v1655
        %v1657 = vpop.f32.mrb[0].mxu0
        %v1658 = vpop.f32.mrb[0].mxu0
        %v1659 = vpop.f32.mrb[0].mxu0
        %1660 = vdwg.mxu0
        %v1661 = vpack.c.bf16 %v1532, %v1532
        %1663 = vrot.lane.b32.xlu0 %v1661, 120
        %v1664 = vpop.permute.xlu0 %1663
        %1665 = vrot.lane.b32.xlu0 %v1661, 112
        %v1666 = vpop.permute.xlu0 %1665
        %1667 = vrot.lane.b32.xlu0 %v1661, 104
        %v1668 = vpop.permute.xlu0 %1667
        %v1670 = vcombine.low %v1661, %v1666
        %v1672 = vunpack.c.l.s4 1934713408
        %v1673 = vunpack.c.0.s8 %v1672
        %v1674 = vlaneseq
        %v1675 = vshrl.u32 %v1674, 7
        %v1676 = vsub.s32 %v1673, %v1675
        %v1677 = vrot.slane %v1670, %v1676
        %v1678 = vcombine.high %v1677, 0
        %v1681 = vcombine.low %v1664, %v1668
        %v1683 = vunpack.c.l.s4 1934713408
        %v1684 = vunpack.c.0.s8 %v1683
        %v1685 = vlaneseq
        %v1686 = vshrl.u32 %v1685, 7
        %v1687 = vsub.s32 %v1684, %v1686
        %v1688 = vrot.slane %v1681, %v1687
        %v1689 = vcombine.high %v1688, 0
        %v1692 = vpack.i.b16 %v1688, %v1677
        %v1693 = vshrl.u32 %v1677, 16
        %v1694 = vshrl.u32 %v1688, 16
        %v1695 = vpack.i.b16 %v1694, %v1693
        %v1698 = vpack.i.b16 %v1689, %v1678
        %v1701 = vcombine.low %v1692, %v1698
        %v1703 = vunpack.c.l.s4 1934713408
        %v1704 = vunpack.c.0.s8 %v1703
        %v1705 = vlaneseq
        %v1706 = vshrl.u32 %v1705, 7
        %v1707 = vsub.s32 %v1704, %v1706
        %v1708 = vrot.slane %v1701, %v1707
        %v1709 = vcombine.high %v1708, 0
        %v1712 = vunpack.c.l.s4 1934713408
        %v1713 = vunpack.c.0.s8 %v1712
        %v1714 = vlaneseq
        %v1715 = vshrl.u32 %v1714, 7
        %v1716 = vsub.s32 %v1713, %v1715
        %v1717 = vrot.slane %v1695, %v1716
        %v1718 = vcombine.high %v1717, 0
        %v1721 = vpack.i.b16 %v1717, %v1708
        %v1722 = vshrl.u32 %v1708, 16
        %v1723 = vshrl.u32 %v1717, 16
        %v1724 = vpack.i.b16 %v1723, %v1722
        %v1727 = vpack.i.b16 %v1718, %v1709
        %v1728 = vshrl.u32 %v1709, 16
        %v1729 = vshrl.u32 %v1718, 16
        %v1730 = vpack.i.b16 %v1729, %v1728
        %v1731 = vpack.c.bf16 %v1593, %v1593
        %1733 = vrot.lane.b32.xlu0 %v1731, 120
        %v1734 = vpop.permute.xlu0 %1733
        %1735 = vrot.lane.b32.xlu0 %v1731, 112
        %v1736 = vpop.permute.xlu0 %1735
        %1737 = vrot.lane.b32.xlu0 %v1731, 104
        %v1738 = vpop.permute.xlu0 %1737
        %v1740 = vunpack.c.l.s4 1983009808
        %v1741 = vunpack.c.0.s8 %v1740
        %v1742 = vlaneseq
        %v1743 = vshrl.u32 %v1742, 7
        %v1744 = vsub.s32 %v1741, %v1743
        %v1745 = vrot.slane %v1731, %v1744
        %v1748 = vunpack.c.l.s4 1983009808
        %v1749 = vunpack.c.0.s8 %v1748
        %v1750 = vlaneseq
        %v1751 = vshrl.u32 %v1750, 7
        %v1752 = vsub.s32 %v1749, %v1751
        %v1753 = vrot.slane %v1736, %v1752
        %v1754 = vcombine.low %v1745, %v1753
        %v1755 = vcombine.high %v1745, %v1753
        %v1757 = vunpack.c.l.s4 1934713408
        %v1758 = vunpack.c.0.s8 %v1757
        %v1759 = vlaneseq
        %v1760 = vshrl.u32 %v1759, 7
        %v1761 = vsub.s32 %v1758, %v1760
        %v1762 = vrot.slane %v1754, %v1761
        %v1764 = vunpack.c.l.s4 1934713408
        %v1765 = vunpack.c.0.s8 %v1764
        %v1766 = vlaneseq
        %v1767 = vshrl.u32 %v1766, 7
        %v1768 = vsub.s32 %v1765, %v1767
        %v1769 = vrot.slane %v1755, %v1768
        %v1770 = vcombine.high %v1762, 0
        %v1771 = vcombine.high %v1769, 0
        %v1774 = vunpack.c.l.s4 1983009808
        %v1775 = vunpack.c.0.s8 %v1774
        %v1776 = vlaneseq
        %v1777 = vshrl.u32 %v1776, 7
        %v1778 = vsub.s32 %v1775, %v1777
        %v1779 = vrot.slane %v1734, %v1778
        %v1782 = vunpack.c.l.s4 1983009808
        %v1783 = vunpack.c.0.s8 %v1782
        %v1784 = vlaneseq
        %v1785 = vshrl.u32 %v1784, 7
        %v1786 = vsub.s32 %v1783, %v1785
        %v1787 = vrot.slane %v1738, %v1786
        %v1788 = vcombine.low %v1779, %v1787
        %v1789 = vcombine.high %v1779, %v1787
        %v1791 = vunpack.c.l.s4 1934713408
        %v1792 = vunpack.c.0.s8 %v1791
        %v1793 = vlaneseq
        %v1794 = vshrl.u32 %v1793, 7
        %v1795 = vsub.s32 %v1792, %v1794
        %v1796 = vrot.slane %v1788, %v1795
        %v1798 = vunpack.c.l.s4 1934713408
        %v1799 = vunpack.c.0.s8 %v1798
        %v1800 = vlaneseq
        %v1801 = vshrl.u32 %v1800, 7
        %v1802 = vsub.s32 %v1799, %v1801
        %v1803 = vrot.slane %v1789, %v1802
        %v1804 = vcombine.high %v1796, 0
        %v1805 = vcombine.high %v1803, 0
        %v1808 = vpack.i.b16 %v1796, %v1762
        %v1810 = vshrl.u32 %v1762, 16
        %v1811 = vshrl.u32 %v1796, 16
        %v1812 = vpack.i.b16 %v1811, %v1810
        %v1816 = vpack.i.b16 %v1804, %v1770
        %v1818 = vshrl.u32 %v1770, 16
        %v1819 = vshrl.u32 %v1804, 16
        %v1820 = vpack.i.b16 %v1819, %v1818
        %v1824 = vpack.i.b16 %v1803, %v1769
        %v1826 = vshrl.u32 %v1769, 16
        %v1827 = vshrl.u32 %v1803, 16
        %v1828 = vpack.i.b16 %v1827, %v1826
        %v1832 = vpack.i.b16 %v1805, %v1771
        %v1834 = vshrl.u32 %v1771, 16
        %v1835 = vshrl.u32 %v1805, 16
        %v1836 = vpack.i.b16 %v1835, %v1834
        %v1838 = vcombine.low %v1808, %v1824
        %v1840 = vunpack.c.l.s4 1983009808
        %v1841 = vunpack.c.0.s8 %v1840
        %v1842 = vlaneseq
        %v1843 = vshrl.u32 %v1842, 7
        %v1844 = vsub.s32 %v1841, %v1843
        %v1845 = vrot.slane %v1838, %v1844
        %v1846 = vcombine.low %v1816, %v1832
        %v1848 = vunpack.c.l.s4 1983009808
        %v1849 = vunpack.c.0.s8 %v1848
        %v1850 = vlaneseq
        %v1851 = vshrl.u32 %v1850, 7
        %v1852 = vsub.s32 %v1849, %v1851
        %v1853 = vrot.slane %v1846, %v1852
        %v1854 = vcombine.low %v1845, %v1853
        %v1856 = vunpack.c.l.s4 1934713408
        %v1857 = vunpack.c.0.s8 %v1856
        %v1858 = vlaneseq
        %v1859 = vshrl.u32 %v1858, 7
        %v1860 = vsub.s32 %v1857, %v1859
        %v1861 = vrot.slane %v1854, %v1860
        %v1862 = vcombine.high %v1861, 0
        %v1863 = vcombine.low %v1812, %v1828
        %v1865 = vunpack.c.l.s4 1983009808
        %v1866 = vunpack.c.0.s8 %v1865
        %v1867 = vlaneseq
        %v1868 = vshrl.u32 %v1867, 7
        %v1869 = vsub.s32 %v1866, %v1868
        %v1870 = vrot.slane %v1863, %v1869
        %v1871 = vcombine.low %v1820, %v1836
        %v1873 = vunpack.c.l.s4 1983009808
        %v1874 = vunpack.c.0.s8 %v1873
        %v1875 = vlaneseq
        %v1876 = vshrl.u32 %v1875, 7
        %v1877 = vsub.s32 %v1874, %v1876
        %v1878 = vrot.slane %v1871, %v1877
        %v1879 = vcombine.low %v1870, %v1878
        %v1881 = vunpack.c.l.s4 1934713408
        %v1882 = vunpack.c.0.s8 %v1881
        %v1883 = vlaneseq
        %v1884 = vshrl.u32 %v1883, 7
        %v1885 = vsub.s32 %v1882, %v1884
        %v1886 = vrot.slane %v1879, %v1885
        %v1887 = vcombine.high %v1886, 0
        %v1890 = vpack.i.b16 %v1886, %v1861
        %v1891 = vshrl.u32 %v1861, 16
        %v1892 = vshrl.u32 %v1886, 16
        %v1893 = vpack.i.b16 %v1892, %v1891
        %v1896 = vpack.i.b16 %v1887, %v1862
        %v1897 = vshrl.u32 %v1862, 16
        %v1898 = vshrl.u32 %v1887, 16
        %v1899 = vpack.i.b16 %v1898, %v1897
        %v1900 = vpack.c.bf16 %v1656, %v1656
        %1902 = vrot.lane.b32.xlu0 %v1900, 120
        %v1903 = vpop.permute.xlu0 %1902
        %1904 = vrot.lane.b32.xlu0 %v1900, 112
        %v1905 = vpop.permute.xlu0 %1904
        %1906 = vrot.lane.b32.xlu0 %v1900, 104
        %v1907 = vpop.permute.xlu0 %1906
        %v1909 = vunpack.c.l.s4 1983009808
        %v1910 = vunpack.c.0.s8 %v1909
        %v1911 = vlaneseq
        %v1912 = vshrl.u32 %v1911, 7
        %v1913 = vsub.s32 %v1910, %v1912
        %v1914 = vrot.slane %v1900, %v1913
        %v1917 = vunpack.c.l.s4 1983009808
        %v1918 = vunpack.c.0.s8 %v1917
        %v1919 = vlaneseq
        %v1920 = vshrl.u32 %v1919, 7
        %v1921 = vsub.s32 %v1918, %v1920
        %v1922 = vrot.slane %v1905, %v1921
        %v1923 = vcombine.low %v1914, %v1922
        %v1924 = vcombine.high %v1914, %v1922
        %v1926 = vunpack.c.l.s4 1934713408
        %v1927 = vunpack.c.0.s8 %v1926
        %v1928 = vlaneseq
        %v1929 = vshrl.u32 %v1928, 7
        %v1930 = vsub.s32 %v1927, %v1929
        %v1931 = vrot.slane %v1923, %v1930
        %v1933 = vunpack.c.l.s4 1934713408
        %v1934 = vunpack.c.0.s8 %v1933
        %v1935 = vlaneseq
        %v1936 = vshrl.u32 %v1935, 7
        %v1937 = vsub.s32 %v1934, %v1936
        %v1938 = vrot.slane %v1924, %v1937
        %v1939 = vcombine.high %v1931, 0
        %v1940 = vcombine.high %v1938, 0
        %v1943 = vunpack.c.l.s4 1983009808
        %v1944 = vunpack.c.0.s8 %v1943
        %v1945 = vlaneseq
        %v1946 = vshrl.u32 %v1945, 7
        %v1947 = vsub.s32 %v1944, %v1946
        %v1948 = vrot.slane %v1903, %v1947
        %v1951 = vunpack.c.l.s4 1983009808
        %v1952 = vunpack.c.0.s8 %v1951
        %v1953 = vlaneseq
        %v1954 = vshrl.u32 %v1953, 7
        %v1955 = vsub.s32 %v1952, %v1954
        %v1956 = vrot.slane %v1907, %v1955
        %v1957 = vcombine.low %v1948, %v1956
        %v1958 = vcombine.high %v1948, %v1956
        %v1960 = vunpack.c.l.s4 1934713408
        %v1961 = vunpack.c.0.s8 %v1960
        %v1962 = vlaneseq
        %v1963 = vshrl.u32 %v1962, 7
        %v1964 = vsub.s32 %v1961, %v1963
        %v1965 = vrot.slane %v1957, %v1964
        %v1967 = vunpack.c.l.s4 1934713408
        %v1968 = vunpack.c.0.s8 %v1967
        %v1969 = vlaneseq
        %v1970 = vshrl.u32 %v1969, 7
        %v1971 = vsub.s32 %v1968, %v1970
        %v1972 = vrot.slane %v1958, %v1971
        %v1973 = vcombine.high %v1965, 0
        %v1974 = vcombine.high %v1972, 0
        %v1977 = vpack.i.b16 %v1965, %v1931
        %v1979 = vshrl.u32 %v1931, 16
        %v1980 = vshrl.u32 %v1965, 16
        %v1981 = vpack.i.b16 %v1980, %v1979
        %v1985 = vpack.i.b16 %v1973, %v1939
        %v1987 = vshrl.u32 %v1939, 16
        %v1988 = vshrl.u32 %v1973, 16
        %v1989 = vpack.i.b16 %v1988, %v1987
        %v1993 = vpack.i.b16 %v1972, %v1938
        %v1995 = vshrl.u32 %v1938, 16
        %v1996 = vshrl.u32 %v1972, 16
        %v1997 = vpack.i.b16 %v1996, %v1995
        %v2001 = vpack.i.b16 %v1974, %v1940
        %v2003 = vshrl.u32 %v1940, 16
        %v2004 = vshrl.u32 %v1974, 16
        %v2005 = vpack.i.b16 %v2004, %v2003
        %v2007 = vcombine.low %v1977, %v1993
        %v2009 = vunpack.c.l.s4 1983009808
        %v2010 = vunpack.c.0.s8 %v2009
        %v2011 = vlaneseq
        %v2012 = vshrl.u32 %v2011, 7
        %v2013 = vsub.s32 %v2010, %v2012
        %v2014 = vrot.slane %v2007, %v2013
        %v2015 = vcombine.low %v1985, %v2001
        %v2017 = vunpack.c.l.s4 1983009808
        %v2018 = vunpack.c.0.s8 %v2017
        %v2019 = vlaneseq
        %v2020 = vshrl.u32 %v2019, 7
        %v2021 = vsub.s32 %v2018, %v2020
        %v2022 = vrot.slane %v2015, %v2021
        %v2023 = vcombine.low %v2014, %v2022
        %v2025 = vunpack.c.l.s4 1934713408
        %v2026 = vunpack.c.0.s8 %v2025
        %v2027 = vlaneseq
        %v2028 = vshrl.u32 %v2027, 7
        %v2029 = vsub.s32 %v2026, %v2028
        %v2030 = vrot.slane %v2023, %v2029
        %v2031 = vcombine.high %v2030, 0
        %v2032 = vcombine.low %v1981, %v1997
        %v2034 = vunpack.c.l.s4 1983009808
        %v2035 = vunpack.c.0.s8 %v2034
        %v2036 = vlaneseq
        %v2037 = vshrl.u32 %v2036, 7
        %v2038 = vsub.s32 %v2035, %v2037
        %v2039 = vrot.slane %v2032, %v2038
        %v2040 = vcombine.low %v1989, %v2005
        %v2042 = vunpack.c.l.s4 1983009808
        %v2043 = vunpack.c.0.s8 %v2042
        %v2044 = vlaneseq
        %v2045 = vshrl.u32 %v2044, 7
        %v2046 = vsub.s32 %v2043, %v2045
        %v2047 = vrot.slane %v2040, %v2046
        %v2048 = vcombine.low %v2039, %v2047
        %v2050 = vunpack.c.l.s4 1934713408
        %v2051 = vunpack.c.0.s8 %v2050
        %v2052 = vlaneseq
        %v2053 = vshrl.u32 %v2052, 7
        %v2054 = vsub.s32 %v2051, %v2053
        %v2055 = vrot.slane %v2048, %v2054
        %v2056 = vcombine.high %v2055, 0
        %v2059 = vpack.i.b16 %v2055, %v2030
        %v2060 = vshrl.u32 %v2030, 16
        %v2061 = vshrl.u32 %v2055, 16
        %v2062 = vpack.i.b16 %v2061, %v2060
        %v2065 = vpack.i.b16 %v2056, %v2031
        %v2066 = vshrl.u32 %v2031, 16
        %v2067 = vshrl.u32 %v2056, 16
        %v2068 = vpack.i.b16 %v2067, %v2066
        %vm2069 = vcmp.ne.f32.partialorder %v1405, 0.0
        %v2070 = vsel %vm2069, -1e+09, 0.0
        %v2072 = vlaneseq
        %v2073 = vshrl.u32 %v2072, 7
        %v2074 = vsub.s32 0, %v2073
        %v2075 = vrot.slane %v2070, %v2074
        %v2078 = vsel %vm1416, %v1721, 0
        %v2081 = vsel %vm1416, %v1890, 0
        %2083 = vmatprep.subr.bf16.mxu0 0
        %2084 = vmatpush1.bf16.xpose.msra.mxu0 %v2081
        %2085 = vmatprep.subr.bf16.mxu0 0
        %2086 = vmatpush1.bf16.xpose.msra.mxu0 0
        %2087 = vmatprep.subr.bf16.mxu0 0
        %2088 = vmatpush1.bf16.xpose.msra.mxu0 0
        %2089 = vmatprep.subr.bf16.mxu0 0
        %2090 = vmatpush1.bf16.xpose.msra.mxu0 0
        %2091 = vmatprep.subr.bf16.mxu0 0
        %2092 = vmatpush1.bf16.xpose.msra.mxu0 0
        %2093 = vmatprep.subr.bf16.mxu0 0
        %2094 = vmatpush1.bf16.xpose.msra.mxu0 0
        %2095 = vmatprep.subr.bf16.mxu0 0
        %2096 = vmatpush1.bf16.xpose.msra.mxu0 0
        %2097 = vmatprep.subr.bf16.mxu0 0
        %2098 = vmatpush1.bf16.xpose.msra.mxu0 0
        %2099 = vmatprep.subr.bf16.mxu0 0
        %2100 = vmatpush1.bf16.xpose.msra.mxu0 0
        %2101 = vmatprep.subr.bf16.mxu0 0
        %2102 = vmatpush1.bf16.xpose.msra.mxu0 0
        %2103 = vmatprep.subr.bf16.mxu0 0
        %2104 = vmatpush1.bf16.xpose.msra.mxu0 0
        %2105 = vmatprep.subr.bf16.mxu0 0
        %2106 = vmatpush1.bf16.xpose.msra.mxu0 0
        %2107 = vmatprep.subr.bf16.mxu0 0
        %2108 = vmatpush1.bf16.xpose.msra.mxu0 0
        %2109 = vmatprep.subr.bf16.mxu0 0
        %2110 = vmatpush1.bf16.xpose.msra.mxu0 0
        %2111 = vmatprep.subr.bf16.mxu0 0
        %2112 = vmatpush1.bf16.xpose.msra.mxu0 0
        %2113 = vmatprep.subr.bf16.mxu0 0
        %2114 = vmatpush1.bf16.xpose.msra.mxu0 0
        %2115 = vmatprep.mubr.bf16.mxu0 0
        %2116 = vmatmul.mubr.bf16.gmra.mrb[0].mxu0 %v2078
        %v2117 = vpop.f32.mrb[0].mxu0
        %v2118 = vadd.f32 %v2075, %v2117
        %v2119 = vpop.f32.mrb[0].mxu0
        %v2120 = vpop.f32.mrb[0].mxu0
        %v2121 = vpop.f32.mrb[0].mxu0
        %2122 = vdwg.mxu0
        %v2124 = vsel %vm1416, %v1724, 0
        %v2127 = vsel %vm1416, %v1893, 0
        %2129 = vmatprep.subr.bf16.mxu0 0
        %2130 = vmatpush1.bf16.xpose.msra.mxu0 %v2127
        %2131 = vmatprep.subr.bf16.mxu0 0
        %2132 = vmatpush1.bf16.xpose.msra.mxu0 0
        %2133 = vmatprep.subr.bf16.mxu0 0
        %2134 = vmatpush1.bf16.xpose.msra.mxu0 0
        %2135 = vmatprep.subr.bf16.mxu0 0
        %2136 = vmatpush1.bf16.xpose.msra.mxu0 0
        %2137 = vmatprep.subr.bf16.mxu0 0
        %2138 = vmatpush1.bf16.xpose.msra.mxu0 0
        %2139 = vmatprep.subr.bf16.mxu0 0
        %2140 = vmatpush1.bf16.xpose.msra.mxu0 0
        %2141 = vmatprep.subr.bf16.mxu0 0
        %2142 = vmatpush1.bf16.xpose.msra.mxu0 0
        %2143 = vmatprep.subr.bf16.mxu0 0
        %2144 = vmatpush1.bf16.xpose.msra.mxu0 0
        %2145 = vmatprep.subr.bf16.mxu0 0
        %2146 = vmatpush1.bf16.xpose.msra.mxu0 0
        %2147 = vmatprep.subr.bf16.mxu0 0
        %2148 = vmatpush1.bf16.xpose.msra.mxu0 0
        %2149 = vmatprep.subr.bf16.mxu0 0
        %2150 = vmatpush1.bf16.xpose.msra.mxu0 0
        %2151 = vmatprep.subr.bf16.mxu0 0
        %2152 = vmatpush1.bf16.xpose.msra.mxu0 0
        %2153 = vmatprep.subr.bf16.mxu0 0
        %2154 = vmatpush1.bf16.xpose.msra.mxu0 0
        %2155 = vmatprep.subr.bf16.mxu0 0
        %2156 = vmatpush1.bf16.xpose.msra.mxu0 0
        %2157 = vmatprep.subr.bf16.mxu0 0
        %2158 = vmatpush1.bf16.xpose.msra.mxu0 0
        %2159 = vmatprep.subr.bf16.mxu0 0
        %2160 = vmatpush1.bf16.xpose.msra.mxu0 0
        %2161 = vmatprep.mubr.bf16.mxu0 0
        %2162 = vmatmul.mubr.bf16.gmra.mrb[0].mxu0 %v2124
        %v2163 = vpop.f32.mrb[0].mxu0
        %v2164 = vadd.f32 %v2075, %v2163
        %v2165 = vpop.f32.mrb[0].mxu0
        %v2166 = vpop.f32.mrb[0].mxu0
        %v2167 = vpop.f32.mrb[0].mxu0
        %2168 = vdwg.mxu0
        %v2170 = vsel %vm1416, %v1727, 0
        %v2173 = vsel %vm1416, %v1896, 0
        %2175 = vmatprep.subr.bf16.mxu0 0
        %2176 = vmatpush1.bf16.xpose.msra.mxu0 %v2173
        %2177 = vmatprep.subr.bf16.mxu0 0
        %2178 = vmatpush1.bf16.xpose.msra.mxu0 0
        %2179 = vmatprep.subr.bf16.mxu0 0
        %2180 = vmatpush1.bf16.xpose.msra.mxu0 0
        %2181 = vmatprep.subr.bf16.mxu0 0
        %2182 = vmatpush1.bf16.xpose.msra.mxu0 0
        %2183 = vmatprep.subr.bf16.mxu0 0
        %2184 = vmatpush1.bf16.xpose.msra.mxu0 0
        %2185 = vmatprep.subr.bf16.mxu0 0
        %2186 = vmatpush1.bf16.xpose.msra.mxu0 0
        %2187 = vmatprep.subr.bf16.mxu0 0
        %2188 = vmatpush1.bf16.xpose.msra.mxu0 0
        %2189 = vmatprep.subr.bf16.mxu0 0
        %2190 = vmatpush1.bf16.xpose.msra.mxu0 0
        %2191 = vmatprep.subr.bf16.mxu0 0
        %2192 = vmatpush1.bf16.xpose.msra.mxu0 0
        %2193 = vmatprep.subr.bf16.mxu0 0
        %2194 = vmatpush1.bf16.xpose.msra.mxu0 0
        %2195 = vmatprep.subr.bf16.mxu0 0
        %2196 = vmatpush1.bf16.xpose.msra.mxu0 0
        %2197 = vmatprep.subr.bf16.mxu0 0
        %2198 = vmatpush1.bf16.xpose.msra.mxu0 0
        %2199 = vmatprep.subr.bf16.mxu0 0
        %2200 = vmatpush1.bf16.xpose.msra.mxu0 0
        %2201 = vmatprep.subr.bf16.mxu0 0
        %2202 = vmatpush1.bf16.xpose.msra.mxu0 0
        %2203 = vmatprep.subr.bf16.mxu0 0
        %2204 = vmatpush1.bf16.xpose.msra.mxu0 0
        %2205 = vmatprep.subr.bf16.mxu0 0
        %2206 = vmatpush1.bf16.xpose.msra.mxu0 0
        %2207 = vmatprep.mubr.bf16.mxu0 0
        %2208 = vmatmul.mubr.bf16.gmra.mrb[0].mxu0 %v2170
        %v2209 = vpop.f32.mrb[0].mxu0
        %v2210 = vadd.f32 %v2075, %v2209
        %v2211 = vpop.f32.mrb[0].mxu0
        %v2212 = vpop.f32.mrb[0].mxu0
        %v2213 = vpop.f32.mrb[0].mxu0
        %2214 = vdwg.mxu0
        %v2216 = vsel %vm1416, %v1730, 0
        %v2219 = vsel %vm1416, %v1899, 0
        %2221 = vmatprep.subr.bf16.mxu0 0
        %2222 = vmatpush1.bf16.xpose.msra.mxu0 %v2219
        %2223 = vmatprep.subr.bf16.mxu0 0
        %2224 = vmatpush1.bf16.xpose.msra.mxu0 0
        %2225 = vmatprep.subr.bf16.mxu0 0
        %2226 = vmatpush1.bf16.xpose.msra.mxu0 0
        %2227 = vmatprep.subr.bf16.mxu0 0
        %2228 = vmatpush1.bf16.xpose.msra.mxu0 0
        %2229 = vmatprep.subr.bf16.mxu0 0
        %2230 = vmatpush1.bf16.xpose.msra.mxu0 0
        %2231 = vmatprep.subr.bf16.mxu0 0
        %2232 = vmatpush1.bf16.xpose.msra.mxu0 0
        %2233 = vmatprep.subr.bf16.mxu0 0
        %2234 = vmatpush1.bf16.xpose.msra.mxu0 0
        %2235 = vmatprep.subr.bf16.mxu0 0
        %2236 = vmatpush1.bf16.xpose.msra.mxu0 0
        %2237 = vmatprep.subr.bf16.mxu0 0
        %2238 = vmatpush1.bf16.xpose.msra.mxu0 0
        %2239 = vmatprep.subr.bf16.mxu0 0
        %2240 = vmatpush1.bf16.xpose.msra.mxu0 0
        %2241 = vmatprep.subr.bf16.mxu0 0
        %2242 = vmatpush1.bf16.xpose.msra.mxu0 0
        %2243 = vmatprep.subr.bf16.mxu0 0
        %2244 = vmatpush1.bf16.xpose.msra.mxu0 0
        %2245 = vmatprep.subr.bf16.mxu0 0
        %2246 = vmatpush1.bf16.xpose.msra.mxu0 0
        %2247 = vmatprep.subr.bf16.mxu0 0
        %2248 = vmatpush1.bf16.xpose.msra.mxu0 0
        %2249 = vmatprep.subr.bf16.mxu0 0
        %2250 = vmatpush1.bf16.xpose.msra.mxu0 0
        %2251 = vmatprep.subr.bf16.mxu0 0
        %2252 = vmatpush1.bf16.xpose.msra.mxu0 0
        %2253 = vmatprep.mubr.bf16.mxu0 0
        %2254 = vmatmul.mubr.bf16.gmra.mrb[0].mxu0 %v2216
        %v2255 = vpop.f32.mrb[0].mxu0
        %v2256 = vadd.f32 %v2075, %v2255
        %v2257 = vpop.f32.mrb[0].mxu0
        %v2258 = vpop.f32.mrb[0].mxu0
        %v2259 = vpop.f32.mrb[0].mxu0
        %2260 = vdwg.mxu0
        %vm2261 = vcmask 59392
        %v2262 = vsel %vm2261, %v2118, -inf
        %2263 = vmax.xlane.f32.xlu0 %v2262
        %v2264 = vpop.xlane.xlu0 %2263
        %v2265 = vsel %vm2261, %v2164, -inf
        %2266 = vmax.xlane.f32.xlu0 %v2265
        %v2267 = vpop.xlane.xlu0 %2266
        %v2268 = vsel %vm2261, %v2210, -inf
        %2269 = vmax.xlane.f32.xlu0 %v2268
        %v2270 = vpop.xlane.xlu0 %2269
        %v2271 = vsel %vm2261, %v2256, -inf
        %2272 = vmax.xlane.f32.xlu0 %v2271
        %v2273 = vpop.xlane.xlu0 %2272
        %v2274 = vsub.f32 %v2118, %v2264
        %v2275 = vsub.f32 %v2164, %v2267
        %v2276 = vsub.f32 %v2210, %v2270
        %v2277 = vsub.f32 %v2256, %v2273
        %v2278 = vmul.f32 %v2274, 1.442695
        %v2279 = vpow.pop %v2278
        %v2280 = vmul.f32 %v2275, 1.442695
        %v2281 = vpow.pop %v2280
        %v2282 = vmul.f32 %v2276, 1.442695
        %v2283 = vpow.pop %v2282
        %v2284 = vmul.f32 %v2277, 1.442695
        %v2285 = vpow.pop %v2284
        %v2286 = vsel %vm2261, %v2279, 0.0
        %2287 = vadd.xlane.f32.xlu0 %v2286
        %v2288 = vpop.xlane.xlu0 %2287
        %v2289 = vsel %vm2261, %v2281, 0.0
        %2290 = vadd.xlane.f32.xlu0 %v2289
        %v2291 = vpop.xlane.xlu0 %2290
        %v2292 = vsel %vm2261, %v2283, 0.0
        %2293 = vadd.xlane.f32.xlu0 %v2292
        %v2294 = vpop.xlane.xlu0 %2293
        %v2295 = vsel %vm2261, %v2285, 0.0
        %2296 = vadd.xlane.f32.xlu0 %v2295
        %v2297 = vpop.xlane.xlu0 %2296
        %v2298 = vrcp.pop %v2288
        %v2299 = vrcp.pop %v2291
        %v2300 = vrcp.pop %v2294
        %v2301 = vrcp.pop %v2297
        %v2302 = vmul.f32 %v2279, %v2298
        %v2303 = vmul.f32 %v2281, %v2299
        %v2304 = vmul.f32 %v2283, %v2300
        %v2305 = vmul.f32 %v2285, %v2301
        %v2306 = vsel %vm2261, %v2302, 0.0
        %v2307 = vsel %vm2261, %v2303, 0.0
        %v2308 = vadd.f32 %v2306, %v2307
        %v2309 = vsel %vm2261, %v2304, 0.0
        %v2310 = vadd.f32 %v2308, %v2309
        %v2311 = vsel %vm2261, %v2305, 0.0
        %v2312 = vadd.f32 %v2310, %v2311
        %v2313 = vrcp.pop 4.0
        %v2314 = vmul.f32 %v2312, %v2313
        %v2315 = vpack.c.bf16 %v2302, %v2302
        %v2316 = vpack.c.bf16 %v2303, %v2303
        %v2317 = vpack.c.bf16 %v2304, %v2304
        %v2318 = vpack.c.bf16 %v2305, %v2305
        %v2320 = vsel %vm1416, %v2315, 0
        %v2323 = vsel %vm1420, %v2059, 0
        %2325 = vmatprep.subr.bf16.mxu0 0
        %2326 = vmatpush1.bf16.msra.mxu0 %v2323
        %2327 = vmatprep.subr.bf16.mxu0 0
        %2328 = vmatpush1.bf16.msra.mxu0 0
        %2329 = vmatprep.subr.bf16.mxu0 0
        %2330 = vmatpush1.bf16.msra.mxu0 0
        %2331 = vmatprep.subr.bf16.mxu0 0
        %2332 = vmatpush1.bf16.msra.mxu0 0
        %2333 = vmatprep.subr.bf16.mxu0 0
        %2334 = vmatpush1.bf16.msra.mxu0 0
        %2335 = vmatprep.subr.bf16.mxu0 0
        %2336 = vmatpush1.bf16.msra.mxu0 0
        %2337 = vmatprep.subr.bf16.mxu0 0
        %2338 = vmatpush1.bf16.msra.mxu0 0
        %2339 = vmatprep.subr.bf16.mxu0 0
        %2340 = vmatpush1.bf16.msra.mxu0 0
        %2341 = vmatprep.subr.bf16.mxu0 0
        %2342 = vmatpush1.bf16.msra.mxu0 0
        %2343 = vmatprep.subr.bf16.mxu0 0
        %2344 = vmatpush1.bf16.msra.mxu0 0
        %2345 = vmatprep.subr.bf16.mxu0 0
        %2346 = vmatpush1.bf16.msra.mxu0 0
        %2347 = vmatprep.subr.bf16.mxu0 0
        %2348 = vmatpush1.bf16.msra.mxu0 0
        %2349 = vmatprep.subr.bf16.mxu0 0
        %2350 = vmatpush1.bf16.msra.mxu0 0
        %2351 = vmatprep.subr.bf16.mxu0 0
        %2352 = vmatpush1.bf16.msra.mxu0 0
        %2353 = vmatprep.subr.bf16.mxu0 0
        %2354 = vmatpush1.bf16.msra.mxu0 0
        %2355 = vmatprep.subr.bf16.mxu0 0
        %2356 = vmatpush1.bf16.msra.mxu0 0
        %2357 = vmatprep.mubr.bf16.mxu0 0
        %2358 = vmatmul.mubr.bf16.gmra.mrb[0].mxu0 %v2320
        %v2359 = vpop.f32.mrb[0].mxu0
        %v2360 = vadd.f32 0.0, %v2359
        %v2361 = vpop.f32.mrb[0].mxu0
        %v2362 = vpop.f32.mrb[0].mxu0
        %v2363 = vpop.f32.mrb[0].mxu0
        %2364 = vdwg.mxu0
        %v2366 = vsel %vm1416, %v2316, 0
        %v2369 = vsel %vm1420, %v2062, 0
        %2371 = vmatprep.subr.bf16.mxu0 0
        %2372 = vmatpush1.bf16.msra.mxu0 %v2369
        %2373 = vmatprep.subr.bf16.mxu0 0
        %2374 = vmatpush1.bf16.msra.mxu0 0
        %2375 = vmatprep.subr.bf16.mxu0 0
        %2376 = vmatpush1.bf16.msra.mxu0 0
        %2377 = vmatprep.subr.bf16.mxu0 0
        %2378 = vmatpush1.bf16.msra.mxu0 0
        %2379 = vmatprep.subr.bf16.mxu0 0
        %2380 = vmatpush1.bf16.msra.mxu0 0
        %2381 = vmatprep.subr.bf16.mxu0 0
        %2382 = vmatpush1.bf16.msra.mxu0 0
        %2383 = vmatprep.subr.bf16.mxu0 0
        %2384 = vmatpush1.bf16.msra.mxu0 0
        %2385 = vmatprep.subr.bf16.mxu0 0
        %2386 = vmatpush1.bf16.msra.mxu0 0
        %2387 = vmatprep.subr.bf16.mxu0 0
        %2388 = vmatpush1.bf16.msra.mxu0 0
        %2389 = vmatprep.subr.bf16.mxu0 0
        %2390 = vmatpush1.bf16.msra.mxu0 0
        %2391 = vmatprep.subr.bf16.mxu0 0
        %2392 = vmatpush1.bf16.msra.mxu0 0
        %2393 = vmatprep.subr.bf16.mxu0 0
        %2394 = vmatpush1.bf16.msra.mxu0 0
        %2395 = vmatprep.subr.bf16.mxu0 0
        %2396 = vmatpush1.bf16.msra.mxu0 0
        %2397 = vmatprep.subr.bf16.mxu0 0
        %2398 = vmatpush1.bf16.msra.mxu0 0
        %2399 = vmatprep.subr.bf16.mxu0 0
        %2400 = vmatpush1.bf16.msra.mxu0 0
        %2401 = vmatprep.subr.bf16.mxu0 0
        %2402 = vmatpush1.bf16.msra.mxu0 0
        %2403 = vmatprep.mubr.bf16.mxu0 0
        %2404 = vmatmul.mubr.bf16.gmra.mrb[0].mxu0 %v2366
        %v2405 = vpop.f32.mrb[0].mxu0
        %v2406 = vadd.f32 0.0, %v2405
        %v2407 = vpop.f32.mrb[0].mxu0
        %v2408 = vpop.f32.mrb[0].mxu0
        %v2409 = vpop.f32.mrb[0].mxu0
        %2410 = vdwg.mxu0
        %v2412 = vsel %vm1416, %v2317, 0
        %v2415 = vsel %vm1420, %v2065, 0
        %2417 = vmatprep.subr.bf16.mxu0 0
        %2418 = vmatpush1.bf16.msra.mxu0 %v2415
        %2419 = vmatprep.subr.bf16.mxu0 0
        %2420 = vmatpush1.bf16.msra.mxu0 0
        %2421 = vmatprep.subr.bf16.mxu0 0
        %2422 = vmatpush1.bf16.msra.mxu0 0
        %2423 = vmatprep.subr.bf16.mxu0 0
        %2424 = vmatpush1.bf16.msra.mxu0 0
        %2425 = vmatprep.subr.bf16.mxu0 0
        %2426 = vmatpush1.bf16.msra.mxu0 0
        %2427 = vmatprep.subr.bf16.mxu0 0
        %2428 = vmatpush1.bf16.msra.mxu0 0
        %2429 = vmatprep.subr.bf16.mxu0 0
        %2430 = vmatpush1.bf16.msra.mxu0 0
        %2431 = vmatprep.subr.bf16.mxu0 0
        %2432 = vmatpush1.bf16.msra.mxu0 0
        %2433 = vmatprep.subr.bf16.mxu0 0
        %2434 = vmatpush1.bf16.msra.mxu0 0
        %2435 = vmatprep.subr.bf16.mxu0 0
        %2436 = vmatpush1.bf16.msra.mxu0 0
        %2437 = vmatprep.subr.bf16.mxu0 0
        %2438 = vmatpush1.bf16.msra.mxu0 0
        %2439 = vmatprep.subr.bf16.mxu0 0
        %2440 = vmatpush1.bf16.msra.mxu0 0
        %2441 = vmatprep.subr.bf16.mxu0 0
        %2442 = vmatpush1.bf16.msra.mxu0 0
        %2443 = vmatprep.subr.bf16.mxu0 0
        %2444 = vmatpush1.bf16.msra.mxu0 0
        %2445 = vmatprep.subr.bf16.mxu0 0
        %2446 = vmatpush1.bf16.msra.mxu0 0
        %2447 = vmatprep.subr.bf16.mxu0 0
        %2448 = vmatpush1.bf16.msra.mxu0 0
        %2449 = vmatprep.mubr.bf16.mxu0 0
        %2450 = vmatmul.mubr.bf16.gmra.mrb[0].mxu0 %v2412
        %v2451 = vpop.f32.mrb[0].mxu0
        %v2452 = vadd.f32 0.0, %v2451
        %v2453 = vpop.f32.mrb[0].mxu0
        %v2454 = vpop.f32.mrb[0].mxu0
        %v2455 = vpop.f32.mrb[0].mxu0
        %2456 = vdwg.mxu0
        %v2458 = vsel %vm1416, %v2318, 0
        %v2461 = vsel %vm1420, %v2068, 0
        %2463 = vmatprep.subr.bf16.mxu0 0
        %2464 = vmatpush1.bf16.msra.mxu0 %v2461
        %2465 = vmatprep.subr.bf16.mxu0 0
        %2466 = vmatpush1.bf16.msra.mxu0 0
        %2467 = vmatprep.subr.bf16.mxu0 0
        %2468 = vmatpush1.bf16.msra.mxu0 0
        %2469 = vmatprep.subr.bf16.mxu0 0
        %2470 = vmatpush1.bf16.msra.mxu0 0
        %2471 = vmatprep.subr.bf16.mxu0 0
        %2472 = vmatpush1.bf16.msra.mxu0 0
        %2473 = vmatprep.subr.bf16.mxu0 0
        %2474 = vmatpush1.bf16.msra.mxu0 0
        %2475 = vmatprep.subr.bf16.mxu0 0
        %2476 = vmatpush1.bf16.msra.mxu0 0
        %2477 = vmatprep.subr.bf16.mxu0 0
        %2478 = vmatpush1.bf16.msra.mxu0 0
        %2479 = vmatprep.subr.bf16.mxu0 0
        %2480 = vmatpush1.bf16.msra.mxu0 0
        %2481 = vmatprep.subr.bf16.mxu0 0
        %2482 = vmatpush1.bf16.msra.mxu0 0
        %2483 = vmatprep.subr.bf16.mxu0 0
        %2484 = vmatpush1.bf16.msra.mxu0 0
        %2485 = vmatprep.subr.bf16.mxu0 0
        %2486 = vmatpush1.bf16.msra.mxu0 0
        %2487 = vmatprep.subr.bf16.mxu0 0
        %2488 = vmatpush1.bf16.msra.mxu0 0
        %2489 = vmatprep.subr.bf16.mxu0 0
        %2490 = vmatpush1.bf16.msra.mxu0 0
        %2491 = vmatprep.subr.bf16.mxu0 0
        %2492 = vmatpush1.bf16.msra.mxu0 0
        %2493 = vmatprep.subr.bf16.mxu0 0
        %2494 = vmatpush1.bf16.msra.mxu0 0
        %2495 = vmatprep.mubr.bf16.mxu0 0
        %2496 = vmatmul.mubr.bf16.gmra.mrb[0].mxu0 %v2458
        %v2497 = vpop.f32.mrb[0].mxu0
        %v2498 = vadd.f32 0.0, %v2497
        %v2499 = vpop.f32.mrb[0].mxu0
        %v2500 = vpop.f32.mrb[0].mxu0
        %v2501 = vpop.f32.mrb[0].mxu0
        %2502 = vdwg.mxu0
        %v2503 = vcombine.low %v2360, %v2452
        %v2505 = vunpack.c.l.s4 1983009808
        %v2506 = vunpack.c.0.s8 %v2505
        %v2507 = vlaneseq
        %v2508 = vshrl.u32 %v2507, 7
        %v2509 = vsub.s32 %v2506, %v2508
        %v2510 = vrot.slane %v2503, %v2509
        %v2511 = vcombine.low %v2406, %v2498
        %v2513 = vunpack.c.l.s4 1983009808
        %v2514 = vunpack.c.0.s8 %v2513
        %v2515 = vlaneseq
        %v2516 = vshrl.u32 %v2515, 7
        %v2517 = vsub.s32 %v2514, %v2516
        %v2518 = vrot.slane %v2511, %v2517
        %v2519 = vcombine.low %v2510, %v2518
        %v2520 = vcombine.high %v2510, %v2518
        %v2522 = vunpack.c.l.s4 1934713408
        %v2523 = vunpack.c.0.s8 %v2522
        %v2524 = vlaneseq
        %v2525 = vshrl.u32 %v2524, 7
        %v2526 = vsub.s32 %v2523, %v2525
        %v2527 = vrot.slane %v2519, %v2526
        %v2529 = vunpack.c.l.s4 1934713408
        %v2530 = vunpack.c.0.s8 %v2529
        %v2531 = vlaneseq
        %v2532 = vshrl.u32 %v2531, 7
        %v2533 = vsub.s32 %v2530, %v2532
        %v2534 = vrot.slane %v2520, %v2533
        %v2535 = vcombine.low %v2527, %v2534
        %v2537 = vunpack.c.l.s4 1983009808
        %v2538 = vunpack.c.0.s8 %v2537
        %v2539 = vlaneseq
        %v2540 = vshrl.u32 %v2539, 7
        %v2541 = vsub.s32 %v2538, %v2540
        %v2542 = vrot.slane %v2535, %v2541
        %v2543 = vcombine.high %v2527, 0.0
        %v2545 = vunpack.c.l.s4 1983009808
        %v2546 = vunpack.c.0.s8 %v2545
        %v2547 = vlaneseq
        %v2548 = vshrl.u32 %v2547, 7
        %v2549 = vsub.s32 %v2546, %v2548
        %v2550 = vrot.slane %v2543, %v2549
        %v2551 = vcombine.low %v2542, %v2550
        %v2552 = vcombine.high %v2542, %v2550
        %v2554 = vunpack.c.l.s4 1934713408
        %v2555 = vunpack.c.0.s8 %v2554
        %v2556 = vlaneseq
        %v2557 = vshrl.u32 %v2556, 7
        %v2558 = vsub.s32 %v2555, %v2557
        %v2559 = vrot.slane %v2551, %v2558
        %v2561 = vunpack.c.l.s4 1934713408
        %v2562 = vunpack.c.0.s8 %v2561
        %v2563 = vlaneseq
        %v2564 = vshrl.u32 %v2563, 7
        %v2565 = vsub.s32 %v2562, %v2564
        %v2566 = vrot.slane %v2552, %v2565
        %v2567 = vcombine.high %v2559, 0.0
        %v2568 = vcombine.high %v2566, 0.0
        %2570 = vrot.lane.b32.xlu0 %v2567, 8
        %v2571 = vpop.permute.xlu0 %2570
        %2574 = vrot.lane.b32.xlu0 %v2566, 16
        %v2575 = vpop.permute.xlu0 %2574
        %2578 = vrot.lane.b32.xlu0 %v2568, 24
        %v2579 = vpop.permute.xlu0 %2578
        %v2581 = vsel %vm1416, %v2559, %v2571
        %vm2582 = vcmask 130048
        %v2583 = vsel %vm2582, %v2581, %v2575
        %vm2584 = vcmask 195584
        %v2585 = vsel %vm2584, %v2583, %v2579
        %v2586 = vpack.c.bf16 %v2585, %v2585
        %v2587 = vld [vmem:[%s27] sm:$0xf]
        %v2588 = vld [vmem:[%s27 + $0x4] sm:$0xf]
        %v2589 = vld [vmem:[%s27 + $0x8] sm:$0xf]
        %v2590 = vld [vmem:[%s27 + $0xc] sm:$0xf]
        %v2591 = vld [vmem:[%s29] sm:$0x1]
        %v2593 = vlaneseq
        %v2594 = vshrl.u32 %v2593, 7
        %v2595 = vsub.s32 0, %v2594
        %v2596 = vrot.slane %v2591, %v2595
        %v2602 = vunpack.c.l.b16 %v2587
        %v2603 = vunpack.c.l.b16 %v2588
        %v2604 = vunpack.c.l.b16 %v2589
        %v2605 = vunpack.c.l.b16 %v2590
        %v2606 = vpack.c.b16 %v2603, %v2602
        %v2607 = vpack.c.b16 %v2605, %v2604
        %v2611 = vsel %vm1488, %v2586, 0
        %2613 = vmatprep.subr.bf16.mxu0 0
        %2614 = vmatpush1.bf16.msra.mxu0 %v2606
        %2615 = vmatprep.subr.bf16.mxu0 0
        %2616 = vmatpush1.bf16.msra.mxu0 %v2607
        %2617 = vmatprep.subr.bf16.mxu0 0
        %2618 = vmatpush1.bf16.msra.mxu0 0
        %2619 = vmatprep.subr.bf16.mxu0 0
        %2620 = vmatpush1.bf16.msra.mxu0 0
        %2621 = vmatprep.subr.bf16.mxu0 0
        %2622 = vmatpush1.bf16.msra.mxu0 0
        %2623 = vmatprep.subr.bf16.mxu0 0
        %2624 = vmatpush1.bf16.msra.mxu0 0
        %2625 = vmatprep.subr.bf16.mxu0 0
        %2626 = vmatpush1.bf16.msra.mxu0 0
        %2627 = vmatprep.subr.bf16.mxu0 0
        %2628 = vmatpush1.bf16.msra.mxu0 0
        %2629 = vmatprep.subr.bf16.mxu0 0
        %2630 = vmatpush1.bf16.msra.mxu0 0
        %2631 = vmatprep.subr.bf16.mxu0 0
        %2632 = vmatpush1.bf16.msra.mxu0 0
        %2633 = vmatprep.subr.bf16.mxu0 0
        %2634 = vmatpush1.bf16.msra.mxu0 0
        %2635 = vmatprep.subr.bf16.mxu0 0
        %2636 = vmatpush1.bf16.msra.mxu0 0
        %2637 = vmatprep.subr.bf16.mxu0 0
        %2638 = vmatpush1.bf16.msra.mxu0 0
        %2639 = vmatprep.subr.bf16.mxu0 0
        %2640 = vmatpush1.bf16.msra.mxu0 0
        %2641 = vmatprep.subr.bf16.mxu0 0
        %2642 = vmatpush1.bf16.msra.mxu0 0
        %2643 = vmatprep.subr.bf16.mxu0 0
        %2644 = vmatpush1.bf16.msra.mxu0 0
        %2645 = vmatprep.mubr.bf16.mxu0 0
        %2646 = vmatmul.mubr.bf16.gmra.mrb[0].mxu0 %v2611
        %v2647 = vpop.f32.mrb[0].mxu0
        %v2648 = vadd.f32 %v2596, %v2647
        %v2649 = vpop.f32.mrb[0].mxu0
        %v2650 = vpop.f32.mrb[0].mxu0
        %v2651 = vpop.f32.mrb[0].mxu0
        %2652 = vdwg.mxu0
        %v2653 = vadd.f32 %v1459, %v2648
        %v2654 = vld [vmem:[%s31] sm:$0x1]
        %v2655 = vld [vmem:[%s33] sm:$0x1]
        %vm2656 = vcmask 256000
        %v2657 = vsel %vm2656, %v2653, 0.0
        %2658 = vadd.xlane.f32.xlu0 %v2657
        %v2659 = vpop.xlane.xlu0 %2658
        %v2660 = vrcp.pop 32.0
        %v2661 = vmul.f32 %v2659, %v2660
        %v2662 = vsub.f32 %v2653, %v2661
        %v2663 = vmul.f32 %v2662, %v2662
        %v2664 = vsel %vm2656, %v2663, 0.0
        %2665 = vadd.xlane.f32.xlu0 %v2664
        %v2666 = vpop.xlane.xlu0 %2665
        %v2667 = vmul.f32 %v2666, %v2660
        %v2668 = vadd.f32 %v2667, 1e-05
        %v2669 = vrsqrt.pop %v2668
        %v2670 = vmul.f32 %v2662, %v2669
        %v2672 = vlaneseq
        %v2673 = vshrl.u32 %v2672, 7
        %v2674 = vsub.s32 0, %v2673
        %v2675 = vrot.slane %v2654, %v2674
        %v2677 = vmul.f32 %v2670, %v2675
        %v2679 = vlaneseq
        %v2680 = vshrl.u32 %v2679, 7
        %v2681 = vsub.s32 0, %v2680
        %v2682 = vrot.slane %v2655, %v2681
        %v2684 = vadd.f32 %v2677, %v2682
        %v2685 = vpack.c.bf16 %v2684, %v2684
        %v2686 = vld [vmem:[%s35] sm:$0xf]
        %v2687 = vld [vmem:[%s35 + $0x4] sm:$0xf]
        %v2688 = vld [vmem:[%s35 + $0x8] sm:$0xf]
        %v2689 = vld [vmem:[%s35 + $0xc] sm:$0xf]
        %v2690 = vld [vmem:[%s37] sm:$0x1]
        %v2692 = vlaneseq
        %v2693 = vshrl.u32 %v2692, 7
        %v2694 = vsub.s32 0, %v2693
        %v2695 = vrot.slane %v2690, %v2694
        %v2701 = vunpack.c.l.b16 %v2686
        %v2702 = vunpack.c.l.b16 %v2687
        %v2703 = vunpack.c.l.b16 %v2688
        %v2704 = vunpack.c.l.b16 %v2689
        %v2705 = vpack.c.b16 %v2702, %v2701
        %v2706 = vpack.c.b16 %v2704, %v2703
        %v2710 = vsel %vm1488, %v2685, 0
        %2712 = vmatprep.subr.bf16.mxu0 0
        %2713 = vmatpush1.bf16.msra.mxu0 %v2705
        %2714 = vmatprep.subr.bf16.mxu0 0
        %2715 = vmatpush1.bf16.msra.mxu0 %v2706
        %2716 = vmatprep.subr.bf16.mxu0 0
        %2717 = vmatpush1.bf16.msra.mxu0 0
        %2718 = vmatprep.subr.bf16.mxu0 0
        %2719 = vmatpush1.bf16.msra.mxu0 0
        %2720 = vmatprep.subr.bf16.mxu0 0
        %2721 = vmatpush1.bf16.msra.mxu0 0
        %2722 = vmatprep.subr.bf16.mxu0 0
        %2723 = vmatpush1.bf16.msra.mxu0 0
        %2724 = vmatprep.subr.bf16.mxu0 0
        %2725 = vmatpush1.bf16.msra.mxu0 0
        %2726 = vmatprep.subr.bf16.mxu0 0
        %2727 = vmatpush1.bf16.msra.mxu0 0
        %2728 = vmatprep.subr.bf16.mxu0 0
        %2729 = vmatpush1.bf16.msra.mxu0 0
        %2730 = vmatprep.subr.bf16.mxu0 0
        %2731 = vmatpush1.bf16.msra.mxu0 0
        %2732 = vmatprep.subr.bf16.mxu0 0
        %2733 = vmatpush1.bf16.msra.mxu0 0
        %2734 = vmatprep.subr.bf16.mxu0 0
        %2735 = vmatpush1.bf16.msra.mxu0 0
        %2736 = vmatprep.subr.bf16.mxu0 0
        %2737 = vmatpush1.bf16.msra.mxu0 0
        %2738 = vmatprep.subr.bf16.mxu0 0
        %2739 = vmatpush1.bf16.msra.mxu0 0
        %2740 = vmatprep.subr.bf16.mxu0 0
        %2741 = vmatpush1.bf16.msra.mxu0 0
        %2742 = vmatprep.subr.bf16.mxu0 0
        %2743 = vmatpush1.bf16.msra.mxu0 0
        %2744 = vmatprep.mubr.bf16.mxu0 0
        %2745 = vmatmul.mubr.bf16.gmra.mrb[0].mxu0 %v2710
        %v2746 = vpop.f32.mrb[0].mxu0
        %v2747 = vadd.f32 %v2695, %v2746
        %v2748 = vpop.f32.mrb[0].mxu0
        %v2749 = vpop.f32.mrb[0].mxu0
        %v2750 = vpop.f32.mrb[0].mxu0
        %2751 = vdwg.mxu0
        %v2752 = vmax.f32 %v2747, 0.0
        %v2753 = vpack.c.bf16 %v2752, %v2752
        %v2754 = vld [vmem:[%s39] sm:$0xf]
        %v2755 = vld [vmem:[%s39 + $0x4] sm:$0xf]
        %v2756 = vld [vmem:[%s39 + $0x8] sm:$0xf]
        %v2757 = vld [vmem:[%s39 + $0xc] sm:$0xf]
        %v2758 = vld [vmem:[%s39 + $0x10] sm:$0xf]
        %v2759 = vld [vmem:[%s39 + $0x14] sm:$0xf]
        %v2760 = vld [vmem:[%s39 + $0x18] sm:$0xf]
        %v2761 = vld [vmem:[%s39 + $0x1c] sm:$0xf]
        %v2762 = vld [vmem:[%s41] sm:$0x1]
        %v2764 = vlaneseq
        %v2765 = vshrl.u32 %v2764, 7
        %v2766 = vsub.s32 0, %v2765
        %v2767 = vrot.slane %v2762, %v2766
        %v2777 = vunpack.c.l.b16 %v2754
        %v2778 = vunpack.c.l.b16 %v2755
        %v2779 = vunpack.c.l.b16 %v2756
        %v2780 = vunpack.c.l.b16 %v2757
        %v2781 = vunpack.c.l.b16 %v2758
        %v2782 = vunpack.c.l.b16 %v2759
        %v2783 = vunpack.c.l.b16 %v2760
        %v2784 = vunpack.c.l.b16 %v2761
        %v2785 = vpack.c.b16 %v2778, %v2777
        %v2786 = vpack.c.b16 %v2780, %v2779
        %v2787 = vpack.c.b16 %v2782, %v2781
        %v2788 = vpack.c.b16 %v2784, %v2783
        %vm2793 = vcmask 523264
        %v2795 = vsel %vm2793, %v2753, 0
        %2797 = vmatprep.subr.bf16.mxu0 0
        %2798 = vmatpush1.bf16.msra.mxu0 %v2785
        %2799 = vmatprep.subr.bf16.mxu0 0
        %2800 = vmatpush1.bf16.msra.mxu0 %v2786
        %2801 = vmatprep.subr.bf16.mxu0 0
        %2802 = vmatpush1.bf16.msra.mxu0 %v2787
        %2803 = vmatprep.subr.bf16.mxu0 0
        %2804 = vmatpush1.bf16.msra.mxu0 %v2788
        %2805 = vmatprep.subr.bf16.mxu0 0
        %2806 = vmatpush1.bf16.msra.mxu0 0
        %2807 = vmatprep.subr.bf16.mxu0 0
        %2808 = vmatpush1.bf16.msra.mxu0 0
        %2809 = vmatprep.subr.bf16.mxu0 0
        %2810 = vmatpush1.bf16.msra.mxu0 0
        %2811 = vmatprep.subr.bf16.mxu0 0
        %2812 = vmatpush1.bf16.msra.mxu0 0
        %2813 = vmatprep.subr.bf16.mxu0 0
        %2814 = vmatpush1.bf16.msra.mxu0 0
        %2815 = vmatprep.subr.bf16.mxu0 0
        %2816 = vmatpush1.bf16.msra.mxu0 0
        %2817 = vmatprep.subr.bf16.mxu0 0
        %2818 = vmatpush1.bf16.msra.mxu0 0
        %2819 = vmatprep.subr.bf16.mxu0 0
        %2820 = vmatpush1.bf16.msra.mxu0 0
        %2821 = vmatprep.subr.bf16.mxu0 0
        %2822 = vmatpush1.bf16.msra.mxu0 0
        %2823 = vmatprep.subr.bf16.mxu0 0
        %2824 = vmatpush1.bf16.msra.mxu0 0
        %2825 = vmatprep.subr.bf16.mxu0 0
        %2826 = vmatpush1.bf16.msra.mxu0 0
        %2827 = vmatprep.subr.bf16.mxu0 0
        %2828 = vmatpush1.bf16.msra.mxu0 0
        %2829 = vmatprep.mubr.bf16.mxu0 0
        %2830 = vmatmul.mubr.bf16.gmra.mrb[0].mxu0 %v2795
        %v2831 = vpop.f32.mrb[0].mxu0
        %v2832 = vadd.f32 %v2767, %v2831
        %v2833 = vpop.f32.mrb[0].mxu0
        %v2834 = vpop.f32.mrb[0].mxu0
        %v2835 = vpop.f32.mrb[0].mxu0
        %2836 = vdwg.mxu0
        %v2837 = vadd.f32 %v2684, %v2832
        %v2838 = vld [vmem:[%s43] sm:$0x1]
        %v2839 = vld [vmem:[%s45] sm:$0x1]
        %v2840 = vsel %vm2656, %v2837, 0.0
        %2841 = vadd.xlane.f32.xlu0 %v2840
        %v2842 = vpop.xlane.xlu0 %2841
        %v2843 = vmul.f32 %v2842, %v2660
        %v2844 = vsub.f32 %v2837, %v2843
        %v2845 = vmul.f32 %v2844, %v2844
        %v2846 = vsel %vm2656, %v2845, 0.0
        %2847 = vadd.xlane.f32.xlu0 %v2846
        %v2848 = vpop.xlane.xlu0 %2847
        %v2849 = vmul.f32 %v2848, %v2660
        %v2850 = vadd.f32 %v2849, 1e-05
        %v2851 = vrsqrt.pop %v2850
        %v2852 = vmul.f32 %v2844, %v2851
        %v2854 = vlaneseq
        %v2855 = vshrl.u32 %v2854, 7
        %v2856 = vsub.s32 0, %v2855
        %v2857 = vrot.slane %v2838, %v2856
        %v2859 = vmul.f32 %v2852, %v2857
        %v2861 = vlaneseq
        %v2862 = vshrl.u32 %v2861, 7
        %v2863 = vsub.s32 0, %v2862
        %v2864 = vrot.slane %v2839, %v2863
        %v2866 = vadd.f32 %v2859, %v2864
        %2867 = vst.msk [vmem:[%s1401] sm:$0x7] %vm2261, %v2314
        %v2868 = vld [vmem:[#allocation9] sm:$0x1]
        %v2870 = vlaneseq
        %v2871 = vshrl.u32 %v2870, 7
        %v2872 = vsub.s32 0, %v2871
        %v2873 = vrot.slane %v2868, %v2872
        %v2875 = vadd.f32 %v2866, %v2873
        %v2876 = vlaneseq
        %v2877 = vshrl.u32 %v2876, 7
        %v2878 = vlaneseq
        %v2879 = vand.u32 %v2878, 127
        %v2880 = vmul.u32 %v2877, 4
        %vm2881 = vcmp.ge.s32.totalorder %v2879, %v2880
        %v2882 = vadd.s32 %v2877, 1
        %v2883 = vmul.u32 %v2882, 4
        %vm2884 = vcmp.lt.s32.totalorder %v2879, %v2883
        %vm2885 = vmand %vm2881, %vm2884
        %v2886 = vsel %vm2885, 0.0, -1e+09
        %v2887 = vpack.c.bf16 %v2875, %v2875
        %v2888 = vld [vmem:[%s47] sm:$0xf]
        %v2889 = vld [vmem:[%s47 + $0x4] sm:$0xf]
        %v2890 = vld [vmem:[%s47 + $0x8] sm:$0xf]
        %v2891 = vld [vmem:[%s47 + $0xc] sm:$0xf]
        %v2892 = vld [vmem:[%s53] sm:$0x1]
        %v2894 = vlaneseq
        %v2895 = vshrl.u32 %v2894, 7
        %v2896 = vsub.s32 0, %v2895
        %v2897 = vrot.slane %v2892, %v2896
        %v2903 = vunpack.c.l.b16 %v2888
        %v2904 = vunpack.c.l.b16 %v2889
        %v2905 = vunpack.c.l.b16 %v2890
        %v2906 = vunpack.c.l.b16 %v2891
        %v2907 = vpack.c.b16 %v2904, %v2903
        %v2908 = vpack.c.b16 %v2906, %v2905
        %v2912 = vsel %vm1488, %v2887, 0
        %2914 = vmatprep.subr.bf16.mxu0 0
        %2915 = vmatpush1.bf16.msra.mxu0 %v2907
        %2916 = vmatprep.subr.bf16.mxu0 0
        %2917 = vmatpush1.bf16.msra.mxu0 %v2908
        %2918 = vmatprep.subr.bf16.mxu0 0
        %2919 = vmatpush1.bf16.msra.mxu0 0
        %2920 = vmatprep.subr.bf16.mxu0 0
        %2921 = vmatpush1.bf16.msra.mxu0 0
        %2922 = vmatprep.subr.bf16.mxu0 0
        %2923 = vmatpush1.bf16.msra.mxu0 0
        %2924 = vmatprep.subr.bf16.mxu0 0
        %2925 = vmatpush1.bf16.msra.mxu0 0
        %2926 = vmatprep.subr.bf16.mxu0 0
        %2927 = vmatpush1.bf16.msra.mxu0 0
        %2928 = vmatprep.subr.bf16.mxu0 0
        %2929 = vmatpush1.bf16.msra.mxu0 0
        %2930 = vmatprep.subr.bf16.mxu0 0
        %2931 = vmatpush1.bf16.msra.mxu0 0
        %2932 = vmatprep.subr.bf16.mxu0 0
        %2933 = vmatpush1.bf16.msra.mxu0 0
        %2934 = vmatprep.subr.bf16.mxu0 0
        %2935 = vmatpush1.bf16.msra.mxu0 0
        %2936 = vmatprep.subr.bf16.mxu0 0
        %2937 = vmatpush1.bf16.msra.mxu0 0
        %2938 = vmatprep.subr.bf16.mxu0 0
        %2939 = vmatpush1.bf16.msra.mxu0 0
        %2940 = vmatprep.subr.bf16.mxu0 0
        %2941 = vmatpush1.bf16.msra.mxu0 0
        %2942 = vmatprep.subr.bf16.mxu0 0
        %2943 = vmatpush1.bf16.msra.mxu0 0
        %2944 = vmatprep.subr.bf16.mxu0 0
        %2945 = vmatpush1.bf16.msra.mxu0 0
        %2946 = vmatprep.mubr.bf16.mxu0 0
        %2947 = vmatmul.mubr.bf16.gmra.mrb[0].mxu0 %v2912
        %v2948 = vpop.f32.mrb[0].mxu0
        %v2949 = vadd.f32 %v2897, %v2948
        %v2950 = vpop.f32.mrb[0].mxu0
        %v2951 = vpop.f32.mrb[0].mxu0
        %v2952 = vpop.f32.mrb[0].mxu0
        %2953 = vdwg.mxu0
        %v2954 = vmul.f32 %v2949, 0.35355338
        %v2955 = vld [vmem:[%s49] sm:$0xf]
        %v2956 = vld [vmem:[%s49 + $0x4] sm:$0xf]
        %v2957 = vld [vmem:[%s49 + $0x8] sm:$0xf]
        %v2958 = vld [vmem:[%s49 + $0xc] sm:$0xf]
        %v2959 = vld [vmem:[%s55] sm:$0x1]
        %v2961 = vlaneseq
        %v2962 = vshrl.u32 %v2961, 7
        %v2963 = vsub.s32 0, %v2962
        %v2964 = vrot.slane %v2959, %v2963
        %v2968 = vunpack.c.l.b16 %v1406
        %v2969 = vunpack.c.l.b16 %v1407
        %v2970 = vpack.c.b16 %v2969, %v2968
        %v2975 = vunpack.c.l.b16 %v2955
        %v2976 = vunpack.c.l.b16 %v2956
        %v2977 = vunpack.c.l.b16 %v2957
        %v2978 = vunpack.c.l.b16 %v2958
        %v2979 = vpack.c.b16 %v2976, %v2975
        %v2980 = vpack.c.b16 %v2978, %v2977
        %v2984 = vsel %vm1488, %v2970, 0
        %2986 = vmatprep.subr.bf16.mxu0 0
        %2987 = vmatpush1.bf16.msra.mxu0 %v2979
        %2988 = vmatprep.subr.bf16.mxu0 0
        %2989 = vmatpush1.bf16.msra.mxu0 %v2980
        %2990 = vmatprep.subr.bf16.mxu0 0
        %2991 = vmatpush1.bf16.msra.mxu0 0
        %2992 = vmatprep.subr.bf16.mxu0 0
        %2993 = vmatpush1.bf16.msra.mxu0 0
        %2994 = vmatprep.subr.bf16.mxu0 0
        %2995 = vmatpush1.bf16.msra.mxu0 0
        %2996 = vmatprep.subr.bf16.mxu0 0
        %2997 = vmatpush1.bf16.msra.mxu0 0
        %2998 = vmatprep.subr.bf16.mxu0 0
        %2999 = vmatpush1.bf16.msra.mxu0 0
        %3000 = vmatprep.subr.bf16.mxu0 0
        %3001 = vmatpush1.bf16.msra.mxu0 0
        %3002 = vmatprep.subr.bf16.mxu0 0
        %3003 = vmatpush1.bf16.msra.mxu0 0
        %3004 = vmatprep.subr.bf16.mxu0 0
        %3005 = vmatpush1.bf16.msra.mxu0 0
        %3006 = vmatprep.subr.bf16.mxu0 0
        %3007 = vmatpush1.bf16.msra.mxu0 0
        %3008 = vmatprep.subr.bf16.mxu0 0
        %3009 = vmatpush1.bf16.msra.mxu0 0
        %3010 = vmatprep.subr.bf16.mxu0 0
        %3011 = vmatpush1.bf16.msra.mxu0 0
        %3012 = vmatprep.subr.bf16.mxu0 0
        %3013 = vmatpush1.bf16.msra.mxu0 0
        %3014 = vmatprep.subr.bf16.mxu0 0
        %3015 = vmatpush1.bf16.msra.mxu0 0
        %3016 = vmatprep.subr.bf16.mxu0 0
        %3017 = vmatpush1.bf16.msra.mxu0 0
        %3018 = vmatprep.mubr.bf16.mxu0 0
        %3019 = vmatmul.mubr.bf16.gmra.mrb[0].mxu0 %v2984
        %v3020 = vpop.f32.mrb[0].mxu0
        %v3021 = vadd.f32 %v2964, %v3020
        %v3022 = vpop.f32.mrb[0].mxu0
        %v3023 = vpop.f32.mrb[0].mxu0
        %v3024 = vadd.f32 %v2964, %v3023
        %v3025 = vpop.f32.mrb[0].mxu0
        %3026 = vdwg.mxu0
        %v3027 = vld [vmem:[%s51] sm:$0xf]
        %v3028 = vld [vmem:[%s51 + $0x4] sm:$0xf]
        %v3029 = vld [vmem:[%s51 + $0x8] sm:$0xf]
        %v3030 = vld [vmem:[%s51 + $0xc] sm:$0xf]
        %v3031 = vld [vmem:[%s57] sm:$0x1]
        %v3033 = vlaneseq
        %v3034 = vshrl.u32 %v3033, 7
        %v3035 = vsub.s32 0, %v3034
        %v3036 = vrot.slane %v3031, %v3035
        %v3042 = vunpack.c.l.b16 %v3027
        %v3043 = vunpack.c.l.b16 %v3028
        %v3044 = vunpack.c.l.b16 %v3029
        %v3045 = vunpack.c.l.b16 %v3030
        %v3046 = vpack.c.b16 %v3043, %v3042
        %v3047 = vpack.c.b16 %v3045, %v3044
        %3050 = vmatprep.subr.bf16.mxu0 0
        %3051 = vmatpush1.bf16.msra.mxu0 %v3046
        %3052 = vmatprep.subr.bf16.mxu0 0
        %3053 = vmatpush1.bf16.msra.mxu0 %v3047
        %3054 = vmatprep.subr.bf16.mxu0 0
        %3055 = vmatpush1.bf16.msra.mxu0 0
        %3056 = vmatprep.subr.bf16.mxu0 0
        %3057 = vmatpush1.bf16.msra.mxu0 0
        %3058 = vmatprep.subr.bf16.mxu0 0
        %3059 = vmatpush1.bf16.msra.mxu0 0
        %3060 = vmatprep.subr.bf16.mxu0 0
        %3061 = vmatpush1.bf16.msra.mxu0 0
        %3062 = vmatprep.subr.bf16.mxu0 0
        %3063 = vmatpush1.bf16.msra.mxu0 0
        %3064 = vmatprep.subr.bf16.mxu0 0
        %3065 = vmatpush1.bf16.msra.mxu0 0
        %3066 = vmatprep.subr.bf16.mxu0 0
        %3067 = vmatpush1.bf16.msra.mxu0 0
        %3068 = vmatprep.subr.bf16.mxu0 0
        %3069 = vmatpush1.bf16.msra.mxu0 0
        %3070 = vmatprep.subr.bf16.mxu0 0
        %3071 = vmatpush1.bf16.msra.mxu0 0
        %3072 = vmatprep.subr.bf16.mxu0 0
        %3073 = vmatpush1.bf16.msra.mxu0 0
        %3074 = vmatprep.subr.bf16.mxu0 0
        %3075 = vmatpush1.bf16.msra.mxu0 0
        %3076 = vmatprep.subr.bf16.mxu0 0
        %3077 = vmatpush1.bf16.msra.mxu0 0
        %3078 = vmatprep.subr.bf16.mxu0 0
        %3079 = vmatpush1.bf16.msra.mxu0 0
        %3080 = vmatprep.subr.bf16.mxu0 0
        %3081 = vmatpush1.bf16.msra.mxu0 0
        %3082 = vmatprep.mubr.bf16.mxu0 0
        %3083 = vmatmul.mubr.bf16.gmra.mrb[0].mxu0 %v2984
        %v3084 = vpop.f32.mrb[0].mxu0
        %v3085 = vadd.f32 %v3036, %v3084
        %v3086 = vpop.f32.mrb[0].mxu0
        %v3087 = vpop.f32.mrb[0].mxu0
        %v3088 = vadd.f32 %v3036, %v3087
        %v3089 = vpop.f32.mrb[0].mxu0
        %3090 = vdwg.mxu0
        %v3091 = vpack.c.bf16 %v2954, %v2954
        %3093 = vrot.lane.b32.xlu0 %v3091, 120
        %v3094 = vpop.permute.xlu0 %3093
        %3095 = vrot.lane.b32.xlu0 %v3091, 112
        %v3096 = vpop.permute.xlu0 %3095
        %3097 = vrot.lane.b32.xlu0 %v3091, 104
        %v3098 = vpop.permute.xlu0 %3097
        %v3100 = vcombine.low %v3091, %v3096
        %v3102 = vunpack.c.l.s4 1934713408
        %v3103 = vunpack.c.0.s8 %v3102
        %v3104 = vlaneseq
        %v3105 = vshrl.u32 %v3104, 7
        %v3106 = vsub.s32 %v3103, %v3105
        %v3107 = vrot.slane %v3100, %v3106
        %v3108 = vcombine.high %v3107, 0
        %v3111 = vcombine.low %v3094, %v3098
        %v3113 = vunpack.c.l.s4 1934713408
        %v3114 = vunpack.c.0.s8 %v3113
        %v3115 = vlaneseq
        %v3116 = vshrl.u32 %v3115, 7
        %v3117 = vsub.s32 %v3114, %v3116
        %v3118 = vrot.slane %v3111, %v3117
        %v3119 = vcombine.high %v3118, 0
        %v3122 = vpack.i.b16 %v3118, %v3107
        %v3123 = vshrl.u32 %v3107, 16
        %v3124 = vshrl.u32 %v3118, 16
        %v3125 = vpack.i.b16 %v3124, %v3123
        %v3128 = vpack.i.b16 %v3119, %v3108
        %v3131 = vcombine.low %v3122, %v3128
        %v3133 = vunpack.c.l.s4 1934713408
        %v3134 = vunpack.c.0.s8 %v3133
        %v3135 = vlaneseq
        %v3136 = vshrl.u32 %v3135, 7
        %v3137 = vsub.s32 %v3134, %v3136
        %v3138 = vrot.slane %v3131, %v3137
        %v3139 = vcombine.high %v3138, 0
        %v3142 = vunpack.c.l.s4 1934713408
        %v3143 = vunpack.c.0.s8 %v3142
        %v3144 = vlaneseq
        %v3145 = vshrl.u32 %v3144, 7
        %v3146 = vsub.s32 %v3143, %v3145
        %v3147 = vrot.slane %v3125, %v3146
        %v3148 = vcombine.high %v3147, 0
        %v3151 = vpack.i.b16 %v3147, %v3138
        %v3152 = vshrl.u32 %v3138, 16
        %v3153 = vshrl.u32 %v3147, 16
        %v3154 = vpack.i.b16 %v3153, %v3152
        %v3157 = vpack.i.b16 %v3148, %v3139
        %v3158 = vshrl.u32 %v3139, 16
        %v3159 = vshrl.u32 %v3148, 16
        %v3160 = vpack.i.b16 %v3159, %v3158
        %v3161 = vpack.c.bf16 %v3024, %v3021
        %3163 = vrot.lane.b32.xlu0 %v3161, 120
        %v3164 = vpop.permute.xlu0 %3163
        %3166 = vrot.lane.b32.xlu0 %v3161, 112
        %v3167 = vpop.permute.xlu0 %3166
        %3169 = vrot.lane.b32.xlu0 %v3161, 104
        %v3170 = vpop.permute.xlu0 %3169
        %v3173 = vunpack.c.l.s4 1983009808
        %v3174 = vunpack.c.0.s8 %v3173
        %v3175 = vlaneseq
        %v3176 = vshrl.u32 %v3175, 7
        %v3177 = vsub.s32 %v3174, %v3176
        %v3178 = vrot.slane %v3161, %v3177
        %v3179 = vcombine.high %v3161, 0
        %v3181 = vunpack.c.l.s4 1983009808
        %v3182 = vunpack.c.0.s8 %v3181
        %v3183 = vlaneseq
        %v3184 = vshrl.u32 %v3183, 7
        %v3185 = vsub.s32 %v3182, %v3184
        %v3186 = vrot.slane %v3167, %v3185
        %v3187 = vcombine.high %v3167, 0
        %v3188 = vcombine.low %v3178, %v3186
        %v3189 = vcombine.high %v3178, %v3186
        %v3191 = vunpack.c.l.s4 1934713408
        %v3192 = vunpack.c.0.s8 %v3191
        %v3193 = vlaneseq
        %v3194 = vshrl.u32 %v3193, 7
        %v3195 = vsub.s32 %v3192, %v3194
        %v3196 = vrot.slane %v3188, %v3195
        %v3198 = vunpack.c.l.s4 1934713408
        %v3199 = vunpack.c.0.s8 %v3198
        %v3200 = vlaneseq
        %v3201 = vshrl.u32 %v3200, 7
        %v3202 = vsub.s32 %v3199, %v3201
        %v3203 = vrot.slane %v3189, %v3202
        %v3204 = vcombine.low %v3179, %v3187
        %v3206 = vunpack.c.l.s4 1934713408
        %v3207 = vunpack.c.0.s8 %v3206
        %v3208 = vlaneseq
        %v3209 = vshrl.u32 %v3208, 7
        %v3210 = vsub.s32 %v3207, %v3209
        %v3211 = vrot.slane %v3204, %v3210
        %v3212 = vcombine.high %v3196, 0
        %v3213 = vcombine.high %v3203, 0
        %v3214 = vcombine.high %v3211, 0
        %v3216 = vunpack.c.l.s4 1983009808
        %v3217 = vunpack.c.0.s8 %v3216
        %v3218 = vlaneseq
        %v3219 = vshrl.u32 %v3218, 7
        %v3220 = vsub.s32 %v3217, %v3219
        %v3221 = vrot.slane %v3164, %v3220
        %v3222 = vcombine.high %v3164, 0
        %v3224 = vunpack.c.l.s4 1983009808
        %v3225 = vunpack.c.0.s8 %v3224
        %v3226 = vlaneseq
        %v3227 = vshrl.u32 %v3226, 7
        %v3228 = vsub.s32 %v3225, %v3227
        %v3229 = vrot.slane %v3170, %v3228
        %v3230 = vcombine.high %v3170, 0
        %v3231 = vcombine.low %v3221, %v3229
        %v3232 = vcombine.high %v3221, %v3229
        %v3234 = vunpack.c.l.s4 1934713408
        %v3235 = vunpack.c.0.s8 %v3234
        %v3236 = vlaneseq
        %v3237 = vshrl.u32 %v3236, 7
        %v3238 = vsub.s32 %v3235, %v3237
        %v3239 = vrot.slane %v3231, %v3238
        %v3241 = vunpack.c.l.s4 1934713408
        %v3242 = vunpack.c.0.s8 %v3241
        %v3243 = vlaneseq
        %v3244 = vshrl.u32 %v3243, 7
        %v3245 = vsub.s32 %v3242, %v3244
        %v3246 = vrot.slane %v3232, %v3245
        %v3247 = vcombine.low %v3222, %v3230
        %v3249 = vunpack.c.l.s4 1934713408
        %v3250 = vunpack.c.0.s8 %v3249
        %v3251 = vlaneseq
        %v3252 = vshrl.u32 %v3251, 7
        %v3253 = vsub.s32 %v3250, %v3252
        %v3254 = vrot.slane %v3247, %v3253
        %v3255 = vcombine.high %v3239, 0
        %v3256 = vcombine.high %v3246, 0
        %v3257 = vcombine.high %v3254, 0
        %v3260 = vpack.i.b16 %v3239, %v3196
        %v3262 = vshrl.u32 %v3196, 16
        %v3263 = vshrl.u32 %v3239, 16
        %v3264 = vpack.i.b16 %v3263, %v3262
        %v3268 = vpack.i.b16 %v3255, %v3212
        %v3270 = vshrl.u32 %v3212, 16
        %v3271 = vshrl.u32 %v3255, 16
        %v3272 = vpack.i.b16 %v3271, %v3270
        %v3276 = vpack.i.b16 %v3246, %v3203
        %v3278 = vshrl.u32 %v3203, 16
        %v3279 = vshrl.u32 %v3246, 16
        %v3280 = vpack.i.b16 %v3279, %v3278
        %v3284 = vpack.i.b16 %v3256, %v3213
        %v3286 = vshrl.u32 %v3213, 16
        %v3287 = vshrl.u32 %v3256, 16
        %v3288 = vpack.i.b16 %v3287, %v3286
        %v3292 = vpack.i.b16 %v3254, %v3211
        %v3293 = vshrl.u32 %v3211, 16
        %v3294 = vshrl.u32 %v3254, 16
        %v3295 = vpack.i.b16 %v3294, %v3293
        %v3298 = vpack.i.b16 %v3257, %v3214
        %v3299 = vshrl.u32 %v3214, 16
        %v3300 = vshrl.u32 %v3257, 16
        %v3301 = vpack.i.b16 %v3300, %v3299
        %v3302 = vcombine.low %v3260, %v3276
        %v3304 = vunpack.c.l.s4 1983009808
        %v3305 = vunpack.c.0.s8 %v3304
        %v3306 = vlaneseq
        %v3307 = vshrl.u32 %v3306, 7
        %v3308 = vsub.s32 %v3305, %v3307
        %v3309 = vrot.slane %v3302, %v3308
        %v3310 = vcombine.low %v3268, %v3284
        %v3312 = vunpack.c.l.s4 1983009808
        %v3313 = vunpack.c.0.s8 %v3312
        %v3314 = vlaneseq
        %v3315 = vshrl.u32 %v3314, 7
        %v3316 = vsub.s32 %v3313, %v3315
        %v3317 = vrot.slane %v3310, %v3316
        %v3320 = vcombine.low %v3309, %v3317
        %v3322 = vunpack.c.l.s4 1934713408
        %v3323 = vunpack.c.0.s8 %v3322
        %v3324 = vlaneseq
        %v3325 = vshrl.u32 %v3324, 7
        %v3326 = vsub.s32 %v3323, %v3325
        %v3327 = vrot.slane %v3320, %v3326
        %v3328 = vcombine.low %v3292, %v3298
        %v3330 = vunpack.c.l.s4 1934713408
        %v3331 = vunpack.c.0.s8 %v3330
        %v3332 = vlaneseq
        %v3333 = vshrl.u32 %v3332, 7
        %v3334 = vsub.s32 %v3331, %v3333
        %v3335 = vrot.slane %v3328, %v3334
        %v3336 = vcombine.low %v3327, %v3335
        %v3337 = vcombine.high %v3327, %v3335
        %v3338 = vcombine.low %v3264, %v3280
        %v3340 = vunpack.c.l.s4 1983009808
        %v3341 = vunpack.c.0.s8 %v3340
        %v3342 = vlaneseq
        %v3343 = vshrl.u32 %v3342, 7
        %v3344 = vsub.s32 %v3341, %v3343
        %v3345 = vrot.slane %v3338, %v3344
        %v3346 = vcombine.low %v3272, %v3288
        %v3348 = vunpack.c.l.s4 1983009808
        %v3349 = vunpack.c.0.s8 %v3348
        %v3350 = vlaneseq
        %v3351 = vshrl.u32 %v3350, 7
        %v3352 = vsub.s32 %v3349, %v3351
        %v3353 = vrot.slane %v3346, %v3352
        %v3356 = vcombine.low %v3345, %v3353
        %v3358 = vunpack.c.l.s4 1934713408
        %v3359 = vunpack.c.0.s8 %v3358
        %v3360 = vlaneseq
        %v3361 = vshrl.u32 %v3360, 7
        %v3362 = vsub.s32 %v3359, %v3361
        %v3363 = vrot.slane %v3356, %v3362
        %v3364 = vcombine.low %v3295, %v3301
        %v3366 = vunpack.c.l.s4 1934713408
        %v3367 = vunpack.c.0.s8 %v3366
        %v3368 = vlaneseq
        %v3369 = vshrl.u32 %v3368, 7
        %v3370 = vsub.s32 %v3367, %v3369
        %v3371 = vrot.slane %v3364, %v3370
        %v3372 = vcombine.low %v3363, %v3371
        %v3373 = vcombine.high %v3363, %v3371
        %v3376 = vpack.i.b16 %v3372, %v3336
        %v3377 = vshrl.u32 %v3336, 16
        %v3378 = vshrl.u32 %v3372, 16
        %v3379 = vpack.i.b16 %v3378, %v3377
        %v3382 = vpack.i.b16 %v3373, %v3337
        %v3383 = vshrl.u32 %v3337, 16
        %v3384 = vshrl.u32 %v3373, 16
        %v3385 = vpack.i.b16 %v3384, %v3383
        %v3386 = vpack.c.bf16 %v3088, %v3085
        %3388 = vrot.lane.b32.xlu0 %v3386, 120
        %v3389 = vpop.permute.xlu0 %3388
        %3391 = vrot.lane.b32.xlu0 %v3386, 112
        %v3392 = vpop.permute.xlu0 %3391
        %3394 = vrot.lane.b32.xlu0 %v3386, 104
        %v3395 = vpop.permute.xlu0 %3394
        %v3398 = vunpack.c.l.s4 1983009808
        %v3399 = vunpack.c.0.s8 %v3398
        %v3400 = vlaneseq
        %v3401 = vshrl.u32 %v3400, 7
        %v3402 = vsub.s32 %v3399, %v3401
        %v3403 = vrot.slane %v3386, %v3402
        %v3404 = vcombine.high %v3386, 0
        %v3406 = vunpack.c.l.s4 1983009808
        %v3407 = vunpack.c.0.s8 %v3406
        %v3408 = vlaneseq
        %v3409 = vshrl.u32 %v3408, 7
        %v3410 = vsub.s32 %v3407, %v3409
        %v3411 = vrot.slane %v3392, %v3410
        %v3412 = vcombine.high %v3392, 0
        %v3413 = vcombine.low %v3403, %v3411
        %v3414 = vcombine.high %v3403, %v3411
        %v3416 = vunpack.c.l.s4 1934713408
        %v3417 = vunpack.c.0.s8 %v3416
        %v3418 = vlaneseq
        %v3419 = vshrl.u32 %v3418, 7
        %v3420 = vsub.s32 %v3417, %v3419
        %v3421 = vrot.slane %v3413, %v3420
        %v3423 = vunpack.c.l.s4 1934713408
        %v3424 = vunpack.c.0.s8 %v3423
        %v3425 = vlaneseq
        %v3426 = vshrl.u32 %v3425, 7
        %v3427 = vsub.s32 %v3424, %v3426
        %v3428 = vrot.slane %v3414, %v3427
        %v3429 = vcombine.low %v3404, %v3412
        %v3431 = vunpack.c.l.s4 1934713408
        %v3432 = vunpack.c.0.s8 %v3431
        %v3433 = vlaneseq
        %v3434 = vshrl.u32 %v3433, 7
        %v3435 = vsub.s32 %v3432, %v3434
        %v3436 = vrot.slane %v3429, %v3435
        %v3437 = vcombine.high %v3421, 0
        %v3438 = vcombine.high %v3428, 0
        %v3439 = vcombine.high %v3436, 0
        %v3441 = vunpack.c.l.s4 1983009808
        %v3442 = vunpack.c.0.s8 %v3441
        %v3443 = vlaneseq
        %v3444 = vshrl.u32 %v3443, 7
        %v3445 = vsub.s32 %v3442, %v3444
        %v3446 = vrot.slane %v3389, %v3445
        %v3447 = vcombine.high %v3389, 0
        %v3449 = vunpack.c.l.s4 1983009808
        %v3450 = vunpack.c.0.s8 %v3449
        %v3451 = vlaneseq
        %v3452 = vshrl.u32 %v3451, 7
        %v3453 = vsub.s32 %v3450, %v3452
        %v3454 = vrot.slane %v3395, %v3453
        %v3455 = vcombine.high %v3395, 0
        %v3456 = vcombine.low %v3446, %v3454
        %v3457 = vcombine.high %v3446, %v3454
        %v3459 = vunpack.c.l.s4 1934713408
        %v3460 = vunpack.c.0.s8 %v3459
        %v3461 = vlaneseq
        %v3462 = vshrl.u32 %v3461, 7
        %v3463 = vsub.s32 %v3460, %v3462
        %v3464 = vrot.slane %v3456, %v3463
        %v3466 = vunpack.c.l.s4 1934713408
        %v3467 = vunpack.c.0.s8 %v3466
        %v3468 = vlaneseq
        %v3469 = vshrl.u32 %v3468, 7
        %v3470 = vsub.s32 %v3467, %v3469
        %v3471 = vrot.slane %v3457, %v3470
        %v3472 = vcombine.low %v3447, %v3455
        %v3474 = vunpack.c.l.s4 1934713408
        %v3475 = vunpack.c.0.s8 %v3474
        %v3476 = vlaneseq
        %v3477 = vshrl.u32 %v3476, 7
        %v3478 = vsub.s32 %v3475, %v3477
        %v3479 = vrot.slane %v3472, %v3478
        %v3480 = vcombine.high %v3464, 0
        %v3481 = vcombine.high %v3471, 0
        %v3482 = vcombine.high %v3479, 0
        %v3485 = vpack.i.b16 %v3464, %v3421
        %v3487 = vshrl.u32 %v3421, 16
        %v3488 = vshrl.u32 %v3464, 16
        %v3489 = vpack.i.b16 %v3488, %v3487
        %v3493 = vpack.i.b16 %v3480, %v3437
        %v3495 = vshrl.u32 %v3437, 16
        %v3496 = vshrl.u32 %v3480, 16
        %v3497 = vpack.i.b16 %v3496, %v3495
        %v3501 = vpack.i.b16 %v3471, %v3428
        %v3503 = vshrl.u32 %v3428, 16
        %v3504 = vshrl.u32 %v3471, 16
        %v3505 = vpack.i.b16 %v3504, %v3503
        %v3509 = vpack.i.b16 %v3481, %v3438
        %v3511 = vshrl.u32 %v3438, 16
        %v3512 = vshrl.u32 %v3481, 16
        %v3513 = vpack.i.b16 %v3512, %v3511
        %v3517 = vpack.i.b16 %v3479, %v3436
        %v3518 = vshrl.u32 %v3436, 16
        %v3519 = vshrl.u32 %v3479, 16
        %v3520 = vpack.i.b16 %v3519, %v3518
        %v3523 = vpack.i.b16 %v3482, %v3439
        %v3524 = vshrl.u32 %v3439, 16
        %v3525 = vshrl.u32 %v3482, 16
        %v3526 = vpack.i.b16 %v3525, %v3524
        %v3527 = vcombine.low %v3485, %v3501
        %v3529 = vunpack.c.l.s4 1983009808
        %v3530 = vunpack.c.0.s8 %v3529
        %v3531 = vlaneseq
        %v3532 = vshrl.u32 %v3531, 7
        %v3533 = vsub.s32 %v3530, %v3532
        %v3534 = vrot.slane %v3527, %v3533
        %v3535 = vcombine.low %v3493, %v3509
        %v3537 = vunpack.c.l.s4 1983009808
        %v3538 = vunpack.c.0.s8 %v3537
        %v3539 = vlaneseq
        %v3540 = vshrl.u32 %v3539, 7
        %v3541 = vsub.s32 %v3538, %v3540
        %v3542 = vrot.slane %v3535, %v3541
        %v3545 = vcombine.low %v3534, %v3542
        %v3547 = vunpack.c.l.s4 1934713408
        %v3548 = vunpack.c.0.s8 %v3547
        %v3549 = vlaneseq
        %v3550 = vshrl.u32 %v3549, 7
        %v3551 = vsub.s32 %v3548, %v3550
        %v3552 = vrot.slane %v3545, %v3551
        %v3553 = vcombine.low %v3517, %v3523
        %v3555 = vunpack.c.l.s4 1934713408
        %v3556 = vunpack.c.0.s8 %v3555
        %v3557 = vlaneseq
        %v3558 = vshrl.u32 %v3557, 7
        %v3559 = vsub.s32 %v3556, %v3558
        %v3560 = vrot.slane %v3553, %v3559
        %v3561 = vcombine.low %v3552, %v3560
        %v3562 = vcombine.high %v3552, %v3560
        %v3563 = vcombine.low %v3489, %v3505
        %v3565 = vunpack.c.l.s4 1983009808
        %v3566 = vunpack.c.0.s8 %v3565
        %v3567 = vlaneseq
        %v3568 = vshrl.u32 %v3567, 7
        %v3569 = vsub.s32 %v3566, %v3568
        %v3570 = vrot.slane %v3563, %v3569
        %v3571 = vcombine.low %v3497, %v3513
        %v3573 = vunpack.c.l.s4 1983009808
        %v3574 = vunpack.c.0.s8 %v3573
        %v3575 = vlaneseq
        %v3576 = vshrl.u32 %v3575, 7
        %v3577 = vsub.s32 %v3574, %v3576
        %v3578 = vrot.slane %v3571, %v3577
        %v3581 = vcombine.low %v3570, %v3578
        %v3583 = vunpack.c.l.s4 1934713408
        %v3584 = vunpack.c.0.s8 %v3583
        %v3585 = vlaneseq
        %v3586 = vshrl.u32 %v3585, 7
        %v3587 = vsub.s32 %v3584, %v3586
        %v3588 = vrot.slane %v3581, %v3587
        %v3589 = vcombine.low %v3520, %v3526
        %v3591 = vunpack.c.l.s4 1934713408
        %v3592 = vunpack.c.0.s8 %v3591
        %v3593 = vlaneseq
        %v3594 = vshrl.u32 %v3593, 7
        %v3595 = vsub.s32 %v3592, %v3594
        %v3596 = vrot.slane %v3589, %v3595
        %v3597 = vcombine.low %v3588, %v3596
        %v3598 = vcombine.high %v3588, %v3596
        %v3601 = vpack.i.b16 %v3597, %v3561
        %v3602 = vshrl.u32 %v3561, 16
        %v3603 = vshrl.u32 %v3597, 16
        %v3604 = vpack.i.b16 %v3603, %v3602
        %v3607 = vpack.i.b16 %v3598, %v3562
        %v3608 = vshrl.u32 %v3562, 16
        %v3609 = vshrl.u32 %v3598, 16
        %v3610 = vpack.i.b16 %v3609, %v3608
        %vm3611 = vcmp.ne.f32.partialorder %v1408, 0.0
        %v3612 = vsel %vm3611, -1e+09, 0.0
        %v3614 = vlaneseq
        %v3615 = vshrl.u32 %v3614, 7
        %v3616 = vsub.s32 0, %v3615
        %v3617 = vrot.slane %v3612, %v3616
        %v3619 = vadd.f32 %v3617, %v2886
        %v3621 = vsel %vm1416, %v3151, 0
        %v3624 = vsel %vm1416, %v3376, 0
        %3626 = vmatprep.subr.bf16.mxu0 0
        %3627 = vmatpush1.bf16.xpose.msra.mxu0 %v3624
        %3628 = vmatprep.subr.bf16.mxu0 0
        %3629 = vmatpush1.bf16.xpose.msra.mxu0 0
        %3630 = vmatprep.subr.bf16.mxu0 0
        %3631 = vmatpush1.bf16.xpose.msra.mxu0 0
        %3632 = vmatprep.subr.bf16.mxu0 0
        %3633 = vmatpush1.bf16.xpose.msra.mxu0 0
        %3634 = vmatprep.subr.bf16.mxu0 0
        %3635 = vmatpush1.bf16.xpose.msra.mxu0 0
        %3636 = vmatprep.subr.bf16.mxu0 0
        %3637 = vmatpush1.bf16.xpose.msra.mxu0 0
        %3638 = vmatprep.subr.bf16.mxu0 0
        %3639 = vmatpush1.bf16.xpose.msra.mxu0 0
        %3640 = vmatprep.subr.bf16.mxu0 0
        %3641 = vmatpush1.bf16.xpose.msra.mxu0 0
        %3642 = vmatprep.subr.bf16.mxu0 0
        %3643 = vmatpush1.bf16.xpose.msra.mxu0 0
        %3644 = vmatprep.subr.bf16.mxu0 0
        %3645 = vmatpush1.bf16.xpose.msra.mxu0 0
        %3646 = vmatprep.subr.bf16.mxu0 0
        %3647 = vmatpush1.bf16.xpose.msra.mxu0 0
        %3648 = vmatprep.subr.bf16.mxu0 0
        %3649 = vmatpush1.bf16.xpose.msra.mxu0 0
        %3650 = vmatprep.subr.bf16.mxu0 0
        %3651 = vmatpush1.bf16.xpose.msra.mxu0 0
        %3652 = vmatprep.subr.bf16.mxu0 0
        %3653 = vmatpush1.bf16.xpose.msra.mxu0 0
        %3654 = vmatprep.subr.bf16.mxu0 0
        %3655 = vmatpush1.bf16.xpose.msra.mxu0 0
        %3656 = vmatprep.subr.bf16.mxu0 0
        %3657 = vmatpush1.bf16.xpose.msra.mxu0 0
        %3658 = vmatprep.mubr.bf16.mxu0 0
        %3659 = vmatmul.mubr.bf16.gmra.mrb[0].mxu0 %v3621
        %v3660 = vpop.f32.mrb[0].mxu0
        %v3661 = vadd.f32 %v3619, %v3660
        %v3662 = vpop.f32.mrb[0].mxu0
        %v3663 = vpop.f32.mrb[0].mxu0
        %v3664 = vpop.f32.mrb[0].mxu0
        %3665 = vdwg.mxu0
        %v3667 = vsel %vm1416, %v3154, 0
        %v3670 = vsel %vm1416, %v3379, 0
        %3672 = vmatprep.subr.bf16.mxu0 0
        %3673 = vmatpush1.bf16.xpose.msra.mxu0 %v3670
        %3674 = vmatprep.subr.bf16.mxu0 0
        %3675 = vmatpush1.bf16.xpose.msra.mxu0 0
        %3676 = vmatprep.subr.bf16.mxu0 0
        %3677 = vmatpush1.bf16.xpose.msra.mxu0 0
        %3678 = vmatprep.subr.bf16.mxu0 0
        %3679 = vmatpush1.bf16.xpose.msra.mxu0 0
        %3680 = vmatprep.subr.bf16.mxu0 0
        %3681 = vmatpush1.bf16.xpose.msra.mxu0 0
        %3682 = vmatprep.subr.bf16.mxu0 0
        %3683 = vmatpush1.bf16.xpose.msra.mxu0 0
        %3684 = vmatprep.subr.bf16.mxu0 0
        %3685 = vmatpush1.bf16.xpose.msra.mxu0 0
        %3686 = vmatprep.subr.bf16.mxu0 0
        %3687 = vmatpush1.bf16.xpose.msra.mxu0 0
        %3688 = vmatprep.subr.bf16.mxu0 0
        %3689 = vmatpush1.bf16.xpose.msra.mxu0 0
        %3690 = vmatprep.subr.bf16.mxu0 0
        %3691 = vmatpush1.bf16.xpose.msra.mxu0 0
        %3692 = vmatprep.subr.bf16.mxu0 0
        %3693 = vmatpush1.bf16.xpose.msra.mxu0 0
        %3694 = vmatprep.subr.bf16.mxu0 0
        %3695 = vmatpush1.bf16.xpose.msra.mxu0 0
        %3696 = vmatprep.subr.bf16.mxu0 0
        %3697 = vmatpush1.bf16.xpose.msra.mxu0 0
        %3698 = vmatprep.subr.bf16.mxu0 0
        %3699 = vmatpush1.bf16.xpose.msra.mxu0 0
        %3700 = vmatprep.subr.bf16.mxu0 0
        %3701 = vmatpush1.bf16.xpose.msra.mxu0 0
        %3702 = vmatprep.subr.bf16.mxu0 0
        %3703 = vmatpush1.bf16.xpose.msra.mxu0 0
        %3704 = vmatprep.mubr.bf16.mxu0 0
        %3705 = vmatmul.mubr.bf16.gmra.mrb[0].mxu0 %v3667
        %v3706 = vpop.f32.mrb[0].mxu0
        %v3707 = vadd.f32 %v3619, %v3706
        %v3708 = vpop.f32.mrb[0].mxu0
        %v3709 = vpop.f32.mrb[0].mxu0
        %v3710 = vpop.f32.mrb[0].mxu0
        %3711 = vdwg.mxu0
        %v3713 = vsel %vm1416, %v3157, 0
        %v3716 = vsel %vm1416, %v3382, 0
        %3718 = vmatprep.subr.bf16.mxu0 0
        %3719 = vmatpush1.bf16.xpose.msra.mxu0 %v3716
        %3720 = vmatprep.subr.bf16.mxu0 0
        %3721 = vmatpush1.bf16.xpose.msra.mxu0 0
        %3722 = vmatprep.subr.bf16.mxu0 0
        %3723 = vmatpush1.bf16.xpose.msra.mxu0 0
        %3724 = vmatprep.subr.bf16.mxu0 0
        %3725 = vmatpush1.bf16.xpose.msra.mxu0 0
        %3726 = vmatprep.subr.bf16.mxu0 0
        %3727 = vmatpush1.bf16.xpose.msra.mxu0 0
        %3728 = vmatprep.subr.bf16.mxu0 0
        %3729 = vmatpush1.bf16.xpose.msra.mxu0 0
        %3730 = vmatprep.subr.bf16.mxu0 0
        %3731 = vmatpush1.bf16.xpose.msra.mxu0 0
        %3732 = vmatprep.subr.bf16.mxu0 0
        %3733 = vmatpush1.bf16.xpose.msra.mxu0 0
        %3734 = vmatprep.subr.bf16.mxu0 0
        %3735 = vmatpush1.bf16.xpose.msra.mxu0 0
        %3736 = vmatprep.subr.bf16.mxu0 0
        %3737 = vmatpush1.bf16.xpose.msra.mxu0 0
        %3738 = vmatprep.subr.bf16.mxu0 0
        %3739 = vmatpush1.bf16.xpose.msra.mxu0 0
        %3740 = vmatprep.subr.bf16.mxu0 0
        %3741 = vmatpush1.bf16.xpose.msra.mxu0 0
        %3742 = vmatprep.subr.bf16.mxu0 0
        %3743 = vmatpush1.bf16.xpose.msra.mxu0 0
        %3744 = vmatprep.subr.bf16.mxu0 0
        %3745 = vmatpush1.bf16.xpose.msra.mxu0 0
        %3746 = vmatprep.subr.bf16.mxu0 0
        %3747 = vmatpush1.bf16.xpose.msra.mxu0 0
        %3748 = vmatprep.subr.bf16.mxu0 0
        %3749 = vmatpush1.bf16.xpose.msra.mxu0 0
        %3750 = vmatprep.mubr.bf16.mxu0 0
        %3751 = vmatmul.mubr.bf16.gmra.mrb[0].mxu0 %v3713
        %v3752 = vpop.f32.mrb[0].mxu0
        %v3753 = vadd.f32 %v3619, %v3752
        %v3754 = vpop.f32.mrb[0].mxu0
        %v3755 = vpop.f32.mrb[0].mxu0
        %v3756 = vpop.f32.mrb[0].mxu0
        %3757 = vdwg.mxu0
        %v3759 = vsel %vm1416, %v3160, 0
        %v3762 = vsel %vm1416, %v3385, 0
        %3764 = vmatprep.subr.bf16.mxu0 0
        %3765 = vmatpush1.bf16.xpose.msra.mxu0 %v3762
        %3766 = vmatprep.subr.bf16.mxu0 0
        %3767 = vmatpush1.bf16.xpose.msra.mxu0 0
        %3768 = vmatprep.subr.bf16.mxu0 0
        %3769 = vmatpush1.bf16.xpose.msra.mxu0 0
        %3770 = vmatprep.subr.bf16.mxu0 0
        %3771 = vmatpush1.bf16.xpose.msra.mxu0 0
        %3772 = vmatprep.subr.bf16.mxu0 0
        %3773 = vmatpush1.bf16.xpose.msra.mxu0 0
        %3774 = vmatprep.subr.bf16.mxu0 0
        %3775 = vmatpush1.bf16.xpose.msra.mxu0 0
        %3776 = vmatprep.subr.bf16.mxu0 0
        %3777 = vmatpush1.bf16.xpose.msra.mxu0 0
        %3778 = vmatprep.subr.bf16.mxu0 0
        %3779 = vmatpush1.bf16.xpose.msra.mxu0 0
        %3780 = vmatprep.subr.bf16.mxu0 0
        %3781 = vmatpush1.bf16.xpose.msra.mxu0 0
        %3782 = vmatprep.subr.bf16.mxu0 0
        %3783 = vmatpush1.bf16.xpose.msra.mxu0 0
        %3784 = vmatprep.subr.bf16.mxu0 0
        %3785 = vmatpush1.bf16.xpose.msra.mxu0 0
        %3786 = vmatprep.subr.bf16.mxu0 0
        %3787 = vmatpush1.bf16.xpose.msra.mxu0 0
        %3788 = vmatprep.subr.bf16.mxu0 0
        %3789 = vmatpush1.bf16.xpose.msra.mxu0 0
        %3790 = vmatprep.subr.bf16.mxu0 0
        %3791 = vmatpush1.bf16.xpose.msra.mxu0 0
        %3792 = vmatprep.subr.bf16.mxu0 0
        %3793 = vmatpush1.bf16.xpose.msra.mxu0 0
        %3794 = vmatprep.subr.bf16.mxu0 0
        %3795 = vmatpush1.bf16.xpose.msra.mxu0 0
        %3796 = vmatprep.mubr.bf16.mxu0 0
        %3797 = vmatmul.mubr.bf16.gmra.mrb[0].mxu0 %v3759
        %v3798 = vpop.f32.mrb[0].mxu0
        %v3799 = vadd.f32 %v3619, %v3798
        %v3800 = vpop.f32.mrb[0].mxu0
        %v3801 = vpop.f32.mrb[0].mxu0
        %v3802 = vpop.f32.mrb[0].mxu0
        %3803 = vdwg.mxu0
        %vm3804 = vcmask 92160
        %v3805 = vsel %vm3804, %v3661, -inf
        %3806 = vmax.xlane.f32.xlu0 %v3805
        %v3807 = vpop.xlane.xlu0 %3806
        %v3808 = vsel %vm3804, %v3707, -inf
        %3809 = vmax.xlane.f32.xlu0 %v3808
        %v3810 = vpop.xlane.xlu0 %3809
        %v3811 = vsel %vm3804, %v3753, -inf
        %3812 = vmax.xlane.f32.xlu0 %v3811
        %v3813 = vpop.xlane.xlu0 %3812
        %v3814 = vsel %vm3804, %v3799, -inf
        %3815 = vmax.xlane.f32.xlu0 %v3814
        %v3816 = vpop.xlane.xlu0 %3815
        %v3817 = vsub.f32 %v3661, %v3807
        %v3818 = vsub.f32 %v3707, %v3810
        %v3819 = vsub.f32 %v3753, %v3813
        %v3820 = vsub.f32 %v3799, %v3816
        %v3821 = vmul.f32 %v3817, 1.442695
        %v3822 = vpow.pop %v3821
        %v3823 = vmul.f32 %v3818, 1.442695
        %v3824 = vpow.pop %v3823
        %v3825 = vmul.f32 %v3819, 1.442695
        %v3826 = vpow.pop %v3825
        %v3827 = vmul.f32 %v3820, 1.442695
        %v3828 = vpow.pop %v3827
        %v3829 = vsel %vm3804, %v3822, 0.0
        %3830 = vadd.xlane.f32.xlu0 %v3829
        %v3831 = vpop.xlane.xlu0 %3830
        %v3832 = vsel %vm3804, %v3824, 0.0
        %3833 = vadd.xlane.f32.xlu0 %v3832
        %v3834 = vpop.xlane.xlu0 %3833
        %v3835 = vsel %vm3804, %v3826, 0.0
        %3836 = vadd.xlane.f32.xlu0 %v3835
        %v3837 = vpop.xlane.xlu0 %3836
        %v3838 = vsel %vm3804, %v3828, 0.0
        %3839 = vadd.xlane.f32.xlu0 %v3838
        %v3840 = vpop.xlane.xlu0 %3839
        %v3841 = vrcp.pop %v3831
        %v3842 = vrcp.pop %v3834
        %v3843 = vrcp.pop %v3837
        %v3844 = vrcp.pop %v3840
        %v3845 = vmul.f32 %v3822, %v3841
        %v3846 = vmul.f32 %v3824, %v3842
        %v3847 = vmul.f32 %v3826, %v3843
        %v3848 = vmul.f32 %v3828, %v3844
        %v3849 = vpack.c.bf16 %v3845, %v3845
        %v3850 = vpack.c.bf16 %v3846, %v3846
        %v3851 = vpack.c.bf16 %v3847, %v3847
        %v3852 = vpack.c.bf16 %v3848, %v3848
        %vm3853 = vcmask 97280
        %v3855 = vsel %vm3853, %v3849, 0
        %vm3857 = vcmask 1045504
        %v3859 = vsel %vm3857, %v3601, 0
        %3861 = vmatprep.subr.bf16.mxu0 0
        %3862 = vmatpush1.bf16.msra.mxu0 %v3859
        %3863 = vmatprep.subr.bf16.mxu0 0
        %3864 = vmatpush1.bf16.msra.mxu0 0
        %3865 = vmatprep.subr.bf16.mxu0 0
        %3866 = vmatpush1.bf16.msra.mxu0 0
        %3867 = vmatprep.subr.bf16.mxu0 0
        %3868 = vmatpush1.bf16.msra.mxu0 0
        %3869 = vmatprep.subr.bf16.mxu0 0
        %3870 = vmatpush1.bf16.msra.mxu0 0
        %3871 = vmatprep.subr.bf16.mxu0 0
        %3872 = vmatpush1.bf16.msra.mxu0 0
        %3873 = vmatprep.subr.bf16.mxu0 0
        %3874 = vmatpush1.bf16.msra.mxu0 0
        %3875 = vmatprep.subr.bf16.mxu0 0
        %3876 = vmatpush1.bf16.msra.mxu0 0
        %3877 = vmatprep.subr.bf16.mxu0 0
        %3878 = vmatpush1.bf16.msra.mxu0 0
        %3879 = vmatprep.subr.bf16.mxu0 0
        %3880 = vmatpush1.bf16.msra.mxu0 0
        %3881 = vmatprep.subr.bf16.mxu0 0
        %3882 = vmatpush1.bf16.msra.mxu0 0
        %3883 = vmatprep.subr.bf16.mxu0 0
        %3884 = vmatpush1.bf16.msra.mxu0 0
        %3885 = vmatprep.subr.bf16.mxu0 0
        %3886 = vmatpush1.bf16.msra.mxu0 0
        %3887 = vmatprep.subr.bf16.mxu0 0
        %3888 = vmatpush1.bf16.msra.mxu0 0
        %3889 = vmatprep.subr.bf16.mxu0 0
        %3890 = vmatpush1.bf16.msra.mxu0 0
        %3891 = vmatprep.subr.bf16.mxu0 0
        %3892 = vmatpush1.bf16.msra.mxu0 0
        %3893 = vmatprep.mubr.bf16.mxu0 0
        %3894 = vmatmul.mubr.bf16.gmra.mrb[0].mxu0 %v3855
        %v3895 = vpop.f32.mrb[0].mxu0
        %v3896 = vadd.f32 0.0, %v3895
        %v3897 = vpop.f32.mrb[0].mxu0
        %v3898 = vpop.f32.mrb[0].mxu0
        %v3899 = vpop.f32.mrb[0].mxu0
        %3900 = vdwg.mxu0
        %v3902 = vsel %vm3853, %v3850, 0
        %v3905 = vsel %vm3857, %v3604, 0
        %3907 = vmatprep.subr.bf16.mxu0 0
        %3908 = vmatpush1.bf16.msra.mxu0 %v3905
        %3909 = vmatprep.subr.bf16.mxu0 0
        %3910 = vmatpush1.bf16.msra.mxu0 0
        %3911 = vmatprep.subr.bf16.mxu0 0
        %3912 = vmatpush1.bf16.msra.mxu0 0
        %3913 = vmatprep.subr.bf16.mxu0 0
        %3914 = vmatpush1.bf16.msra.mxu0 0
        %3915 = vmatprep.subr.bf16.mxu0 0
        %3916 = vmatpush1.bf16.msra.mxu0 0
        %3917 = vmatprep.subr.bf16.mxu0 0
        %3918 = vmatpush1.bf16.msra.mxu0 0
        %3919 = vmatprep.subr.bf16.mxu0 0
        %3920 = vmatpush1.bf16.msra.mxu0 0
        %3921 = vmatprep.subr.bf16.mxu0 0
        %3922 = vmatpush1.bf16.msra.mxu0 0
        %3923 = vmatprep.subr.bf16.mxu0 0
        %3924 = vmatpush1.bf16.msra.mxu0 0
        %3925 = vmatprep.subr.bf16.mxu0 0
        %3926 = vmatpush1.bf16.msra.mxu0 0
        %3927 = vmatprep.subr.bf16.mxu0 0
        %3928 = vmatpush1.bf16.msra.mxu0 0
        %3929 = vmatprep.subr.bf16.mxu0 0
        %3930 = vmatpush1.bf16.msra.mxu0 0
        %3931 = vmatprep.subr.bf16.mxu0 0
        %3932 = vmatpush1.bf16.msra.mxu0 0
        %3933 = vmatprep.subr.bf16.mxu0 0
        %3934 = vmatpush1.bf16.msra.mxu0 0
        %3935 = vmatprep.subr.bf16.mxu0 0
        %3936 = vmatpush1.bf16.msra.mxu0 0
        %3937 = vmatprep.subr.bf16.mxu0 0
        %3938 = vmatpush1.bf16.msra.mxu0 0
        %3939 = vmatprep.mubr.bf16.mxu0 0
        %3940 = vmatmul.mubr.bf16.gmra.mrb[0].mxu0 %v3902
        %v3941 = vpop.f32.mrb[0].mxu0
        %v3942 = vadd.f32 0.0, %v3941
        %v3943 = vpop.f32.mrb[0].mxu0
        %v3944 = vpop.f32.mrb[0].mxu0
        %v3945 = vpop.f32.mrb[0].mxu0
        %3946 = vdwg.mxu0
        %v3948 = vsel %vm3853, %v3851, 0
        %v3951 = vsel %vm3857, %v3607, 0
        %3953 = vmatprep.subr.bf16.mxu0 0
        %3954 = vmatpush1.bf16.msra.mxu0 %v3951
        %3955 = vmatprep.subr.bf16.mxu0 0
        %3956 = vmatpush1.bf16.msra.mxu0 0
        %3957 = vmatprep.subr.bf16.mxu0 0
        %3958 = vmatpush1.bf16.msra.mxu0 0
        %3959 = vmatprep.subr.bf16.mxu0 0
        %3960 = vmatpush1.bf16.msra.mxu0 0
        %3961 = vmatprep.subr.bf16.mxu0 0
        %3962 = vmatpush1.bf16.msra.mxu0 0
        %3963 = vmatprep.subr.bf16.mxu0 0
        %3964 = vmatpush1.bf16.msra.mxu0 0
        %3965 = vmatprep.subr.bf16.mxu0 0
        %3966 = vmatpush1.bf16.msra.mxu0 0
        %3967 = vmatprep.subr.bf16.mxu0 0
        %3968 = vmatpush1.bf16.msra.mxu0 0
        %3969 = vmatprep.subr.bf16.mxu0 0
        %3970 = vmatpush1.bf16.msra.mxu0 0
        %3971 = vmatprep.subr.bf16.mxu0 0
        %3972 = vmatpush1.bf16.msra.mxu0 0
        %3973 = vmatprep.subr.bf16.mxu0 0
        %3974 = vmatpush1.bf16.msra.mxu0 0
        %3975 = vmatprep.subr.bf16.mxu0 0
        %3976 = vmatpush1.bf16.msra.mxu0 0
        %3977 = vmatprep.subr.bf16.mxu0 0
        %3978 = vmatpush1.bf16.msra.mxu0 0
        %3979 = vmatprep.subr.bf16.mxu0 0
        %3980 = vmatpush1.bf16.msra.mxu0 0
        %3981 = vmatprep.subr.bf16.mxu0 0
        %3982 = vmatpush1.bf16.msra.mxu0 0
        %3983 = vmatprep.subr.bf16.mxu0 0
        %3984 = vmatpush1.bf16.msra.mxu0 0
        %3985 = vmatprep.mubr.bf16.mxu0 0
        %3986 = vmatmul.mubr.bf16.gmra.mrb[0].mxu0 %v3948
        %v3987 = vpop.f32.mrb[0].mxu0
        %v3988 = vadd.f32 0.0, %v3987
        %v3989 = vpop.f32.mrb[0].mxu0
        %v3990 = vpop.f32.mrb[0].mxu0
        %v3991 = vpop.f32.mrb[0].mxu0
        %3992 = vdwg.mxu0
        %v3994 = vsel %vm3853, %v3852, 0
        %v3997 = vsel %vm3857, %v3610, 0
        %3999 = vmatprep.subr.bf16.mxu0 0
        %4000 = vmatpush1.bf16.msra.mxu0 %v3997
        %4001 = vmatprep.subr.bf16.mxu0 0
        %4002 = vmatpush1.bf16.msra.mxu0 0
        %4003 = vmatprep.subr.bf16.mxu0 0
        %4004 = vmatpush1.bf16.msra.mxu0 0
        %4005 = vmatprep.subr.bf16.mxu0 0
        %4006 = vmatpush1.bf16.msra.mxu0 0
        %4007 = vmatprep.subr.bf16.mxu0 0
        %4008 = vmatpush1.bf16.msra.mxu0 0
        %4009 = vmatprep.subr.bf16.mxu0 0
        %4010 = vmatpush1.bf16.msra.mxu0 0
        %4011 = vmatprep.subr.bf16.mxu0 0
        %4012 = vmatpush1.bf16.msra.mxu0 0
        %4013 = vmatprep.subr.bf16.mxu0 0
        %4014 = vmatpush1.bf16.msra.mxu0 0
        %4015 = vmatprep.subr.bf16.mxu0 0
        %4016 = vmatpush1.bf16.msra.mxu0 0
        %4017 = vmatprep.subr.bf16.mxu0 0
        %4018 = vmatpush1.bf16.msra.mxu0 0
        %4019 = vmatprep.subr.bf16.mxu0 0
        %4020 = vmatpush1.bf16.msra.mxu0 0
        %4021 = vmatprep.subr.bf16.mxu0 0
        %4022 = vmatpush1.bf16.msra.mxu0 0
        %4023 = vmatprep.subr.bf16.mxu0 0
        %4024 = vmatpush1.bf16.msra.mxu0 0
        %4025 = vmatprep.subr.bf16.mxu0 0
        %4026 = vmatpush1.bf16.msra.mxu0 0
        %4027 = vmatprep.subr.bf16.mxu0 0
        %4028 = vmatpush1.bf16.msra.mxu0 0
        %4029 = vmatprep.subr.bf16.mxu0 0
        %4030 = vmatpush1.bf16.msra.mxu0 0
        %4031 = vmatprep.mubr.bf16.mxu0 0
        %4032 = vmatmul.mubr.bf16.gmra.mrb[0].mxu0 %v3994
        %v4033 = vpop.f32.mrb[0].mxu0
        %v4034 = vadd.f32 0.0, %v4033
        %v4035 = vpop.f32.mrb[0].mxu0
        %v4036 = vpop.f32.mrb[0].mxu0
        %v4037 = vpop.f32.mrb[0].mxu0
        %4038 = vdwg.mxu0
        %v4039 = vcombine.low %v3896, %v3988
        %v4041 = vunpack.c.l.s4 1983009808
        %v4042 = vunpack.c.0.s8 %v4041
        %v4043 = vlaneseq
        %v4044 = vshrl.u32 %v4043, 7
        %v4045 = vsub.s32 %v4042, %v4044
        %v4046 = vrot.slane %v4039, %v4045
        %v4047 = vcombine.low %v3942, %v4034
        %v4049 = vunpack.c.l.s4 1983009808
        %v4050 = vunpack.c.0.s8 %v4049
        %v4051 = vlaneseq
        %v4052 = vshrl.u32 %v4051, 7
        %v4053 = vsub.s32 %v4050, %v4052
        %v4054 = vrot.slane %v4047, %v4053
        %v4055 = vcombine.low %v4046, %v4054
        %v4056 = vcombine.high %v4046, %v4054
        %v4058 = vunpack.c.l.s4 1934713408
        %v4059 = vunpack.c.0.s8 %v4058
        %v4060 = vlaneseq
        %v4061 = vshrl.u32 %v4060, 7
        %v4062 = vsub.s32 %v4059, %v4061
        %v4063 = vrot.slane %v4055, %v4062
        %v4065 = vunpack.c.l.s4 1934713408
        %v4066 = vunpack.c.0.s8 %v4065
        %v4067 = vlaneseq
        %v4068 = vshrl.u32 %v4067, 7
        %v4069 = vsub.s32 %v4066, %v4068
        %v4070 = vrot.slane %v4056, %v4069
        %v4071 = vcombine.low %v4063, %v4070
        %v4073 = vunpack.c.l.s4 1983009808
        %v4074 = vunpack.c.0.s8 %v4073
        %v4075 = vlaneseq
        %v4076 = vshrl.u32 %v4075, 7
        %v4077 = vsub.s32 %v4074, %v4076
        %v4078 = vrot.slane %v4071, %v4077
        %v4079 = vcombine.high %v4063, 0.0
        %v4081 = vunpack.c.l.s4 1983009808
        %v4082 = vunpack.c.0.s8 %v4081
        %v4083 = vlaneseq
        %v4084 = vshrl.u32 %v4083, 7
        %v4085 = vsub.s32 %v4082, %v4084
        %v4086 = vrot.slane %v4079, %v4085
        %v4087 = vcombine.low %v4078, %v4086
        %v4088 = vcombine.high %v4078, %v4086
        %v4090 = vunpack.c.l.s4 1934713408
        %v4091 = vunpack.c.0.s8 %v4090
        %v4092 = vlaneseq
        %v4093 = vshrl.u32 %v4092, 7
        %v4094 = vsub.s32 %v4091, %v4093
        %v4095 = vrot.slane %v4087, %v4094
        %v4097 = vunpack.c.l.s4 1934713408
        %v4098 = vunpack.c.0.s8 %v4097
        %v4099 = vlaneseq
        %v4100 = vshrl.u32 %v4099, 7
        %v4101 = vsub.s32 %v4098, %v4100
        %v4102 = vrot.slane %v4088, %v4101
        %v4103 = vcombine.high %v4095, 0.0
        %v4104 = vcombine.high %v4102, 0.0
        %4106 = vrot.lane.b32.xlu0 %v4103, 8
        %v4107 = vpop.permute.xlu0 %4106
        %4110 = vrot.lane.b32.xlu0 %v4102, 16
        %v4111 = vpop.permute.xlu0 %4110
        %4114 = vrot.lane.b32.xlu0 %v4104, 24
        %v4115 = vpop.permute.xlu0 %4114
        %v4117 = vsel %vm1416, %v4095, %v4107
        %v4118 = vsel %vm2582, %v4117, %v4111
        %v4119 = vsel %vm2584, %v4118, %v4115
        %v4120 = vpack.c.bf16 %v4119, %v4119
        %v4121 = vld [vmem:[%s59] sm:$0xf]
        %v4122 = vld [vmem:[%s59 + $0x4] sm:$0xf]
        %v4123 = vld [vmem:[%s59 + $0x8] sm:$0xf]
        %v4124 = vld [vmem:[%s59 + $0xc] sm:$0xf]
        %v4125 = vld [vmem:[%s61] sm:$0x1]
        %v4127 = vlaneseq
        %v4128 = vshrl.u32 %v4127, 7
        %v4129 = vsub.s32 0, %v4128
        %v4130 = vrot.slane %v4125, %v4129
        %v4136 = vunpack.c.l.b16 %v4121
        %v4137 = vunpack.c.l.b16 %v4122
        %v4138 = vunpack.c.l.b16 %v4123
        %v4139 = vunpack.c.l.b16 %v4124
        %v4140 = vpack.c.b16 %v4137, %v4136
        %v4141 = vpack.c.b16 %v4139, %v4138
        %v4145 = vsel %vm1488, %v4120, 0
        %4147 = vmatprep.subr.bf16.mxu0 0
        %4148 = vmatpush1.bf16.msra.mxu0 %v4140
        %4149 = vmatprep.subr.bf16.mxu0 0
        %4150 = vmatpush1.bf16.msra.mxu0 %v4141
        %4151 = vmatprep.subr.bf16.mxu0 0
        %4152 = vmatpush1.bf16.msra.mxu0 0
        %4153 = vmatprep.subr.bf16.mxu0 0
        %4154 = vmatpush1.bf16.msra.mxu0 0
        %4155 = vmatprep.subr.bf16.mxu0 0
        %4156 = vmatpush1.bf16.msra.mxu0 0
        %4157 = vmatprep.subr.bf16.mxu0 0
        %4158 = vmatpush1.bf16.msra.mxu0 0
        %4159 = vmatprep.subr.bf16.mxu0 0
        %4160 = vmatpush1.bf16.msra.mxu0 0
        %4161 = vmatprep.subr.bf16.mxu0 0
        %4162 = vmatpush1.bf16.msra.mxu0 0
        %4163 = vmatprep.subr.bf16.mxu0 0
        %4164 = vmatpush1.bf16.msra.mxu0 0
        %4165 = vmatprep.subr.bf16.mxu0 0
        %4166 = vmatpush1.bf16.msra.mxu0 0
        %4167 = vmatprep.subr.bf16.mxu0 0
        %4168 = vmatpush1.bf16.msra.mxu0 0
        %4169 = vmatprep.subr.bf16.mxu0 0
        %4170 = vmatpush1.bf16.msra.mxu0 0
        %4171 = vmatprep.subr.bf16.mxu0 0
        %4172 = vmatpush1.bf16.msra.mxu0 0
        %4173 = vmatprep.subr.bf16.mxu0 0
        %4174 = vmatpush1.bf16.msra.mxu0 0
        %4175 = vmatprep.subr.bf16.mxu0 0
        %4176 = vmatpush1.bf16.msra.mxu0 0
        %4177 = vmatprep.subr.bf16.mxu0 0
        %4178 = vmatpush1.bf16.msra.mxu0 0
        %4179 = vmatprep.mubr.bf16.mxu0 0
        %4180 = vmatmul.mubr.bf16.gmra.mrb[0].mxu0 %v4145
        %v4181 = vpop.f32.mrb[0].mxu0
        %v4182 = vadd.f32 %v4130, %v4181
        %v4183 = vpop.f32.mrb[0].mxu0
        %v4184 = vpop.f32.mrb[0].mxu0
        %v4185 = vpop.f32.mrb[0].mxu0
        %4186 = vdwg.mxu0
        %v4187 = vadd.f32 %v2875, %v4182
        %v4188 = vld [vmem:[%s63] sm:$0x1]
        %v4189 = vld [vmem:[%s65] sm:$0x1]
        %v4190 = vsel %vm2656, %v4187, 0.0
        %4191 = vadd.xlane.f32.xlu0 %v4190
        %v4192 = vpop.xlane.xlu0 %4191
        %v4193 = vmul.f32 %v4192, %v2660
        %v4194 = vsub.f32 %v4187, %v4193
        %v4195 = vmul.f32 %v4194, %v4194
        %v4196 = vsel %vm2656, %v4195, 0.0
        %4197 = vadd.xlane.f32.xlu0 %v4196
        %v4198 = vpop.xlane.xlu0 %4197
        %v4199 = vmul.f32 %v4198, %v2660
        %v4200 = vadd.f32 %v4199, 1e-05
        %v4201 = vrsqrt.pop %v4200
        %v4202 = vmul.f32 %v4194, %v4201
        %v4204 = vlaneseq
        %v4205 = vshrl.u32 %v4204, 7
        %v4206 = vsub.s32 0, %v4205
        %v4207 = vrot.slane %v4188, %v4206
        %v4209 = vmul.f32 %v4202, %v4207
        %v4211 = vlaneseq
        %v4212 = vshrl.u32 %v4211, 7
        %v4213 = vsub.s32 0, %v4212
        %v4214 = vrot.slane %v4189, %v4213
        %v4216 = vadd.f32 %v4209, %v4214
        %v4217 = vpack.c.bf16 %v4216, %v4216
        %v4218 = vld [vmem:[%s67] sm:$0xf]
        %v4219 = vld [vmem:[%s67 + $0x4] sm:$0xf]
        %v4220 = vld [vmem:[%s67 + $0x8] sm:$0xf]
        %v4221 = vld [vmem:[%s67 + $0xc] sm:$0xf]
        %v4222 = vld [vmem:[%s69] sm:$0x1]
        %v4224 = vlaneseq
        %v4225 = vshrl.u32 %v4224, 7
        %v4226 = vsub.s32 0, %v4225
        %v4227 = vrot.slane %v4222, %v4226
        %v4233 = vunpack.c.l.b16 %v4218
        %v4234 = vunpack.c.l.b16 %v4219
        %v4235 = vunpack.c.l.b16 %v4220
        %v4236 = vunpack.c.l.b16 %v4221
        %v4237 = vpack.c.b16 %v4234, %v4233
        %v4238 = vpack.c.b16 %v4236, %v4235
        %v4242 = vsel %vm1488, %v4217, 0
        %4244 = vmatprep.subr.bf16.mxu0 0
        %4245 = vmatpush1.bf16.msra.mxu0 %v4237
        %4246 = vmatprep.subr.bf16.mxu0 0
        %4247 = vmatpush1.bf16.msra.mxu0 %v4238
        %4248 = vmatprep.subr.bf16.mxu0 0
        %4249 = vmatpush1.bf16.msra.mxu0 0
        %4250 = vmatprep.subr.bf16.mxu0 0
        %4251 = vmatpush1.bf16.msra.mxu0 0
        %4252 = vmatprep.subr.bf16.mxu0 0
        %4253 = vmatpush1.bf16.msra.mxu0 0
        %4254 = vmatprep.subr.bf16.mxu0 0
        %4255 = vmatpush1.bf16.msra.mxu0 0
        %4256 = vmatprep.subr.bf16.mxu0 0
        %4257 = vmatpush1.bf16.msra.mxu0 0
        %4258 = vmatprep.subr.bf16.mxu0 0
        %4259 = vmatpush1.bf16.msra.mxu0 0
        %4260 = vmatprep.subr.bf16.mxu0 0
        %4261 = vmatpush1.bf16.msra.mxu0 0
        %4262 = vmatprep.subr.bf16.mxu0 0
        %4263 = vmatpush1.bf16.msra.mxu0 0
        %4264 = vmatprep.subr.bf16.mxu0 0
        %4265 = vmatpush1.bf16.msra.mxu0 0
        %4266 = vmatprep.subr.bf16.mxu0 0
        %4267 = vmatpush1.bf16.msra.mxu0 0
        %4268 = vmatprep.subr.bf16.mxu0 0
        %4269 = vmatpush1.bf16.msra.mxu0 0
        %4270 = vmatprep.subr.bf16.mxu0 0
        %4271 = vmatpush1.bf16.msra.mxu0 0
        %4272 = vmatprep.subr.bf16.mxu0 0
        %4273 = vmatpush1.bf16.msra.mxu0 0
        %4274 = vmatprep.subr.bf16.mxu0 0
        %4275 = vmatpush1.bf16.msra.mxu0 0
        %4276 = vmatprep.mubr.bf16.mxu0 0
        %4277 = vmatmul.mubr.bf16.gmra.mrb[0].mxu0 %v4242
        %v4278 = vpop.f32.mrb[0].mxu0
        %v4279 = vadd.f32 %v4227, %v4278
        %v4280 = vpop.f32.mrb[0].mxu0
        %v4281 = vpop.f32.mrb[0].mxu0
        %v4282 = vpop.f32.mrb[0].mxu0
        %4283 = vdwg.mxu0
        %v4284 = vmax.f32 %v4279, 0.0
        %v4285 = vpack.c.bf16 %v4284, %v4284
        %v4286 = vld [vmem:[%s71] sm:$0xf]
        %v4287 = vld [vmem:[%s71 + $0x4] sm:$0xf]
        %v4288 = vld [vmem:[%s71 + $0x8] sm:$0xf]
        %v4289 = vld [vmem:[%s71 + $0xc] sm:$0xf]
        %v4290 = vld [vmem:[%s71 + $0x10] sm:$0xf]
        %v4291 = vld [vmem:[%s71 + $0x14] sm:$0xf]
        %v4292 = vld [vmem:[%s71 + $0x18] sm:$0xf]
        %v4293 = vld [vmem:[%s71 + $0x1c] sm:$0xf]
        %v4294 = vld [vmem:[%s73] sm:$0x1]
        %v4296 = vlaneseq
        %v4297 = vshrl.u32 %v4296, 7
        %v4298 = vsub.s32 0, %v4297
        %v4299 = vrot.slane %v4294, %v4298
        %v4309 = vunpack.c.l.b16 %v4286
        %v4310 = vunpack.c.l.b16 %v4287
        %v4311 = vunpack.c.l.b16 %v4288
        %v4312 = vunpack.c.l.b16 %v4289
        %v4313 = vunpack.c.l.b16 %v4290
        %v4314 = vunpack.c.l.b16 %v4291
        %v4315 = vunpack.c.l.b16 %v4292
        %v4316 = vunpack.c.l.b16 %v4293
        %v4317 = vpack.c.b16 %v4310, %v4309
        %v4318 = vpack.c.b16 %v4312, %v4311
        %v4319 = vpack.c.b16 %v4314, %v4313
        %v4320 = vpack.c.b16 %v4316, %v4315
        %v4326 = vsel %vm2793, %v4285, 0
        %4328 = vmatprep.subr.bf16.mxu0 0
        %4329 = vmatpush1.bf16.msra.mxu0 %v4317
        %4330 = vmatprep.subr.bf16.mxu0 0
        %4331 = vmatpush1.bf16.msra.mxu0 %v4318
        %4332 = vmatprep.subr.bf16.mxu0 0
        %4333 = vmatpush1.bf16.msra.mxu0 %v4319
        %4334 = vmatprep.subr.bf16.mxu0 0
        %4335 = vmatpush1.bf16.msra.mxu0 %v4320
        %4336 = vmatprep.subr.bf16.mxu0 0
        %4337 = vmatpush1.bf16.msra.mxu0 0
        %4338 = vmatprep.subr.bf16.mxu0 0
        %4339 = vmatpush1.bf16.msra.mxu0 0
        %4340 = vmatprep.subr.bf16.mxu0 0
        %4341 = vmatpush1.bf16.msra.mxu0 0
        %4342 = vmatprep.subr.bf16.mxu0 0
        %4343 = vmatpush1.bf16.msra.mxu0 0
        %4344 = vmatprep.subr.bf16.mxu0 0
        %4345 = vmatpush1.bf16.msra.mxu0 0
        %4346 = vmatprep.subr.bf16.mxu0 0
        %4347 = vmatpush1.bf16.msra.mxu0 0
        %4348 = vmatprep.subr.bf16.mxu0 0
        %4349 = vmatpush1.bf16.msra.mxu0 0
        %4350 = vmatprep.subr.bf16.mxu0 0
        %4351 = vmatpush1.bf16.msra.mxu0 0
        %4352 = vmatprep.subr.bf16.mxu0 0
        %4353 = vmatpush1.bf16.msra.mxu0 0
        %4354 = vmatprep.subr.bf16.mxu0 0
        %4355 = vmatpush1.bf16.msra.mxu0 0
        %4356 = vmatprep.subr.bf16.mxu0 0
        %4357 = vmatpush1.bf16.msra.mxu0 0
        %4358 = vmatprep.subr.bf16.mxu0 0
        %4359 = vmatpush1.bf16.msra.mxu0 0
        %4360 = vmatprep.mubr.bf16.mxu0 0
        %4361 = vmatmul.mubr.bf16.gmra.mrb[0].mxu0 %v4326
        %v4362 = vpop.f32.mrb[0].mxu0
        %v4363 = vadd.f32 %v4299, %v4362
        %v4364 = vpop.f32.mrb[0].mxu0
        %v4365 = vpop.f32.mrb[0].mxu0
        %v4366 = vpop.f32.mrb[0].mxu0
        %4367 = vdwg.mxu0
        %v4368 = vadd.f32 %v4216, %v4363
        %v4369 = vld [vmem:[%s75] sm:$0x1]
        %v4370 = vld [vmem:[%s77] sm:$0x1]
        %v4371 = vsel %vm2656, %v4368, 0.0
        %4372 = vadd.xlane.f32.xlu0 %v4371
        %v4373 = vpop.xlane.xlu0 %4372
        %v4374 = vmul.f32 %v4373, %v2660
        %v4375 = vsub.f32 %v4368, %v4374
        %v4376 = vmul.f32 %v4375, %v4375
        %v4377 = vsel %vm2656, %v4376, 0.0
        %4378 = vadd.xlane.f32.xlu0 %v4377
        %v4379 = vpop.xlane.xlu0 %4378
        %v4380 = vmul.f32 %v4379, %v2660
        %v4381 = vadd.f32 %v4380, 1e-05
        %v4382 = vrsqrt.pop %v4381
        %v4383 = vmul.f32 %v4375, %v4382
        %v4385 = vlaneseq
        %v4386 = vshrl.u32 %v4385, 7
        %v4387 = vsub.s32 0, %v4386
        %v4388 = vrot.slane %v4369, %v4387
        %v4390 = vmul.f32 %v4383, %v4388
        %v4392 = vlaneseq
        %v4393 = vshrl.u32 %v4392, 7
        %v4394 = vsub.s32 0, %v4393
        %v4395 = vrot.slane %v4370, %v4394
        %v4397 = vadd.f32 %v4390, %v4395
        %4398 = vst.msk [vmem:[%s1397] sm:$0x7] %vm2656, %v4397
        %p4399 = scmp.lt.s32.totalorder %s102, 1
        %s4400 = scalar_select %p4399, %s102, 1
        %s4401 = smul.addr %s4400, 4
        %s4402 = scalar_lea.vmem %s79, %s4401
        %p4403 = scmp.lt.s32.totalorder %s102, 1
        %s4404 = scalar_select %p4403, %s102, 1
        %s4405 = smul.addr %s4404, 4
        %s4406 = scalar_lea.vmem %s81, %s4405
        // Predicated region
        $region209: #{tpu_custom_call.1} parent=175 // pred_check
          %p4407 = pneg %p964
        $region210: #{tpu_custom_call.1} parent=175 // pred_check_branch
          %4409 = sbr.rel (%p4407) target = $region212
        $region211: #{tpu_custom_call.1} parent=175 // pred_region
          _
        $region212: #{tpu_custom_call.1} parent=175 // pred_fallthru
          _
        // Predicated region
        $region213: #{tpu_custom_call.1} parent=175 // pred_check
          %p4410 = pneg %p990
        $region214: #{tpu_custom_call.1} parent=175 // pred_check_branch
          %4412 = sbr.rel (%p4410) target = $region216
        $region215: #{tpu_custom_call.1} parent=175 // pred_region
          _
        $region216: #{tpu_custom_call.1} parent=175 // pred_fallthru
          _
      $region176: #{tpu_custom_call.1} parent=5 // pred_fallthru
        _
      %p4413 = scmp.le.s32.totalorder 2, %s97
      // Predicated region
      $region217: #{tpu_custom_call.1} parent=5 // pred_check
        %p4414 = pneg %p4413
      $region218: #{tpu_custom_call.1} parent=5 // pred_check_branch
        %4416 = sbr.rel (%p4414) target = $region220
      $region219: #{tpu_custom_call.1} parent=5 // pred_region
        %s4417 = ssub.s32 %s97, 2
        // Predicated region
        $region221: #{tpu_custom_call.1} parent=219 // pred_check
          %p4418 = pneg %p970
        $region222: #{tpu_custom_call.1} parent=219 // pred_check_branch
          %4420 = sbr.rel (%p4418) target = $region224
        $region223: #{tpu_custom_call.1} parent=219 // pred_region
          %p4421 = scmp.lt.s32.totalorder %s103, 1
          %s4422 = scalar_select %p4421, %s103, 1
          %s4423 = smul.addr %s4422, 4
          %s4424 = scalar_lea.vmem %s79, %s4423
        $region224: #{tpu_custom_call.1} parent=219 // pred_fallthru
          _
        // Predicated region
        $region225: #{tpu_custom_call.1} parent=219 // pred_check
          %p4425 = pneg %p996
        $region226: #{tpu_custom_call.1} parent=219 // pred_check_branch
          %4427 = sbr.rel (%p4425) target = $region228
        $region227: #{tpu_custom_call.1} parent=219 // pred_region
          %p4428 = scmp.lt.s32.totalorder %s103, 1
          %s4429 = scalar_select %p4428, %s103, 1
          %s4430 = smul.addr %s4429, 4
          %s4431 = scalar_lea.vmem %s81, %s4430
        $region228: #{tpu_custom_call.1} parent=219 // pred_fallthru
          _
      $region220: #{tpu_custom_call.1} parent=5 // pred_fallthru
        _
    $region6: #{tpu_custom_call.1} parent=1 // loop_footer
      %s101 = sadd.s32 1, %s97
    $region7: #{tpu_custom_call.1} parent=1 // loop_footer_branch
      %96 = sbr.rel target = $region3
    $region8: #{tpu_custom_call.1} parent=1 // loop_exit
      _
    %4432 = vsyncpa [#allocation3], 1
    %s4433 = scalar_lea.sflag [#allocation3], 1
    %4434 = vsyncpa %s4433, 1
    %4435 = vsyncpa [#allocation5], 1
    %s4436 = scalar_lea.sflag [#allocation5], 1
    %4437 = vsyncpa %s4436, 1
    %4438 = vsyncpa [#allocation8], 1
    %4439 = vsyncpa [#allocation11], 1
    %4440 = vsyncpa [#allocation14], 1

</llo_original>
